<compile_context>
chip_gen: v7x
topology: tpu7x:2x2x1
jax: 0.10.0
libtpu: 0.0.40
codegen_flags: <defaults>
</compile_context>

<pallas_src>
import math

import jax
import jax.numpy as jnp
from jax.experimental import pallas as pl
from jax.experimental.pallas import tpu as pltpu  # noqa: F401

# ------------------------- model hyper-parameters --------------------------
D_MODEL = 32
NUM_HEADS = 4
D_FF = 64
D_K = D_MODEL // NUM_HEADS
LN_EPS = 1e-5  # PyTorch nn.LayerNorm default
# TODO(synk): nn.Dropout is a no-op at inference; no stochastic dropout inside the kernel.


# --------------------------------- kernel -----------------------------------
def decoder_layer_kernel(x_ref, enc_ref, tmask_ref, smask_ref,
                         wcat_ref, fc2w_ref, vec_ref, out_ref):
    B, S, D = x_ref.shape
    Se = enc_ref.shape[1]
    H, dk = NUM_HEADS, D_K

    x2d = x_ref[...].reshape(B * S, D)        # (B*S, D)
    enc2d = enc_ref[...].reshape(B * Se, D)   # (B*Se, D)
    tmask = tmask_ref[...]                    # (B, S)   additive
    smask = smask_ref[...]                    # (B, Se)  additive

    # ---- static, 32-lane-aligned weight slices out of the single weight blob
    w1_qkv = wcat_ref[:, 0:3 * D]                          # (D, 3D)
    w2_q = wcat_ref[:, 3 * D:4 * D]                        # (D, D)
    w2_kv = wcat_ref[:, 4 * D:6 * D]                       # (D, 2D)
    fc1w = wcat_ref[:, 6 * D:6 * D + D_FF]                 # (D, D_FF)
    w1_o = wcat_ref[:, 6 * D + D_FF:7 * D + D_FF]          # (D, D)
    w2_o = wcat_ref[:, 7 * D + D_FF:8 * D + D_FF]          # (D, D)
    fc2w = fc2w_ref[...]                                   # (D_FF, D)

    # ---- all bias / LN vectors live in one (8, 128) tile
    vec = vec_ref[...]
    b1_qkv = vec[0:1, 0:3 * D]                  # (1, 96)
    b2_kv = vec[1:2, 0:2 * D]                   # (1, 64)
    fc1b = vec[1:2, 2 * D:2 * D + D_FF]         # (1, 64)
    b1_o = vec[2:3, 0:D]                        # (1, 32)
    b2_q = vec[2:3, D:2 * D]                    # (1, 32)  (already scaled)
    b2_o = vec[2:3, 2 * D:3 * D]                # (1, 32)
    fc2b = vec[2:3, 3 * D:4 * D]                # (1, 32)
    ln_w = vec[3:4, :]                          # (1, 128) -> 3 x 32
    ln_b = vec[4:5, :]

    def layer_norm(t, idx):
        g = ln_w[:, idx * D:(idx + 1) * D]
        b = ln_b[:, idx * D:(idx + 1) * D]
        mu = jnp.mean(t, axis=-1, keepdims=True)
        c = t - mu
        var = jnp.mean(c * c, axis=-1, keepdims=True)
        return c * jax.lax.rsqrt(var + LN_EPS) * g + b

    def split_heads(t2d, sq):
        # (B*sq, H*dk) -> (B*H, sq, dk), batch-major / head-minor
        return t2d.reshape(B, sq, H, dk).swapaxes(1, 2).reshape(B * H, sq, dk)

    def combine_heads(t3d, sq):
        # (B*H, sq, dk) -> (B*sq, H*dk)
        return t3d.reshape(B, H, sq, dk).swapaxes(1, 2).reshape(B * sq, H * dk)

    def attention(q2d, k2d, v2d, mask, w_o, b_o, sq, sk):
        # q2d already carries the 1/sqrt(d_k) scale (folded into W_q/b_q).
        q = split_heads(q2d, sq)
        k = split_heads(k2d, sk)
        v = split_heads(v2d, sk)
        s = jnp.einsum("bqd,bkd->bqk", q, k,
                       preferred_element_type=jnp.float32)         # (B*H, sq, sk)
        m = jnp.broadcast_to(mask[:, None, None, :],
                             (B, H, 1, sk)).reshape(B * H, 1, sk)
        s = s + m
        s = s - jnp.max(s, axis=-1, keepdims=True)
        p = jnp.exp(s)
        p = p * pl.reciprocal(jnp.sum(p, axis=-1, keepdims=True), approx=True)
        ctx = jnp.einsum("bqk,bkd->bqd", p, v,
                         preferred_element_type=jnp.float32)       # (B*H, sq, dk)
        # concat(heads) @ W_o  ==  single MXU matmul doing the head reduction
        out = jnp.dot(combine_heads(ctx, sq), w_o,
                      preferred_element_type=jnp.float32)          # (B*sq, D)
        return out + b_o

    # ---- masked self-attention + residual + LN ----
    qkv = jnp.dot(x2d, w1_qkv, preferred_element_type=jnp.float32) + b1_qkv
    a1 = attention(qkv[:, 0:D], qkv[:, D:2 * D], qkv[:, 2 * D:3 * D],
                   tmask, w1_o, b1_o, S, S)
    x1 = layer_norm(x2d + a1, 0)

    # ---- cross-attention over encoder output + residual + LN ----
    q2 = jnp.dot(x1, w2_q, preferred_element_type=jnp.float32) + b2_q
    kv2 = jnp.dot(enc2d, w2_kv, preferred_element_type=jnp.float32) + b2_kv
    a2 = attention(q2, kv2[:, 0:D], kv2[:, D:2 * D],
                   smask, w2_o, b2_o, S, Se)
    x2 = layer_norm(x1 + a2, 1)

    # ---- position-wise FFN + residual + LN ----
    hdn = jnp.maximum(
        jnp.dot(x2, fc1w, preferred_element_type=jnp.float32) + fc1b, 0.0)
    ffn = jnp.dot(hdn, fc2w, preferred_element_type=jnp.float32) + fc2b
    out = layer_norm(x2 + ffn, 2)

    out_ref[...] = out.reshape(B, S, D)


# ------------------------ one-time parameter re-layout -----------------------
def prepare_params(p):
    """Pure-JAX re-layout, run ONCE (outside the per-call jitted path)."""
    D = D_MODEL
    scale = 1.0 / math.sqrt(D_K)
    a1w, a1b = p["a1w"], p["a1b"]
    a2w, a2b = p["a2w"], p["a2b"]

    w1_qkv = jnp.concatenate([a1w[0] * scale, a1w[1], a1w[2]], axis=1)  # (D, 3D)
    w2_q = a2w[0] * scale                                               # (D, D)
    w2_kv = jnp.concatenate([a2w[1], a2w[2]], axis=1)                   # (D, 2D)
    # column layout: [w1_qkv | w2_q | w2_kv | fc1w | w1_o | w2_o]  -> (D, 320)
    wcat = jnp.concatenate(
        [w1_qkv, w2_q, w2_kv, p["fc1w"], a1w[3], a2w[3]], axis=1
    ).astype(jnp.float32)
    fc2w = p["fc2w"].astype(jnp.float32)                                # (D_FF, D)

    vec = jnp.zeros((8, 128), jnp.float32)
    vec = vec.at[0, 0:3 * D].set(
        jnp.concatenate([a1b[0] * scale, a1b[1], a1b[2]]))
    vec = vec.at[1, 0:2 * D].set(jnp.concatenate([a2b[1], a2b[2]]))
    vec = vec.at[1, 2 * D:2 * D + D_FF].set(p["fc1b"].reshape(-1))
    vec = vec.at[2, 0:D].set(a1b[3])
    vec = vec.at[2, D:2 * D].set(a2b[0] * scale)
    vec = vec.at[2, 2 * D:3 * D].set(a2b[3])
    vec = vec.at[2, 3 * D:4 * D].set(p["fc2b"].reshape(-1))
    vec = vec.at[3, 0:3 * D].set(p["lnw"].reshape(-1))
    vec = vec.at[4, 0:3 * D].set(p["lnb"].reshape(-1))
    return wcat, fc2w, vec


# --------------------------------- wrapper -----------------------------------
@jax.jit
def decoder_layer(x, enc, tgt_mask, src_mask, wcat, fc2w, vec):
    B, S, D = x.shape
    # Single invocation, no grid: whole problem is a few KiB, so pipelining /
    # double buffering would only add fixed per-step overhead.
    return pl.pallas_call(
        decoder_layer_kernel,
        out_shape=jax.ShapeDtypeStruct((B, S, D), jnp.float32),
    )(x, enc, tgt_mask, src_mask, wcat, fc2w, vec)


# ----------------------- pure-JAX reference (validation) --------------------
def _ref_mha(q_in, kv_in, w, b, mask):
    Q = q_in @ w[0] + b[0]
    K = kv_in @ w[1] + b[1]
    V = kv_in @ w[2] + b[2]

    def split(t):  # (B, S, D) -> (B, H, S, dk)
        Bn, Sn, _ = t.shape
        return t.reshape(Bn, Sn, NUM_HEADS, D_K).transpose(0, 2, 1, 3)

    Qh, Kh, Vh = split(Q), split(K), split(V)
    s = jnp.einsum("bhqd,bhkd->bhqk", Qh, Kh) / math.sqrt(D_K)
    s = s + mask[:, None, None, :]
    p = jax.nn.softmax(s, axis=-1)
    o = jnp.einsum("bhqk,bhkd->bhqd", p, Vh)
    o = o.transpose(0, 2, 1, 3).reshape(q_in.shape[0], q_in.shape[1], D_MODEL)
    return o @ w[3] + b[3]


def _ref_ln(x, w, b):
    mu = jnp.mean(x, axis=-1, keepdims=True)
    var = jnp.mean(jnp.square(x - mu), axis=-1, keepdims=True)
    return (x - mu) / jnp.sqrt(var + LN_EPS) * w + b


def decoder_layer_ref(x, enc, tgt_mask, src_mask, p):
    a1 = _ref_mha(x, x, p["a1w"], p["a1b"], tgt_mask)
    x1 = _ref_ln(x + a1, p["lnw"][0], p["lnb"][0])
    a2 = _ref_mha(x1, enc, p["a2w"], p["a2b"], src_mask)
    x2 = _ref_ln(x1 + a2, p["lnw"][1], p["lnb"][1])
    h = jax.nn.relu(x2 @ p["fc1w"] + p["fc1b"][0])
    ffn = h @ p["fc2w"] + p["fc2b"][0]
    return _ref_ln(x2 + ffn, p["lnw"][2], p["lnb"][2])


# ----------------------------------- main ------------------------------------
if __name__ == "__main__":
    B, S, Se = 2, 8, 8
    key = jax.random.PRNGKey(0)
    keys = jax.random.split(key, 16)

    def init(k, shape, scale=0.05):
        return (scale * jax.random.normal(k, shape)).astype(jnp.float32)

    params = {
        "a1w": init(keys[0], (4, D_MODEL, D_MODEL)),
        "a1b": init(keys[1], (4, D_MODEL)),
        "a2w": init(keys[2], (4, D_MODEL, D_MODEL)),
        "a2b": init(keys[3], (4, D_MODEL)),
        "fc1w": init(keys[4], (D_MODEL, D_FF)),
        "fc1b": init(keys[5], (1, D_FF)),
        "fc2w": init(keys[6], (D_FF, D_MODEL)),
        "fc2b": init(keys[7], (1, D_MODEL)),
        "lnw": jnp.ones((3, D_MODEL), jnp.float32),   # nn.LayerNorm default init
        "lnb": jnp.zeros((3, D_MODEL), jnp.float32),
    }

    x = init(keys[8], (B, S, D_MODEL), scale=1.0)
    enc = init(keys[9], (B, Se, D_MODEL), scale=1.0)

    # additive masks: 0 = keep, -1e9 = masked key (per-key, as in the torch code)
    tgt_keep = (jax.random.uniform(keys[10], (B, S)) > 0.25).astype(jnp.float32)
    tgt_keep = tgt_keep.at[:, 0].set(1.0)  # never mask every key
    tgt_mask = (1.0 - tgt_keep) * -1e9
    src_mask = jnp.zeros((B, Se), jnp.float32)

    # One-time parameter re-layout, cached outside the per-call path.
    wcat, fc2w, vec = prepare_params(params)
    wcat, fc2w, vec = jax.block_until_ready((wcat, fc2w, vec))

    out = decoder_layer(x, enc, tgt_mask, src_mask, wcat, fc2w, vec)
    out = jax.block_until_ready(out)

    ref = decoder_layer_ref(x, enc, tgt_mask, src_mask, params)
    assert out.shape == (B, S, D_MODEL)
    # tolerance accounts for the approximate EUP reciprocal in the softmax
    # (pl.reciprocal(..., approx=True), per the performance review).
    assert jnp.allclose(out, ref, atol=3e-3, rtol=3e-3), (
        "mismatch vs. pure-JAX reference: max abs err = "
        + str(float(jnp.max(jnp.abs(out - ref))))
    )

    print("KERNEL_OK")
</pallas_src>

<mosaic_0001>
module attributes {stable_mosaic.version = 11 : i64} {
  func.func @decoder_layer_kernel(%arg0: memref<2x8x32xf32, #tpu.memory_space<vmem>>, %arg1: memref<2x8x32xf32, #tpu.memory_space<vmem>>, %arg2: memref<2x8xf32, #tpu.memory_space<vmem>>, %arg3: memref<2x8xf32, #tpu.memory_space<vmem>>, %arg4: memref<32x320xf32, #tpu.memory_space<vmem>>, %arg5: memref<64x32xf32, #tpu.memory_space<vmem>>, %arg6: memref<8x128xf32, #tpu.memory_space<vmem>>, %arg7: memref<2x8x32xf32, #tpu.memory_space<vmem>>) attributes {dimension_semantics = [], scalar_prefetch = 0 : i64, scratch_operands = 0 : i64, tpu.core_type = #tpu.core_type<tc>} {
    %c0 = arith.constant 0 : index
    %c0_0 = arith.constant 0 : index
    %c0_1 = arith.constant 0 : index
    %0 = vector.load %arg0[%c0, %c0_0, %c0_1] : memref<2x8x32xf32, #tpu.memory_space<vmem>>, vector<2x8x32xf32>
    %1 = vector.shape_cast %0 : vector<2x8x32xf32> to vector<16x32xf32>
    %c0_2 = arith.constant 0 : index
    %c0_3 = arith.constant 0 : index
    %c0_4 = arith.constant 0 : index
    %2 = vector.load %arg1[%c0_2, %c0_3, %c0_4] : memref<2x8x32xf32, #tpu.memory_space<vmem>>, vector<2x8x32xf32>
    %3 = vector.shape_cast %2 : vector<2x8x32xf32> to vector<16x32xf32>
    %c0_5 = arith.constant 0 : index
    %c0_6 = arith.constant 0 : index
    %4 = vector.load %arg2[%c0_5, %c0_6] : memref<2x8xf32, #tpu.memory_space<vmem>>, vector<2x8xf32>
    %c0_7 = arith.constant 0 : index
    %c0_8 = arith.constant 0 : index
    %5 = vector.load %arg3[%c0_7, %c0_8] : memref<2x8xf32, #tpu.memory_space<vmem>>, vector<2x8xf32>
    %c0_9 = arith.constant 0 : index
    %c0_10 = arith.constant 0 : index
    %6 = vector.load %arg4[%c0_9, %c0_10] : memref<32x320xf32, #tpu.memory_space<vmem>>, vector<32x96xf32>
    %c0_11 = arith.constant 0 : index
    %c96 = arith.constant 96 : index
    %7 = vector.load %arg4[%c0_11, %c96] : memref<32x320xf32, #tpu.memory_space<vmem>>, vector<32x32xf32>
    %c0_12 = arith.constant 0 : index
    %c128 = arith.constant 128 : index
    %8 = vector.load %arg4[%c0_12, %c128] : memref<32x320xf32, #tpu.memory_space<vmem>>, vector<32x64xf32>
    %c0_13 = arith.constant 0 : index
    %c192 = arith.constant 192 : index
    %9 = vector.load %arg4[%c0_13, %c192] : memref<32x320xf32, #tpu.memory_space<vmem>>, vector<32x64xf32>
    %c0_14 = arith.constant 0 : index
    %c256 = arith.constant 256 : index
    %10 = vector.load %arg4[%c0_14, %c256] : memref<32x320xf32, #tpu.memory_space<vmem>>, vector<32x32xf32>
    %c0_15 = arith.constant 0 : index
    %c288 = arith.constant 288 : index
    %11 = vector.load %arg4[%c0_15, %c288] : memref<32x320xf32, #tpu.memory_space<vmem>>, vector<32x32xf32>
    %c0_16 = arith.constant 0 : index
    %c0_17 = arith.constant 0 : index
    %12 = vector.load %arg5[%c0_16, %c0_17] : memref<64x32xf32, #tpu.memory_space<vmem>>, vector<64x32xf32>
    %c0_18 = arith.constant 0 : index
    %c0_19 = arith.constant 0 : index
    %13 = vector.load %arg6[%c0_18, %c0_19] : memref<8x128xf32, #tpu.memory_space<vmem>>, vector<8x128xf32>
    %14 = vector.extract_strided_slice %13 {offsets = [0, 0], sizes = [1, 96], strides = [1, 1]} : vector<8x128xf32> to vector<1x96xf32>
    %15 = vector.extract_strided_slice %13 {offsets = [1, 0], sizes = [1, 64], strides = [1, 1]} : vector<8x128xf32> to vector<1x64xf32>
    %16 = vector.extract_strided_slice %13 {offsets = [1, 64], sizes = [1, 64], strides = [1, 1]} : vector<8x128xf32> to vector<1x64xf32>
    %17 = vector.extract_strided_slice %13 {offsets = [2, 0], sizes = [1, 32], strides = [1, 1]} : vector<8x128xf32> to vector<1x32xf32>
    %18 = vector.extract_strided_slice %13 {offsets = [2, 32], sizes = [1, 32], strides = [1, 1]} : vector<8x128xf32> to vector<1x32xf32>
    %19 = vector.extract_strided_slice %13 {offsets = [2, 64], sizes = [1, 32], strides = [1, 1]} : vector<8x128xf32> to vector<1x32xf32>
    %20 = vector.extract_strided_slice %13 {offsets = [2, 96], sizes = [1, 32], strides = [1, 1]} : vector<8x128xf32> to vector<1x32xf32>
    %21 = vector.extract_strided_slice %13 {offsets = [3, 0], sizes = [1, 128], strides = [1, 1]} : vector<8x128xf32> to vector<1x128xf32>
    %22 = vector.extract_strided_slice %13 {offsets = [4, 0], sizes = [1, 128], strides = [1, 1]} : vector<8x128xf32> to vector<1x128xf32>
    %cst = arith.constant dense<0.000000e+00> : vector<16x96xf32>
    %23 = tpu.matmul %1, %6, %cst {dimension_numbers = #tpu.dot_dimension_numbers<[1], [0], [0], [1], [0, 0, 1, 1], [], []>} : vector<16x32xf32>, vector<32x96xf32>, vector<16x96xf32> -> vector<16x96xf32>
    %24 = vector.broadcast %14 : vector<1x96xf32> to vector<16x96xf32>
    %25 = arith.addf %23, %24 : vector<16x96xf32>
    %26 = vector.extract_strided_slice %25 {offsets = [0, 0], sizes = [16, 32], strides = [1, 1]} : vector<16x96xf32> to vector<16x32xf32>
    %27 = vector.extract_strided_slice %25 {offsets = [0, 32], sizes = [16, 32], strides = [1, 1]} : vector<16x96xf32> to vector<16x32xf32>
    %28 = vector.extract_strided_slice %25 {offsets = [0, 64], sizes = [16, 32], strides = [1, 1]} : vector<16x96xf32> to vector<16x32xf32>
    %29 = vector.shape_cast %26 : vector<16x32xf32> to vector<2x8x4x8xf32>
    %30 = tpu.transpose %29, [0, 2, 1, 3] : vector<2x8x4x8xf32> -> vector<2x4x8x8xf32>
    %31 = vector.shape_cast %30 : vector<2x4x8x8xf32> to vector<8x8x8xf32>
    %32 = vector.shape_cast %27 : vector<16x32xf32> to vector<2x8x4x8xf32>
    %33 = tpu.transpose %32, [0, 2, 1, 3] : vector<2x8x4x8xf32> -> vector<2x4x8x8xf32>
    %34 = vector.shape_cast %33 : vector<2x4x8x8xf32> to vector<8x8x8xf32>
    %35 = vector.shape_cast %28 : vector<16x32xf32> to vector<2x8x4x8xf32>
    %36 = tpu.transpose %35, [0, 2, 1, 3] : vector<2x8x4x8xf32> -> vector<2x4x8x8xf32>
    %37 = vector.shape_cast %36 : vector<2x4x8x8xf32> to vector<8x8x8xf32>
    "tpu.trace_start"() <{level = 10 : i32, message = "bqd,bkd->bqk"}> : () -> ()
    %cst_20 = arith.constant dense<0.000000e+00> : vector<8x8x8xf32>
    %38 = tpu.matmul %31, %34, %cst_20 {dimension_numbers = #tpu.dot_dimension_numbers<[2], [2], [1], [1], [0, 0, 0, 1, 1, 1], [0], [0]>} : vector<8x8x8xf32>, vector<8x8x8xf32>, vector<8x8x8xf32> -> vector<8x8x8xf32>
    "tpu.trace_stop"() : () -> ()
    %39 = vector.shape_cast %4 : vector<2x8xf32> to vector<2x1x1x8xf32>
    %40 = vector.shape_cast %39 : vector<2x1x1x8xf32> to vector<2x1x1x8xf32>
    %41 = vector.broadcast %40 : vector<2x1x1x8xf32> to vector<2x4x1x8xf32>
    %42 = vector.shape_cast %41 : vector<2x4x1x8xf32> to vector<8x1x8xf32>
    %43 = vector.broadcast %42 : vector<8x1x8xf32> to vector<8x8x8xf32>
    %44 = arith.addf %38, %43 : vector<8x8x8xf32>
    %cst_21 = arith.constant dense<0xFF800000> : vector<8x8xf32>
    %45 = vector.multi_reduction <maximumf>, %44, %cst_21 [2] : vector<8x8x8xf32> to vector<8x8xf32>
    %46 = vector.shape_cast %45 : vector<8x8xf32> to vector<8x8x1xf32>
    %47 = vector.broadcast %46 : vector<8x8x1xf32> to vector<8x8x8xf32>
    %48 = arith.subf %44, %47 : vector<8x8x8xf32>
    %49 = math.exp %48 : vector<8x8x8xf32>
    %cst_22 = arith.constant dense<0.000000e+00> : vector<8x8xf32>
    %50 = vector.multi_reduction <add>, %49, %cst_22 [2] : vector<8x8x8xf32> to vector<8x8xf32>
    %51 = vector.shape_cast %50 : vector<8x8xf32> to vector<8x8x1xf32>
    %52 = tpu.reciprocal %51 {approx = true} : vector<8x8x1xf32> -> vector<8x8x1xf32>
    %53 = vector.broadcast %52 : vector<8x8x1xf32> to vector<8x8x8xf32>
    %54 = arith.mulf %49, %53 : vector<8x8x8xf32>
    "tpu.trace_start"() <{level = 10 : i32, message = "bqk,bkd->bqd"}> : () -> ()
    %cst_23 = arith.constant dense<0.000000e+00> : vector<8x8x8xf32>
    %55 = tpu.matmul %54, %37, %cst_23 {dimension_numbers = #tpu.dot_dimension_numbers<[2], [1], [1], [2], [0, 0, 0, 1, 1, 2], [0], [0]>} : vector<8x8x8xf32>, vector<8x8x8xf32>, vector<8x8x8xf32> -> vector<8x8x8xf32>
    "tpu.trace_stop"() : () -> ()
    %56 = vector.shape_cast %55 : vector<8x8x8xf32> to vector<2x4x8x8xf32>
    %57 = tpu.transpose %56, [0, 2, 1, 3] : vector<2x4x8x8xf32> -> vector<2x8x4x8xf32>
    %58 = vector.shape_cast %57 : vector<2x8x4x8xf32> to vector<16x32xf32>
    %cst_24 = arith.constant dense<0.000000e+00> : vector<16x32xf32>
    %59 = tpu.matmul %58, %10, %cst_24 {dimension_numbers = #tpu.dot_dimension_numbers<[1], [0], [0], [1], [0, 0, 1, 1], [], []>} : vector<16x32xf32>, vector<32x32xf32>, vector<16x32xf32> -> vector<16x32xf32>
    %60 = vector.broadcast %17 : vector<1x32xf32> to vector<16x32xf32>
    %61 = arith.addf %59, %60 : vector<16x32xf32>
    %62 = arith.addf %1, %61 : vector<16x32xf32>
    %63 = vector.extract_strided_slice %21 {offsets = [0, 0], sizes = [1, 32], strides = [1, 1]} : vector<1x128xf32> to vector<1x32xf32>
    %64 = vector.extract_strided_slice %22 {offsets = [0, 0], sizes = [1, 32], strides = [1, 1]} : vector<1x128xf32> to vector<1x32xf32>
    %cst_25 = arith.constant dense<0.000000e+00> : vector<16xf32>
    %65 = vector.multi_reduction <add>, %62, %cst_25 [1] : vector<16x32xf32> to vector<16xf32>
    %66 = vector.shape_cast %65 : vector<16xf32> to vector<16x1xf32>
    %cst_26 = arith.constant 3.200000e+01 : f32
    %67 = vector.broadcast %cst_26 : f32 to vector<16x1xf32>
    %68 = arith.divf %66, %67 : vector<16x1xf32>
    %69 = vector.broadcast %68 : vector<16x1xf32> to vector<16x32xf32>
    %70 = arith.subf %62, %69 : vector<16x32xf32>
    %71 = arith.mulf %70, %70 : vector<16x32xf32>
    %cst_27 = arith.constant dense<0.000000e+00> : vector<16xf32>
    %72 = vector.multi_reduction <add>, %71, %cst_27 [1] : vector<16x32xf32> to vector<16xf32>
    %73 = vector.shape_cast %72 : vector<16xf32> to vector<16x1xf32>
    %cst_28 = arith.constant 3.200000e+01 : f32
    %74 = vector.broadcast %cst_28 : f32 to vector<16x1xf32>
    %75 = arith.divf %73, %74 : vector<16x1xf32>
    %cst_29 = arith.constant 9.99999974E-6 : f32
    %76 = vector.broadcast %cst_29 : f32 to vector<16x1xf32>
    %77 = arith.addf %75, %76 : vector<16x1xf32>
    %78 = math.rsqrt %77 : vector<16x1xf32>
    %79 = vector.broadcast %78 : vector<16x1xf32> to vector<16x32xf32>
    %80 = arith.mulf %70, %79 : vector<16x32xf32>
    %81 = vector.broadcast %63 : vector<1x32xf32> to vector<16x32xf32>
    %82 = arith.mulf %80, %81 : vector<16x32xf32>
    %83 = vector.broadcast %64 : vector<1x32xf32> to vector<16x32xf32>
    %84 = arith.addf %82, %83 : vector<16x32xf32>
    %cst_30 = arith.constant dense<0.000000e+00> : vector<16x32xf32>
    %85 = tpu.matmul %84, %7, %cst_30 {dimension_numbers = #tpu.dot_dimension_numbers<[1], [0], [0], [1], [0, 0, 1, 1], [], []>} : vector<16x32xf32>, vector<32x32xf32>, vector<16x32xf32> -> vector<16x32xf32>
    %86 = vector.broadcast %18 : vector<1x32xf32> to vector<16x32xf32>
    %87 = arith.addf %85, %86 : vector<16x32xf32>
    %cst_31 = arith.constant dense<0.000000e+00> : vector<16x64xf32>
    %88 = tpu.matmul %3, %8, %cst_31 {dimension_numbers = #tpu.dot_dimension_numbers<[1], [0], [0], [1], [0, 0, 1, 1], [], []>} : vector<16x32xf32>, vector<32x64xf32>, vector<16x64xf32> -> vector<16x64xf32>
    %89 = vector.broadcast %15 : vector<1x64xf32> to vector<16x64xf32>
    %90 = arith.addf %88, %89 : vector<16x64xf32>
    %91 = vector.extract_strided_slice %90 {offsets = [0, 0], sizes = [16, 32], strides = [1, 1]} : vector<16x64xf32> to vector<16x32xf32>
    %92 = vector.extract_strided_slice %90 {offsets = [0, 32], sizes = [16, 32], strides = [1, 1]} : vector<16x64xf32> to vector<16x32xf32>
    %93 = vector.shape_cast %87 : vector<16x32xf32> to vector<2x8x4x8xf32>
    %94 = tpu.transpose %93, [0, 2, 1, 3] : vector<2x8x4x8xf32> -> vector<2x4x8x8xf32>
    %95 = vector.shape_cast %94 : vector<2x4x8x8xf32> to vector<8x8x8xf32>
    %96 = vector.shape_cast %91 : vector<16x32xf32> to vector<2x8x4x8xf32>
    %97 = tpu.transpose %96, [0, 2, 1, 3] : vector<2x8x4x8xf32> -> vector<2x4x8x8xf32>
    %98 = vector.shape_cast %97 : vector<2x4x8x8xf32> to vector<8x8x8xf32>
    %99 = vector.shape_cast %92 : vector<16x32xf32> to vector<2x8x4x8xf32>
    %100 = tpu.transpose %99, [0, 2, 1, 3] : vector<2x8x4x8xf32> -> vector<2x4x8x8xf32>
    %101 = vector.shape_cast %100 : vector<2x4x8x8xf32> to vector<8x8x8xf32>
    "tpu.trace_start"() <{level = 10 : i32, message = "bqd,bkd->bqk"}> : () -> ()
    %cst_32 = arith.constant dense<0.000000e+00> : vector<8x8x8xf32>
    %102 = tpu.matmul %95, %98, %cst_32 {dimension_numbers = #tpu.dot_dimension_numbers<[2], [2], [1], [1], [0, 0, 0, 1, 1, 1], [0], [0]>} : vector<8x8x8xf32>, vector<8x8x8xf32>, vector<8x8x8xf32> -> vector<8x8x8xf32>
    "tpu.trace_stop"() : () -> ()
    %103 = vector.shape_cast %5 : vector<2x8xf32> to vector<2x1x1x8xf32>
    %104 = vector.shape_cast %103 : vector<2x1x1x8xf32> to vector<2x1x1x8xf32>
    %105 = vector.broadcast %104 : vector<2x1x1x8xf32> to vector<2x4x1x8xf32>
    %106 = vector.shape_cast %105 : vector<2x4x1x8xf32> to vector<8x1x8xf32>
    %107 = vector.broadcast %106 : vector<8x1x8xf32> to vector<8x8x8xf32>
    %108 = arith.addf %102, %107 : vector<8x8x8xf32>
    %cst_33 = arith.constant dense<0xFF800000> : vector<8x8xf32>
    %109 = vector.multi_reduction <maximumf>, %108, %cst_33 [2] : vector<8x8x8xf32> to vector<8x8xf32>
    %110 = vector.shape_cast %109 : vector<8x8xf32> to vector<8x8x1xf32>
    %111 = vector.broadcast %110 : vector<8x8x1xf32> to vector<8x8x8xf32>
    %112 = arith.subf %108, %111 : vector<8x8x8xf32>
    %113 = math.exp %112 : vector<8x8x8xf32>
    %cst_34 = arith.constant dense<0.000000e+00> : vector<8x8xf32>
    %114 = vector.multi_reduction <add>, %113, %cst_34 [2] : vector<8x8x8xf32> to vector<8x8xf32>
    %115 = vector.shape_cast %114 : vector<8x8xf32> to vector<8x8x1xf32>
    %116 = tpu.reciprocal %115 {approx = true} : vector<8x8x1xf32> -> vector<8x8x1xf32>
    %117 = vector.broadcast %116 : vector<8x8x1xf32> to vector<8x8x8xf32>
    %118 = arith.mulf %113, %117 : vector<8x8x8xf32>
    "tpu.trace_start"() <{level = 10 : i32, message = "bqk,bkd->bqd"}> : () -> ()
    %cst_35 = arith.constant dense<0.000000e+00> : vector<8x8x8xf32>
    %119 = tpu.matmul %118, %101, %cst_35 {dimension_numbers = #tpu.dot_dimension_numbers<[2], [1], [1], [2], [0, 0, 0, 1, 1, 2], [0], [0]>} : vector<8x8x8xf32>, vector<8x8x8xf32>, vector<8x8x8xf32> -> vector<8x8x8xf32>
    "tpu.trace_stop"() : () -> ()
    %120 = vector.shape_cast %119 : vector<8x8x8xf32> to vector<2x4x8x8xf32>
    %121 = tpu.transpose %120, [0, 2, 1, 3] : vector<2x4x8x8xf32> -> vector<2x8x4x8xf32>
    %122 = vector.shape_cast %121 : vector<2x8x4x8xf32> to vector<16x32xf32>
    %cst_36 = arith.constant dense<0.000000e+00> : vector<16x32xf32>
    %123 = tpu.matmul %122, %11, %cst_36 {dimension_numbers = #tpu.dot_dimension_numbers<[1], [0], [0], [1], [0, 0, 1, 1], [], []>} : vector<16x32xf32>, vector<32x32xf32>, vector<16x32xf32> -> vector<16x32xf32>
    %124 = vector.broadcast %19 : vector<1x32xf32> to vector<16x32xf32>
    %125 = arith.addf %123, %124 : vector<16x32xf32>
    %126 = arith.addf %84, %125 : vector<16x32xf32>
    %127 = vector.extract_strided_slice %21 {offsets = [0, 32], sizes = [1, 32], strides = [1, 1]} : vector<1x128xf32> to vector<1x32xf32>
    %128 = vector.extract_strided_slice %22 {offsets = [0, 32], sizes = [1, 32], strides = [1, 1]} : vector<1x128xf32> to vector<1x32xf32>
    %cst_37 = arith.constant dense<0.000000e+00> : vector<16xf32>
    %129 = vector.multi_reduction <add>, %126, %cst_37 [1] : vector<16x32xf32> to vector<16xf32>
    %130 = vector.shape_cast %129 : vector<16xf32> to vector<16x1xf32>
    %cst_38 = arith.constant 3.200000e+01 : f32
    %131 = vector.broadcast %cst_38 : f32 to vector<16x1xf32>
    %132 = arith.divf %130, %131 : vector<16x1xf32>
    %133 = vector.broadcast %132 : vector<16x1xf32> to vector<16x32xf32>
    %134 = arith.subf %126, %133 : vector<16x32xf32>
    %135 = arith.mulf %134, %134 : vector<16x32xf32>
    %cst_39 = arith.constant dense<0.000000e+00> : vector<16xf32>
    %136 = vector.multi_reduction <add>, %135, %cst_39 [1] : vector<16x32xf32> to vector<16xf32>
    %137 = vector.shape_cast %136 : vector<16xf32> to vector<16x1xf32>
    %cst_40 = arith.constant 3.200000e+01 : f32
    %138 = vector.broadcast %cst_40 : f32 to vector<16x1xf32>
    %139 = arith.divf %137, %138 : vector<16x1xf32>
    %cst_41 = arith.constant 9.99999974E-6 : f32
    %140 = vector.broadcast %cst_41 : f32 to vector<16x1xf32>
    %141 = arith.addf %139, %140 : vector<16x1xf32>
    %142 = math.rsqrt %141 : vector<16x1xf32>
    %143 = vector.broadcast %142 : vector<16x1xf32> to vector<16x32xf32>
    %144 = arith.mulf %134, %143 : vector<16x32xf32>
    %145 = vector.broadcast %127 : vector<1x32xf32> to vector<16x32xf32>
    %146 = arith.mulf %144, %145 : vector<16x32xf32>
    %147 = vector.broadcast %128 : vector<1x32xf32> to vector<16x32xf32>
    %148 = arith.addf %146, %147 : vector<16x32xf32>
    %cst_42 = arith.constant dense<0.000000e+00> : vector<16x64xf32>
    %149 = tpu.matmul %148, %9, %cst_42 {dimension_numbers = #tpu.dot_dimension_numbers<[1], [0], [0], [1], [0, 0, 1, 1], [], []>} : vector<16x32xf32>, vector<32x64xf32>, vector<16x64xf32> -> vector<16x64xf32>
    %150 = vector.broadcast %16 : vector<1x64xf32> to vector<16x64xf32>
    %151 = arith.addf %149, %150 : vector<16x64xf32>
    %cst_43 = arith.constant 0.000000e+00 : f32
    %152 = vector.broadcast %cst_43 : f32 to vector<16x64xf32>
    %153 = arith.maximumf %151, %152 : vector<16x64xf32>
    %cst_44 = arith.constant dense<0.000000e+00> : vector<16x32xf32>
    %154 = tpu.matmul %153, %12, %cst_44 {dimension_numbers = #tpu.dot_dimension_numbers<[1], [0], [0], [1], [0, 0, 1, 1], [], []>} : vector<16x64xf32>, vector<64x32xf32>, vector<16x32xf32> -> vector<16x32xf32>
    %155 = vector.broadcast %20 : vector<1x32xf32> to vector<16x32xf32>
    %156 = arith.addf %154, %155 : vector<16x32xf32>
    %157 = arith.addf %148, %156 : vector<16x32xf32>
    %158 = vector.extract_strided_slice %21 {offsets = [0, 64], sizes = [1, 32], strides = [1, 1]} : vector<1x128xf32> to vector<1x32xf32>
    %159 = vector.extract_strided_slice %22 {offsets = [0, 64], sizes = [1, 32], strides = [1, 1]} : vector<1x128xf32> to vector<1x32xf32>
    %cst_45 = arith.constant dense<0.000000e+00> : vector<16xf32>
    %160 = vector.multi_reduction <add>, %157, %cst_45 [1] : vector<16x32xf32> to vector<16xf32>
    %161 = vector.shape_cast %160 : vector<16xf32> to vector<16x1xf32>
    %cst_46 = arith.constant 3.200000e+01 : f32
    %162 = vector.broadcast %cst_46 : f32 to vector<16x1xf32>
    %163 = arith.divf %161, %162 : vector<16x1xf32>
    %164 = vector.broadcast %163 : vector<16x1xf32> to vector<16x32xf32>
    %165 = arith.subf %157, %164 : vector<16x32xf32>
    %166 = arith.mulf %165, %165 : vector<16x32xf32>
    %cst_47 = arith.constant dense<0.000000e+00> : vector<16xf32>
    %167 = vector.multi_reduction <add>, %166, %cst_47 [1] : vector<16x32xf32> to vector<16xf32>
    %168 = vector.shape_cast %167 : vector<16xf32> to vector<16x1xf32>
    %cst_48 = arith.constant 3.200000e+01 : f32
    %169 = vector.broadcast %cst_48 : f32 to vector<16x1xf32>
    %170 = arith.divf %168, %169 : vector<16x1xf32>
    %cst_49 = arith.constant 9.99999974E-6 : f32
    %171 = vector.broadcast %cst_49 : f32 to vector<16x1xf32>
    %172 = arith.addf %170, %171 : vector<16x1xf32>
    %173 = math.rsqrt %172 : vector<16x1xf32>
    %174 = vector.broadcast %173 : vector<16x1xf32> to vector<16x32xf32>
    %175 = arith.mulf %165, %174 : vector<16x32xf32>
    %176 = vector.broadcast %158 : vector<1x32xf32> to vector<16x32xf32>
    %177 = arith.mulf %175, %176 : vector<16x32xf32>
    %178 = vector.broadcast %159 : vector<1x32xf32> to vector<16x32xf32>
    %179 = arith.addf %177, %178 : vector<16x32xf32>
    %180 = vector.shape_cast %179 : vector<16x32xf32> to vector<2x8x32xf32>
    %c0_50 = arith.constant 0 : index
    %c0_51 = arith.constant 0 : index
    %c0_52 = arith.constant 0 : index
    %181 = vector.load %arg7[%c0_50, %c0_51, %c0_52] : memref<2x8x32xf32, #tpu.memory_space<vmem>>, vector<2x8x32xf32>
    tpu.vector_store %arg7[%c0_50, %c0_51, %c0_52], %180 {strides = array<i32>} : memref<2x8x32xf32, #tpu.memory_space<vmem>>, vector<2x8x32xf32>,
    return
  }
}

</mosaic_0001>

<llo_original>
// kernel: decoder_layer.1
$region0: #{decoder_layer.1}
  #allocation0 [shape = 'u32[]', space=smem, size = 0x4, offset = 0x4, fixed_abs, tag = 'smem constant byte address 0x4 - core index']
  #allocation1 [shape = 'u32[144,128]{1,0:T(1,128)}', space=vmem, size = 0x12000, scoped, tag = 'internal scratch']
  %s0 = inlined_call_operand.hbm [shape: f32[2,8,32], index: 0, kind: input, shape index: {}]
  %s1 = inlined_call_operand.hbm [shape: f32[2,8,32], index: 1, kind: input, shape index: {}]
  %s2 = inlined_call_operand.vmem [shape: f32[2,8], index: 2, kind: input, shape index: {}]
  %s3 = inlined_call_operand.vmem [shape: f32[2,8], index: 3, kind: input, shape index: {}]
  %s4 = inlined_call_operand.vmem [shape: f32[32,320], index: 4, kind: input, shape index: {}]
  %s5 = inlined_call_operand.vmem [shape: f32[64,32], index: 5, kind: input, shape index: {}]
  %s6 = inlined_call_operand.vmem [shape: f32[8,128], index: 6, kind: input, shape index: {}]
  %s7 = inlined_call_operand.hbm [shape: f32[2,8,32], index: 7, kind: output, shape index: {}]
  %s8 = sld [smem:[#allocation0]]
  $region46: #{decoder_layer.1} parent=0
    _
  %s10 = ssub.s32 1, %s8
  %s11 = scalar_select 0, %s10, %s8
  $region1: #{decoder_layer.1} parent=0
    #allocation2 [shape = 'u8[8192]{0}', space=vmem, size = 0x2000, scoped, tag = 'input window, operand 0, single buffered']
    #allocation3 [shape = 's32[1]{0}', space=sflag, size = 0x4, scoped, tag = 'scoped memory for decoder_layer.1']
    #allocation4 [shape = 's32[1]{0}', space=sflag, size = 0x4, scoped, tag = 'scoped memory for decoder_layer.1']
    #allocation5 [shape = 'u8[8192]{0}', space=vmem, size = 0x2000, scoped, tag = 'input window, operand 1, single buffered']
    #allocation6 [shape = 's32[1]{0}', space=sflag, size = 0x4, scoped, tag = 'scoped memory for decoder_layer.1']
    #allocation7 [shape = 'u8[8192]{0}', space=vmem, size = 0x2000, scoped, tag = 'output window, operand 0, single buffered']
    %12 = vsyncpa [#allocation3], 0
    %13 = vsyncpa [#allocation6], 0
    %14 = vsyncpa [#allocation4], 0
    // Predicated region
    $region2: #{decoder_layer.1} parent=1 // pred_check
      _
    $region3: #{decoder_layer.1} parent=1 // pred_check_branch
      %16 = sbr.rel (0) target = $region5
    $region4: #{decoder_layer.1} parent=1 // pred_region
      %s18 = ssub.s32 256, 256
      %19 = vsyncadd [#allocation3], %s18
      %s20 = sshll.u32 [#allocation2], 4
      %s21 = int_to_ptr.vmem [resolvable:$true] %s20
      %26 = dma.hbm_to_vmem [thread:$0]  %s0, 256, %s21, [#allocation3], 128, 128, 8
    $region5: #{decoder_layer.1} parent=1 // pred_fallthru
      _
    // Predicated region
    $region6: #{decoder_layer.1} parent=1 // pred_check
      _
    $region7: #{decoder_layer.1} parent=1 // pred_check_branch
      %28 = sbr.rel (0) target = $region9
    $region8: #{decoder_layer.1} parent=1 // pred_region
      %s30 = ssub.s32 256, 256
      %31 = vsyncadd [#allocation6], %s30
      %s32 = sshll.u32 [#allocation5], 4
      %s33 = int_to_ptr.vmem [resolvable:$true] %s32
      %38 = dma.hbm_to_vmem [thread:$0]  %s1, 256, %s33, [#allocation6], 128, 128, 8
    $region9: #{decoder_layer.1} parent=1 // pred_fallthru
      _
    // Predicated region
    $region10: #{decoder_layer.1} parent=1 // pred_check
      _
    $region11: #{decoder_layer.1} parent=1 // pred_check_branch
      %40 = sbr.rel (0) target = $region13
    $region12: #{decoder_layer.1} parent=1 // pred_region
      _
    $region13: #{decoder_layer.1} parent=1 // pred_fallthru
      _
    // Predicated region
    $region14: #{decoder_layer.1} parent=1 // pred_check
      _
    $region15: #{decoder_layer.1} parent=1 // pred_check_branch
      %42 = sbr.rel (0) target = $region17
    $region16: #{decoder_layer.1} parent=1 // pred_region
      _
    $region17: #{decoder_layer.1} parent=1 // pred_fallthru
      _
    // Predicated region
    $region18: #{decoder_layer.1} parent=1 // pred_check
      _
    $region19: #{decoder_layer.1} parent=1 // pred_check_branch
      %44 = sbr.rel (0) target = $region21
    $region20: #{decoder_layer.1} parent=1 // pred_region
      _
    $region21: #{decoder_layer.1} parent=1 // pred_fallthru
      _
    // Predicated region
    $region22: #{decoder_layer.1} parent=1 // pred_check
      _
    $region23: #{decoder_layer.1} parent=1 // pred_check_branch
      %46 = sbr.rel (0) target = $region25
    $region24: #{decoder_layer.1} parent=1 // pred_region
      _
    $region25: #{decoder_layer.1} parent=1 // pred_fallthru
      _
    // Predicated region
    $region26: #{decoder_layer.1} parent=1 // pred_check
      _
    $region27: #{decoder_layer.1} parent=1 // pred_check_branch
      %48 = sbr.rel (0) target = $region29
    $region28: #{decoder_layer.1} parent=1 // pred_region
      _
    $region29: #{decoder_layer.1} parent=1 // pred_fallthru
      _
    // Predicated region
    $region30: #{decoder_layer.1} parent=1 // pred_check
      _
    $region31: #{decoder_layer.1} parent=1 // pred_check_branch
      %50 = sbr.rel (0) target = $region33
    $region32: #{decoder_layer.1} parent=1 // pred_region
      %51 = dma.done [#allocation3], 256
    $region33: #{decoder_layer.1} parent=1 // pred_fallthru
      _
    // Predicated region
    $region34: #{decoder_layer.1} parent=1 // pred_check
      _
    $region35: #{decoder_layer.1} parent=1 // pred_check_branch
      %53 = sbr.rel (0) target = $region37
    $region36: #{decoder_layer.1} parent=1 // pred_region
      %54 = dma.done [#allocation6], 256
    $region37: #{decoder_layer.1} parent=1 // pred_fallthru
      _
    %v55 = vld [vmem:[#allocation2] sm:$0xff]
    %v56 = vld [vmem:[#allocation2 + $0x8] sm:$0xff]
    %v57 = vld [vmem:[#allocation5] sm:$0xff]
    %v58 = vld [vmem:[#allocation5 + $0x8] sm:$0xff]
    %v59 = vld [vmem:[%s2] sm:$0x3]
    %v60 = vld [vmem:[%s3] sm:$0x3]
    %v61 = vld [vmem:[%s4] sm:$0xff]
    %v62 = vld [vmem:[%s4 + $0x18] sm:$0xff]
    %v63 = vld [vmem:[%s4 + $0x30] sm:$0xff]
    %v64 = vld [vmem:[%s4 + $0x48] sm:$0xff]
    %v65 = vld [vmem:[%s4 + $0x8] sm:$0xff]
    %v66 = vld [vmem:[%s4 + $0x20] sm:$0xff]
    %v67 = vld [vmem:[%s4 + $0x38] sm:$0xff]
    %v68 = vld [vmem:[%s4 + $0x50] sm:$0xff]
    %v69 = vld [vmem:[%s4 + $0x10] sm:$0xff]
    %v70 = vld [vmem:[%s4 + $0x28] sm:$0xff]
    %v71 = vld [vmem:[%s4 + $0x40] sm:$0xff]
    %v72 = vld [vmem:[%s4 + $0x58] sm:$0xff]
    %v73 = vld [vmem:[%s5] sm:$0xff]
    %v74 = vld [vmem:[%s5 + $0x8] sm:$0xff]
    %v75 = vld [vmem:[%s5 + $0x10] sm:$0xff]
    %v76 = vld [vmem:[%s5 + $0x18] sm:$0xff]
    %v77 = vld [vmem:[%s5 + $0x20] sm:$0xff]
    %v78 = vld [vmem:[%s5 + $0x28] sm:$0xff]
    %v79 = vld [vmem:[%s5 + $0x30] sm:$0xff]
    %v80 = vld [vmem:[%s5 + $0x38] sm:$0xff]
    %v81 = vld [vmem:[%s6] sm:$0xff]
    %v82 = vlaneseq
    %v83 = vshrl.u32 %v82, 7
    %v84 = vsub.s32 0, %v83
    %v85 = vrot.slane %v81, %v84
    %vm86 = vcmask 261120
    %v88 = vsel %vm86, %v55, 0
    %v91 = vsel %vm86, %v56, 0
    %93 = vmatprep.subr.mxu0 0.0
    %94 = vmatpush1.msra.mxu0 %v61
    %95 = vmatprep.subr.mxu0 0.0
    %96 = vmatpush1.msra.mxu0 %v62
    %97 = vmatprep.subr.mxu0 0.0
    %98 = vmatpush1.msra.mxu0 %v63
    %99 = vmatprep.subr.mxu0 0.0
    %100 = vmatpush1.msra.mxu0 %v64
    %101 = vmatprep.subr.mxu0 0.0
    %102 = vmatpush1.msra.mxu0 0.0
    %103 = vmatprep.subr.mxu0 0.0
    %104 = vmatpush1.msra.mxu0 0.0
    %105 = vmatprep.subr.mxu0 0.0
    %106 = vmatpush1.msra.mxu0 0.0
    %107 = vmatprep.subr.mxu0 0.0
    %108 = vmatpush1.msra.mxu0 0.0
    %109 = vmatprep.subr.mxu0 0.0
    %110 = vmatpush1.msra.mxu0 0.0
    %111 = vmatprep.subr.mxu0 0.0
    %112 = vmatpush1.msra.mxu0 0.0
    %113 = vmatprep.subr.mxu0 0.0
    %114 = vmatpush1.msra.mxu0 0.0
    %115 = vmatprep.subr.mxu0 0.0
    %116 = vmatpush1.msra.mxu0 0.0
    %117 = vmatprep.subr.mxu0 0.0
    %118 = vmatpush1.msra.mxu0 0.0
    %119 = vmatprep.subr.mxu0 0.0
    %120 = vmatpush1.msra.mxu0 0.0
    %121 = vmatprep.subr.mxu0 0.0
    %122 = vmatpush1.msra.mxu0 0.0
    %123 = vmatprep.subr.mxu0 0.0
    %124 = vmatpush1.msra.mxu0 0.0
    %125 = vmatprep.subr.mxu0 0.0
    %126 = vmatpush1.msra.mxu0 0.0
    %127 = vmatprep.subr.mxu0 0.0
    %128 = vmatpush1.msra.mxu0 0.0
    %129 = vmatprep.subr.mxu0 0.0
    %130 = vmatpush1.msra.mxu0 0.0
    %131 = vmatprep.subr.mxu0 0.0
    %132 = vmatpush1.msra.mxu0 0.0
    %133 = vmatprep.subr.mxu0 0.0
    %134 = vmatpush1.msra.mxu0 0.0
    %135 = vmatprep.subr.mxu0 0.0
    %136 = vmatpush1.msra.mxu0 0.0
    %137 = vmatprep.subr.mxu0 0.0
    %138 = vmatpush1.msra.mxu0 0.0
    %139 = vmatprep.subr.mxu0 0.0
    %140 = vmatpush1.msra.mxu0 0.0
    %141 = vmatprep.subr.mxu0 0.0
    %142 = vmatpush1.msra.mxu0 0.0
    %143 = vmatprep.subr.mxu0 0.0
    %144 = vmatpush1.msra.mxu0 0.0
    %145 = vmatprep.subr.mxu0 0.0
    %146 = vmatpush1.msra.mxu0 0.0
    %147 = vmatprep.subr.mxu0 0.0
    %148 = vmatpush1.msra.mxu0 0.0
    %149 = vmatprep.subr.mxu0 0.0
    %150 = vmatpush1.msra.mxu0 0.0
    %151 = vmatprep.subr.mxu0 0.0
    %152 = vmatpush1.msra.mxu0 0.0
    %153 = vmatprep.subr.mxu0 0.0
    %154 = vmatpush1.msra.mxu0 0.0
    %155 = vmatprep.subr.mxu0 0.0
    %156 = vmatpush1.msra.mxu0 0.0
    %157 = vmatprep.mubr.f32.mxu0 0.0
    %158 = vmatmul.mubr.f32.gmra.mrb[0].mxu0 %v88
    %v159 = vpop.f32.mrb[0].mxu0
    %v160 = vadd.f32 %v85, %v159
    %v161 = vpop.f32.mrb[0].mxu0
    %162 = vmatprep.mubr.f32.mxu0 0.0
    %163 = vmatmul.mubr.f32.gmra.mrb[0].mxu0 %v91
    %v164 = vpop.f32.mrb[0].mxu0
    %v165 = vadd.f32 %v85, %v164
    %v166 = vpop.f32.mrb[0].mxu0
    %167 = vdwg.mxu0
    %170 = vrot.lane.b32.xlu0 %v160, 120
    %v171 = vpop.permute.xlu0 %170
    %172 = vrot.lane.b32.xlu0 %v165, 120
    %v173 = vpop.permute.xlu0 %172
    %176 = vrot.lane.b32.xlu0 %v160, 112
    %v177 = vpop.permute.xlu0 %176
    %178 = vrot.lane.b32.xlu0 %v165, 112
    %v179 = vpop.permute.xlu0 %178
    %182 = vrot.lane.b32.xlu0 %v160, 104
    %v183 = vpop.permute.xlu0 %182
    %184 = vrot.lane.b32.xlu0 %v165, 104
    %v185 = vpop.permute.xlu0 %184
    %v188 = vcombine.low %v160, %v177
    %v189 = vcombine.high %v160, %v177
    %v191 = vunpack.c.l.s4 1983009808
    %v192 = vunpack.c.0.s8 %v191
    %v193 = vlaneseq
    %v194 = vshrl.u32 %v193, 7
    %v195 = vsub.s32 %v192, %v194
    %v196 = vrot.slane %v188, %v195
    %v198 = vunpack.c.l.s4 1983009808
    %v199 = vunpack.c.0.s8 %v198
    %v200 = vlaneseq
    %v201 = vshrl.u32 %v200, 7
    %v202 = vsub.s32 %v199, %v201
    %v203 = vrot.slane %v189, %v202
    %v204 = vcombine.low %v171, %v183
    %v205 = vcombine.high %v171, %v183
    %v207 = vunpack.c.l.s4 1983009808
    %v208 = vunpack.c.0.s8 %v207
    %v209 = vlaneseq
    %v210 = vshrl.u32 %v209, 7
    %v211 = vsub.s32 %v208, %v210
    %v212 = vrot.slane %v204, %v211
    %v214 = vunpack.c.l.s4 1983009808
    %v215 = vunpack.c.0.s8 %v214
    %v216 = vlaneseq
    %v217 = vshrl.u32 %v216, 7
    %v218 = vsub.s32 %v215, %v217
    %v219 = vrot.slane %v205, %v218
    %v220 = vcombine.low %v196, %v212
    %v221 = vcombine.high %v196, %v212
    %v223 = vunpack.c.l.s4 1934713408
    %v224 = vunpack.c.0.s8 %v223
    %v225 = vlaneseq
    %v226 = vshrl.u32 %v225, 7
    %v227 = vsub.s32 %v224, %v226
    %v228 = vrot.slane %v220, %v227
    %v230 = vunpack.c.l.s4 1934713408
    %v231 = vunpack.c.0.s8 %v230
    %v232 = vlaneseq
    %v233 = vshrl.u32 %v232, 7
    %v234 = vsub.s32 %v231, %v233
    %v235 = vrot.slane %v221, %v234
    %v236 = vcombine.low %v203, %v219
    %v237 = vcombine.high %v203, %v219
    %v239 = vunpack.c.l.s4 1934713408
    %v240 = vunpack.c.0.s8 %v239
    %v241 = vlaneseq
    %v242 = vshrl.u32 %v241, 7
    %v243 = vsub.s32 %v240, %v242
    %v244 = vrot.slane %v236, %v243
    %v246 = vunpack.c.l.s4 1934713408
    %v247 = vunpack.c.0.s8 %v246
    %v248 = vlaneseq
    %v249 = vshrl.u32 %v248, 7
    %v250 = vsub.s32 %v247, %v249
    %v251 = vrot.slane %v237, %v250
    %v252 = vcombine.high %v228, 0.0
    %v253 = vcombine.high %v235, 0.0
    %v254 = vcombine.high %v244, 0.0
    %v255 = vcombine.high %v251, 0.0
    %v256 = vcombine.low %v165, %v179
    %v257 = vcombine.high %v165, %v179
    %v259 = vunpack.c.l.s4 1983009808
    %v260 = vunpack.c.0.s8 %v259
    %v261 = vlaneseq
    %v262 = vshrl.u32 %v261, 7
    %v263 = vsub.s32 %v260, %v262
    %v264 = vrot.slane %v256, %v263
    %v266 = vunpack.c.l.s4 1983009808
    %v267 = vunpack.c.0.s8 %v266
    %v268 = vlaneseq
    %v269 = vshrl.u32 %v268, 7
    %v270 = vsub.s32 %v267, %v269
    %v271 = vrot.slane %v257, %v270
    %v272 = vcombine.low %v173, %v185
    %v273 = vcombine.high %v173, %v185
    %v275 = vunpack.c.l.s4 1983009808
    %v276 = vunpack.c.0.s8 %v275
    %v277 = vlaneseq
    %v278 = vshrl.u32 %v277, 7
    %v279 = vsub.s32 %v276, %v278
    %v280 = vrot.slane %v272, %v279
    %v282 = vunpack.c.l.s4 1983009808
    %v283 = vunpack.c.0.s8 %v282
    %v284 = vlaneseq
    %v285 = vshrl.u32 %v284, 7
    %v286 = vsub.s32 %v283, %v285
    %v287 = vrot.slane %v273, %v286
    %v288 = vcombine.low %v264, %v280
    %v289 = vcombine.high %v264, %v280
    %v291 = vunpack.c.l.s4 1934713408
    %v292 = vunpack.c.0.s8 %v291
    %v293 = vlaneseq
    %v294 = vshrl.u32 %v293, 7
    %v295 = vsub.s32 %v292, %v294
    %v296 = vrot.slane %v288, %v295
    %v298 = vunpack.c.l.s4 1934713408
    %v299 = vunpack.c.0.s8 %v298
    %v300 = vlaneseq
    %v301 = vshrl.u32 %v300, 7
    %v302 = vsub.s32 %v299, %v301
    %v303 = vrot.slane %v289, %v302
    %v304 = vcombine.low %v271, %v287
    %v305 = vcombine.high %v271, %v287
    %v307 = vunpack.c.l.s4 1934713408
    %v308 = vunpack.c.0.s8 %v307
    %v309 = vlaneseq
    %v310 = vshrl.u32 %v309, 7
    %v311 = vsub.s32 %v308, %v310
    %v312 = vrot.slane %v304, %v311
    %v314 = vunpack.c.l.s4 1934713408
    %v315 = vunpack.c.0.s8 %v314
    %v316 = vlaneseq
    %v317 = vshrl.u32 %v316, 7
    %v318 = vsub.s32 %v315, %v317
    %v319 = vrot.slane %v305, %v318
    %v320 = vcombine.high %v296, 0.0
    %v321 = vcombine.high %v303, 0.0
    %v322 = vcombine.high %v312, 0.0
    %v323 = vcombine.high %v319, 0.0
    %v324 = vcombine.low %v228, %v235
    %v326 = vunpack.c.l.s4 1983009808
    %v327 = vunpack.c.0.s8 %v326
    %v328 = vlaneseq
    %v329 = vshrl.u32 %v328, 7
    %v330 = vsub.s32 %v327, %v329
    %v331 = vrot.slane %v324, %v330
    %v332 = vcombine.low %v252, %v253
    %v334 = vunpack.c.l.s4 1983009808
    %v335 = vunpack.c.0.s8 %v334
    %v336 = vlaneseq
    %v337 = vshrl.u32 %v336, 7
    %v338 = vsub.s32 %v335, %v337
    %v339 = vrot.slane %v332, %v338
    %v340 = vcombine.low %v244, %v251
    %v342 = vunpack.c.l.s4 1983009808
    %v343 = vunpack.c.0.s8 %v342
    %v344 = vlaneseq
    %v345 = vshrl.u32 %v344, 7
    %v346 = vsub.s32 %v343, %v345
    %v347 = vrot.slane %v340, %v346
    %v348 = vcombine.low %v254, %v255
    %v350 = vunpack.c.l.s4 1983009808
    %v351 = vunpack.c.0.s8 %v350
    %v352 = vlaneseq
    %v353 = vshrl.u32 %v352, 7
    %v354 = vsub.s32 %v351, %v353
    %v355 = vrot.slane %v348, %v354
    %v356 = vcombine.low %v331, %v339
    %v357 = vcombine.high %v331, %v339
    %v359 = vunpack.c.l.s4 1934713408
    %v360 = vunpack.c.0.s8 %v359
    %v361 = vlaneseq
    %v362 = vshrl.u32 %v361, 7
    %v363 = vsub.s32 %v360, %v362
    %v364 = vrot.slane %v356, %v363
    %v366 = vunpack.c.l.s4 1934713408
    %v367 = vunpack.c.0.s8 %v366
    %v368 = vlaneseq
    %v369 = vshrl.u32 %v368, 7
    %v370 = vsub.s32 %v367, %v369
    %v371 = vrot.slane %v357, %v370
    %v372 = vcombine.low %v347, %v355
    %v373 = vcombine.high %v347, %v355
    %v375 = vunpack.c.l.s4 1934713408
    %v376 = vunpack.c.0.s8 %v375
    %v377 = vlaneseq
    %v378 = vshrl.u32 %v377, 7
    %v379 = vsub.s32 %v376, %v378
    %v380 = vrot.slane %v372, %v379
    %v382 = vunpack.c.l.s4 1934713408
    %v383 = vunpack.c.0.s8 %v382
    %v384 = vlaneseq
    %v385 = vshrl.u32 %v384, 7
    %v386 = vsub.s32 %v383, %v385
    %v387 = vrot.slane %v373, %v386
    %v388 = vcombine.low %v364, %v380
    %v389 = vcombine.high %v364, %v380
    %v390 = vcombine.low %v371, %v387
    %v391 = vcombine.high %v371, %v387
    %v392 = vcombine.low %v296, %v303
    %v394 = vunpack.c.l.s4 1983009808
    %v395 = vunpack.c.0.s8 %v394
    %v396 = vlaneseq
    %v397 = vshrl.u32 %v396, 7
    %v398 = vsub.s32 %v395, %v397
    %v399 = vrot.slane %v392, %v398
    %v400 = vcombine.low %v320, %v321
    %v402 = vunpack.c.l.s4 1983009808
    %v403 = vunpack.c.0.s8 %v402
    %v404 = vlaneseq
    %v405 = vshrl.u32 %v404, 7
    %v406 = vsub.s32 %v403, %v405
    %v407 = vrot.slane %v400, %v406
    %v408 = vcombine.low %v312, %v319
    %v410 = vunpack.c.l.s4 1983009808
    %v411 = vunpack.c.0.s8 %v410
    %v412 = vlaneseq
    %v413 = vshrl.u32 %v412, 7
    %v414 = vsub.s32 %v411, %v413
    %v415 = vrot.slane %v408, %v414
    %v416 = vcombine.low %v322, %v323
    %v418 = vunpack.c.l.s4 1983009808
    %v419 = vunpack.c.0.s8 %v418
    %v420 = vlaneseq
    %v421 = vshrl.u32 %v420, 7
    %v422 = vsub.s32 %v419, %v421
    %v423 = vrot.slane %v416, %v422
    %v424 = vcombine.low %v399, %v407
    %v425 = vcombine.high %v399, %v407
    %v427 = vunpack.c.l.s4 1934713408
    %v428 = vunpack.c.0.s8 %v427
    %v429 = vlaneseq
    %v430 = vshrl.u32 %v429, 7
    %v431 = vsub.s32 %v428, %v430
    %v432 = vrot.slane %v424, %v431
    %v434 = vunpack.c.l.s4 1934713408
    %v435 = vunpack.c.0.s8 %v434
    %v436 = vlaneseq
    %v437 = vshrl.u32 %v436, 7
    %v438 = vsub.s32 %v435, %v437
    %v439 = vrot.slane %v425, %v438
    %v440 = vcombine.low %v415, %v423
    %v441 = vcombine.high %v415, %v423
    %v443 = vunpack.c.l.s4 1934713408
    %v444 = vunpack.c.0.s8 %v443
    %v445 = vlaneseq
    %v446 = vshrl.u32 %v445, 7
    %v447 = vsub.s32 %v444, %v446
    %v448 = vrot.slane %v440, %v447
    %v450 = vunpack.c.l.s4 1934713408
    %v451 = vunpack.c.0.s8 %v450
    %v452 = vlaneseq
    %v453 = vshrl.u32 %v452, 7
    %v454 = vsub.s32 %v451, %v453
    %v455 = vrot.slane %v441, %v454
    %v456 = vcombine.low %v432, %v448
    %v457 = vcombine.high %v432, %v448
    %v458 = vcombine.low %v439, %v455
    %v459 = vcombine.high %v439, %v455
    %460 = vrot.lane.b32.xlu0 %v160, 96
    %v461 = vpop.permute.xlu0 %460
    %462 = vrot.lane.b32.xlu0 %v165, 96
    %v463 = vpop.permute.xlu0 %462
    %464 = vrot.lane.b32.xlu0 %v171, 96
    %v465 = vpop.permute.xlu0 %464
    %466 = vrot.lane.b32.xlu0 %v173, 96
    %v467 = vpop.permute.xlu0 %466
    %468 = vrot.lane.b32.xlu0 %v177, 96
    %v469 = vpop.permute.xlu0 %468
    %470 = vrot.lane.b32.xlu0 %v179, 96
    %v471 = vpop.permute.xlu0 %470
    %472 = vrot.lane.b32.xlu0 %v183, 96
    %v473 = vpop.permute.xlu0 %472
    %474 = vrot.lane.b32.xlu0 %v185, 96
    %v475 = vpop.permute.xlu0 %474
    %v484 = vcombine.low %v461, %v469
    %v485 = vcombine.high %v461, %v469
    %v487 = vunpack.c.l.s4 1983009808
    %v488 = vunpack.c.0.s8 %v487
    %v489 = vlaneseq
    %v490 = vshrl.u32 %v489, 7
    %v491 = vsub.s32 %v488, %v490
    %v492 = vrot.slane %v484, %v491
    %v494 = vunpack.c.l.s4 1983009808
    %v495 = vunpack.c.0.s8 %v494
    %v496 = vlaneseq
    %v497 = vshrl.u32 %v496, 7
    %v498 = vsub.s32 %v495, %v497
    %v499 = vrot.slane %v485, %v498
    %v500 = vcombine.low %v465, %v473
    %v501 = vcombine.high %v465, %v473
    %v503 = vunpack.c.l.s4 1983009808
    %v504 = vunpack.c.0.s8 %v503
    %v505 = vlaneseq
    %v506 = vshrl.u32 %v505, 7
    %v507 = vsub.s32 %v504, %v506
    %v508 = vrot.slane %v500, %v507
    %v510 = vunpack.c.l.s4 1983009808
    %v511 = vunpack.c.0.s8 %v510
    %v512 = vlaneseq
    %v513 = vshrl.u32 %v512, 7
    %v514 = vsub.s32 %v511, %v513
    %v515 = vrot.slane %v501, %v514
    %v516 = vcombine.low %v492, %v508
    %v517 = vcombine.high %v492, %v508
    %v519 = vunpack.c.l.s4 1934713408
    %v520 = vunpack.c.0.s8 %v519
    %v521 = vlaneseq
    %v522 = vshrl.u32 %v521, 7
    %v523 = vsub.s32 %v520, %v522
    %v524 = vrot.slane %v516, %v523
    %v526 = vunpack.c.l.s4 1934713408
    %v527 = vunpack.c.0.s8 %v526
    %v528 = vlaneseq
    %v529 = vshrl.u32 %v528, 7
    %v530 = vsub.s32 %v527, %v529
    %v531 = vrot.slane %v517, %v530
    %v532 = vcombine.low %v499, %v515
    %v533 = vcombine.high %v499, %v515
    %v535 = vunpack.c.l.s4 1934713408
    %v536 = vunpack.c.0.s8 %v535
    %v537 = vlaneseq
    %v538 = vshrl.u32 %v537, 7
    %v539 = vsub.s32 %v536, %v538
    %v540 = vrot.slane %v532, %v539
    %v542 = vunpack.c.l.s4 1934713408
    %v543 = vunpack.c.0.s8 %v542
    %v544 = vlaneseq
    %v545 = vshrl.u32 %v544, 7
    %v546 = vsub.s32 %v543, %v545
    %v547 = vrot.slane %v533, %v546
    %v548 = vcombine.high %v524, 0.0
    %v549 = vcombine.high %v531, 0.0
    %v550 = vcombine.high %v540, 0.0
    %v551 = vcombine.high %v547, 0.0
    %v552 = vcombine.low %v463, %v471
    %v553 = vcombine.high %v463, %v471
    %v555 = vunpack.c.l.s4 1983009808
    %v556 = vunpack.c.0.s8 %v555
    %v557 = vlaneseq
    %v558 = vshrl.u32 %v557, 7
    %v559 = vsub.s32 %v556, %v558
    %v560 = vrot.slane %v552, %v559
    %v562 = vunpack.c.l.s4 1983009808
    %v563 = vunpack.c.0.s8 %v562
    %v564 = vlaneseq
    %v565 = vshrl.u32 %v564, 7
    %v566 = vsub.s32 %v563, %v565
    %v567 = vrot.slane %v553, %v566
    %v568 = vcombine.low %v467, %v475
    %v569 = vcombine.high %v467, %v475
    %v571 = vunpack.c.l.s4 1983009808
    %v572 = vunpack.c.0.s8 %v571
    %v573 = vlaneseq
    %v574 = vshrl.u32 %v573, 7
    %v575 = vsub.s32 %v572, %v574
    %v576 = vrot.slane %v568, %v575
    %v578 = vunpack.c.l.s4 1983009808
    %v579 = vunpack.c.0.s8 %v578
    %v580 = vlaneseq
    %v581 = vshrl.u32 %v580, 7
    %v582 = vsub.s32 %v579, %v581
    %v583 = vrot.slane %v569, %v582
    %v584 = vcombine.low %v560, %v576
    %v585 = vcombine.high %v560, %v576
    %v587 = vunpack.c.l.s4 1934713408
    %v588 = vunpack.c.0.s8 %v587
    %v589 = vlaneseq
    %v590 = vshrl.u32 %v589, 7
    %v591 = vsub.s32 %v588, %v590
    %v592 = vrot.slane %v584, %v591
    %v594 = vunpack.c.l.s4 1934713408
    %v595 = vunpack.c.0.s8 %v594
    %v596 = vlaneseq
    %v597 = vshrl.u32 %v596, 7
    %v598 = vsub.s32 %v595, %v597
    %v599 = vrot.slane %v585, %v598
    %v600 = vcombine.low %v567, %v583
    %v601 = vcombine.high %v567, %v583
    %v603 = vunpack.c.l.s4 1934713408
    %v604 = vunpack.c.0.s8 %v603
    %v605 = vlaneseq
    %v606 = vshrl.u32 %v605, 7
    %v607 = vsub.s32 %v604, %v606
    %v608 = vrot.slane %v600, %v607
    %v610 = vunpack.c.l.s4 1934713408
    %v611 = vunpack.c.0.s8 %v610
    %v612 = vlaneseq
    %v613 = vshrl.u32 %v612, 7
    %v614 = vsub.s32 %v611, %v613
    %v615 = vrot.slane %v601, %v614
    %v616 = vcombine.high %v592, 0.0
    %v617 = vcombine.high %v599, 0.0
    %v618 = vcombine.high %v608, 0.0
    %v619 = vcombine.high %v615, 0.0
    %v620 = vcombine.low %v524, %v531
    %v622 = vunpack.c.l.s4 1983009808
    %v623 = vunpack.c.0.s8 %v622
    %v624 = vlaneseq
    %v625 = vshrl.u32 %v624, 7
    %v626 = vsub.s32 %v623, %v625
    %v627 = vrot.slane %v620, %v626
    %v628 = vcombine.low %v548, %v549
    %v630 = vunpack.c.l.s4 1983009808
    %v631 = vunpack.c.0.s8 %v630
    %v632 = vlaneseq
    %v633 = vshrl.u32 %v632, 7
    %v634 = vsub.s32 %v631, %v633
    %v635 = vrot.slane %v628, %v634
    %v636 = vcombine.low %v540, %v547
    %v638 = vunpack.c.l.s4 1983009808
    %v639 = vunpack.c.0.s8 %v638
    %v640 = vlaneseq
    %v641 = vshrl.u32 %v640, 7
    %v642 = vsub.s32 %v639, %v641
    %v643 = vrot.slane %v636, %v642
    %v644 = vcombine.low %v550, %v551
    %v646 = vunpack.c.l.s4 1983009808
    %v647 = vunpack.c.0.s8 %v646
    %v648 = vlaneseq
    %v649 = vshrl.u32 %v648, 7
    %v650 = vsub.s32 %v647, %v649
    %v651 = vrot.slane %v644, %v650
    %v652 = vcombine.low %v627, %v635
    %v653 = vcombine.high %v627, %v635
    %v655 = vunpack.c.l.s4 1934713408
    %v656 = vunpack.c.0.s8 %v655
    %v657 = vlaneseq
    %v658 = vshrl.u32 %v657, 7
    %v659 = vsub.s32 %v656, %v658
    %v660 = vrot.slane %v652, %v659
    %v662 = vunpack.c.l.s4 1934713408
    %v663 = vunpack.c.0.s8 %v662
    %v664 = vlaneseq
    %v665 = vshrl.u32 %v664, 7
    %v666 = vsub.s32 %v663, %v665
    %v667 = vrot.slane %v653, %v666
    %v668 = vcombine.low %v643, %v651
    %v669 = vcombine.high %v643, %v651
    %v671 = vunpack.c.l.s4 1934713408
    %v672 = vunpack.c.0.s8 %v671
    %v673 = vlaneseq
    %v674 = vshrl.u32 %v673, 7
    %v675 = vsub.s32 %v672, %v674
    %v676 = vrot.slane %v668, %v675
    %v678 = vunpack.c.l.s4 1934713408
    %v679 = vunpack.c.0.s8 %v678
    %v680 = vlaneseq
    %v681 = vshrl.u32 %v680, 7
    %v682 = vsub.s32 %v679, %v681
    %v683 = vrot.slane %v669, %v682
    %v684 = vcombine.low %v660, %v676
    %v685 = vcombine.high %v660, %v676
    %v686 = vcombine.low %v667, %v683
    %v687 = vcombine.high %v667, %v683
    %v688 = vcombine.low %v592, %v599
    %v690 = vunpack.c.l.s4 1983009808
    %v691 = vunpack.c.0.s8 %v690
    %v692 = vlaneseq
    %v693 = vshrl.u32 %v692, 7
    %v694 = vsub.s32 %v691, %v693
    %v695 = vrot.slane %v688, %v694
    %v696 = vcombine.low %v616, %v617
    %v698 = vunpack.c.l.s4 1983009808
    %v699 = vunpack.c.0.s8 %v698
    %v700 = vlaneseq
    %v701 = vshrl.u32 %v700, 7
    %v702 = vsub.s32 %v699, %v701
    %v703 = vrot.slane %v696, %v702
    %v704 = vcombine.low %v608, %v615
    %v706 = vunpack.c.l.s4 1983009808
    %v707 = vunpack.c.0.s8 %v706
    %v708 = vlaneseq
    %v709 = vshrl.u32 %v708, 7
    %v710 = vsub.s32 %v707, %v709
    %v711 = vrot.slane %v704, %v710
    %v712 = vcombine.low %v618, %v619
    %v714 = vunpack.c.l.s4 1983009808
    %v715 = vunpack.c.0.s8 %v714
    %v716 = vlaneseq
    %v717 = vshrl.u32 %v716, 7
    %v718 = vsub.s32 %v715, %v717
    %v719 = vrot.slane %v712, %v718
    %v720 = vcombine.low %v695, %v703
    %v721 = vcombine.high %v695, %v703
    %v723 = vunpack.c.l.s4 1934713408
    %v724 = vunpack.c.0.s8 %v723
    %v725 = vlaneseq
    %v726 = vshrl.u32 %v725, 7
    %v727 = vsub.s32 %v724, %v726
    %v728 = vrot.slane %v720, %v727
    %v730 = vunpack.c.l.s4 1934713408
    %v731 = vunpack.c.0.s8 %v730
    %v732 = vlaneseq
    %v733 = vshrl.u32 %v732, 7
    %v734 = vsub.s32 %v731, %v733
    %v735 = vrot.slane %v721, %v734
    %v736 = vcombine.low %v711, %v719
    %v737 = vcombine.high %v711, %v719
    %v739 = vunpack.c.l.s4 1934713408
    %v740 = vunpack.c.0.s8 %v739
    %v741 = vlaneseq
    %v742 = vshrl.u32 %v741, 7
    %v743 = vsub.s32 %v740, %v742
    %v744 = vrot.slane %v736, %v743
    %v746 = vunpack.c.l.s4 1934713408
    %v747 = vunpack.c.0.s8 %v746
    %v748 = vlaneseq
    %v749 = vshrl.u32 %v748, 7
    %v750 = vsub.s32 %v747, %v749
    %v751 = vrot.slane %v737, %v750
    %v752 = vcombine.low %v728, %v744
    %v753 = vcombine.high %v728, %v744
    %v754 = vcombine.low %v735, %v751
    %v755 = vcombine.high %v735, %v751
    %756 = vrot.lane.b32.xlu0 %v160, 64
    %v757 = vpop.permute.xlu0 %756
    %758 = vrot.lane.b32.xlu0 %v165, 64
    %v759 = vpop.permute.xlu0 %758
    %760 = vrot.lane.b32.xlu0 %v171, 64
    %v761 = vpop.permute.xlu0 %760
    %762 = vrot.lane.b32.xlu0 %v173, 64
    %v763 = vpop.permute.xlu0 %762
    %764 = vrot.lane.b32.xlu0 %v177, 64
    %v765 = vpop.permute.xlu0 %764
    %766 = vrot.lane.b32.xlu0 %v179, 64
    %v767 = vpop.permute.xlu0 %766
    %768 = vrot.lane.b32.xlu0 %v183, 64
    %v769 = vpop.permute.xlu0 %768
    %770 = vrot.lane.b32.xlu0 %v185, 64
    %v771 = vpop.permute.xlu0 %770
    %v780 = vcombine.low %v757, %v765
    %v781 = vcombine.high %v757, %v765
    %v783 = vunpack.c.l.s4 1983009808
    %v784 = vunpack.c.0.s8 %v783
    %v785 = vlaneseq
    %v786 = vshrl.u32 %v785, 7
    %v787 = vsub.s32 %v784, %v786
    %v788 = vrot.slane %v780, %v787
    %v790 = vunpack.c.l.s4 1983009808
    %v791 = vunpack.c.0.s8 %v790
    %v792 = vlaneseq
    %v793 = vshrl.u32 %v792, 7
    %v794 = vsub.s32 %v791, %v793
    %v795 = vrot.slane %v781, %v794
    %v796 = vcombine.low %v761, %v769
    %v797 = vcombine.high %v761, %v769
    %v799 = vunpack.c.l.s4 1983009808
    %v800 = vunpack.c.0.s8 %v799
    %v801 = vlaneseq
    %v802 = vshrl.u32 %v801, 7
    %v803 = vsub.s32 %v800, %v802
    %v804 = vrot.slane %v796, %v803
    %v806 = vunpack.c.l.s4 1983009808
    %v807 = vunpack.c.0.s8 %v806
    %v808 = vlaneseq
    %v809 = vshrl.u32 %v808, 7
    %v810 = vsub.s32 %v807, %v809
    %v811 = vrot.slane %v797, %v810
    %v812 = vcombine.low %v788, %v804
    %v813 = vcombine.high %v788, %v804
    %v815 = vunpack.c.l.s4 1934713408
    %v816 = vunpack.c.0.s8 %v815
    %v817 = vlaneseq
    %v818 = vshrl.u32 %v817, 7
    %v819 = vsub.s32 %v816, %v818
    %v820 = vrot.slane %v812, %v819
    %v822 = vunpack.c.l.s4 1934713408
    %v823 = vunpack.c.0.s8 %v822
    %v824 = vlaneseq
    %v825 = vshrl.u32 %v824, 7
    %v826 = vsub.s32 %v823, %v825
    %v827 = vrot.slane %v813, %v826
    %v828 = vcombine.low %v795, %v811
    %v829 = vcombine.high %v795, %v811
    %v831 = vunpack.c.l.s4 1934713408
    %v832 = vunpack.c.0.s8 %v831
    %v833 = vlaneseq
    %v834 = vshrl.u32 %v833, 7
    %v835 = vsub.s32 %v832, %v834
    %v836 = vrot.slane %v828, %v835
    %v838 = vunpack.c.l.s4 1934713408
    %v839 = vunpack.c.0.s8 %v838
    %v840 = vlaneseq
    %v841 = vshrl.u32 %v840, 7
    %v842 = vsub.s32 %v839, %v841
    %v843 = vrot.slane %v829, %v842
    %v844 = vcombine.high %v820, 0.0
    %v845 = vcombine.high %v827, 0.0
    %v846 = vcombine.high %v836, 0.0
    %v847 = vcombine.high %v843, 0.0
    %v848 = vcombine.low %v759, %v767
    %v849 = vcombine.high %v759, %v767
    %v851 = vunpack.c.l.s4 1983009808
    %v852 = vunpack.c.0.s8 %v851
    %v853 = vlaneseq
    %v854 = vshrl.u32 %v853, 7
    %v855 = vsub.s32 %v852, %v854
    %v856 = vrot.slane %v848, %v855
    %v858 = vunpack.c.l.s4 1983009808
    %v859 = vunpack.c.0.s8 %v858
    %v860 = vlaneseq
    %v861 = vshrl.u32 %v860, 7
    %v862 = vsub.s32 %v859, %v861
    %v863 = vrot.slane %v849, %v862
    %v864 = vcombine.low %v763, %v771
    %v865 = vcombine.high %v763, %v771
    %v867 = vunpack.c.l.s4 1983009808
    %v868 = vunpack.c.0.s8 %v867
    %v869 = vlaneseq
    %v870 = vshrl.u32 %v869, 7
    %v871 = vsub.s32 %v868, %v870
    %v872 = vrot.slane %v864, %v871
    %v874 = vunpack.c.l.s4 1983009808
    %v875 = vunpack.c.0.s8 %v874
    %v876 = vlaneseq
    %v877 = vshrl.u32 %v876, 7
    %v878 = vsub.s32 %v875, %v877
    %v879 = vrot.slane %v865, %v878
    %v880 = vcombine.low %v856, %v872
    %v881 = vcombine.high %v856, %v872
    %v883 = vunpack.c.l.s4 1934713408
    %v884 = vunpack.c.0.s8 %v883
    %v885 = vlaneseq
    %v886 = vshrl.u32 %v885, 7
    %v887 = vsub.s32 %v884, %v886
    %v888 = vrot.slane %v880, %v887
    %v890 = vunpack.c.l.s4 1934713408
    %v891 = vunpack.c.0.s8 %v890
    %v892 = vlaneseq
    %v893 = vshrl.u32 %v892, 7
    %v894 = vsub.s32 %v891, %v893
    %v895 = vrot.slane %v881, %v894
    %v896 = vcombine.low %v863, %v879
    %v897 = vcombine.high %v863, %v879
    %v899 = vunpack.c.l.s4 1934713408
    %v900 = vunpack.c.0.s8 %v899
    %v901 = vlaneseq
    %v902 = vshrl.u32 %v901, 7
    %v903 = vsub.s32 %v900, %v902
    %v904 = vrot.slane %v896, %v903
    %v906 = vunpack.c.l.s4 1934713408
    %v907 = vunpack.c.0.s8 %v906
    %v908 = vlaneseq
    %v909 = vshrl.u32 %v908, 7
    %v910 = vsub.s32 %v907, %v909
    %v911 = vrot.slane %v897, %v910
    %v912 = vcombine.high %v888, 0.0
    %v913 = vcombine.high %v895, 0.0
    %v914 = vcombine.high %v904, 0.0
    %v915 = vcombine.high %v911, 0.0
    %v916 = vcombine.low %v820, %v827
    %v918 = vunpack.c.l.s4 1983009808
    %v919 = vunpack.c.0.s8 %v918
    %v920 = vlaneseq
    %v921 = vshrl.u32 %v920, 7
    %v922 = vsub.s32 %v919, %v921
    %v923 = vrot.slane %v916, %v922
    %v924 = vcombine.low %v844, %v845
    %v926 = vunpack.c.l.s4 1983009808
    %v927 = vunpack.c.0.s8 %v926
    %v928 = vlaneseq
    %v929 = vshrl.u32 %v928, 7
    %v930 = vsub.s32 %v927, %v929
    %v931 = vrot.slane %v924, %v930
    %v932 = vcombine.low %v836, %v843
    %v934 = vunpack.c.l.s4 1983009808
    %v935 = vunpack.c.0.s8 %v934
    %v936 = vlaneseq
    %v937 = vshrl.u32 %v936, 7
    %v938 = vsub.s32 %v935, %v937
    %v939 = vrot.slane %v932, %v938
    %v940 = vcombine.low %v846, %v847
    %v942 = vunpack.c.l.s4 1983009808
    %v943 = vunpack.c.0.s8 %v942
    %v944 = vlaneseq
    %v945 = vshrl.u32 %v944, 7
    %v946 = vsub.s32 %v943, %v945
    %v947 = vrot.slane %v940, %v946
    %v948 = vcombine.low %v923, %v931
    %v949 = vcombine.high %v923, %v931
    %v951 = vunpack.c.l.s4 1934713408
    %v952 = vunpack.c.0.s8 %v951
    %v953 = vlaneseq
    %v954 = vshrl.u32 %v953, 7
    %v955 = vsub.s32 %v952, %v954
    %v956 = vrot.slane %v948, %v955
    %v958 = vunpack.c.l.s4 1934713408
    %v959 = vunpack.c.0.s8 %v958
    %v960 = vlaneseq
    %v961 = vshrl.u32 %v960, 7
    %v962 = vsub.s32 %v959, %v961
    %v963 = vrot.slane %v949, %v962
    %v964 = vcombine.low %v939, %v947
    %v965 = vcombine.high %v939, %v947
    %v967 = vunpack.c.l.s4 1934713408
    %v968 = vunpack.c.0.s8 %v967
    %v969 = vlaneseq
    %v970 = vshrl.u32 %v969, 7
    %v971 = vsub.s32 %v968, %v970
    %v972 = vrot.slane %v964, %v971
    %v974 = vunpack.c.l.s4 1934713408
    %v975 = vunpack.c.0.s8 %v974
    %v976 = vlaneseq
    %v977 = vshrl.u32 %v976, 7
    %v978 = vsub.s32 %v975, %v977
    %v979 = vrot.slane %v965, %v978
    %v980 = vcombine.low %v956, %v972
    %v981 = vcombine.high %v956, %v972
    %v982 = vcombine.low %v963, %v979
    %v983 = vcombine.high %v963, %v979
    %v984 = vcombine.low %v888, %v895
    %v986 = vunpack.c.l.s4 1983009808
    %v987 = vunpack.c.0.s8 %v986
    %v988 = vlaneseq
    %v989 = vshrl.u32 %v988, 7
    %v990 = vsub.s32 %v987, %v989
    %v991 = vrot.slane %v984, %v990
    %v992 = vcombine.low %v912, %v913
    %v994 = vunpack.c.l.s4 1983009808
    %v995 = vunpack.c.0.s8 %v994
    %v996 = vlaneseq
    %v997 = vshrl.u32 %v996, 7
    %v998 = vsub.s32 %v995, %v997
    %v999 = vrot.slane %v992, %v998
    %v1000 = vcombine.low %v904, %v911
    %v1002 = vunpack.c.l.s4 1983009808
    %v1003 = vunpack.c.0.s8 %v1002
    %v1004 = vlaneseq
    %v1005 = vshrl.u32 %v1004, 7
    %v1006 = vsub.s32 %v1003, %v1005
    %v1007 = vrot.slane %v1000, %v1006
    %v1008 = vcombine.low %v914, %v915
    %v1010 = vunpack.c.l.s4 1983009808
    %v1011 = vunpack.c.0.s8 %v1010
    %v1012 = vlaneseq
    %v1013 = vshrl.u32 %v1012, 7
    %v1014 = vsub.s32 %v1011, %v1013
    %v1015 = vrot.slane %v1008, %v1014
    %v1016 = vcombine.low %v991, %v999
    %v1017 = vcombine.high %v991, %v999
    %v1019 = vunpack.c.l.s4 1934713408
    %v1020 = vunpack.c.0.s8 %v1019
    %v1021 = vlaneseq
    %v1022 = vshrl.u32 %v1021, 7
    %v1023 = vsub.s32 %v1020, %v1022
    %v1024 = vrot.slane %v1016, %v1023
    %v1026 = vunpack.c.l.s4 1934713408
    %v1027 = vunpack.c.0.s8 %v1026
    %v1028 = vlaneseq
    %v1029 = vshrl.u32 %v1028, 7
    %v1030 = vsub.s32 %v1027, %v1029
    %v1031 = vrot.slane %v1017, %v1030
    %v1032 = vcombine.low %v1007, %v1015
    %v1033 = vcombine.high %v1007, %v1015
    %v1035 = vunpack.c.l.s4 1934713408
    %v1036 = vunpack.c.0.s8 %v1035
    %v1037 = vlaneseq
    %v1038 = vshrl.u32 %v1037, 7
    %v1039 = vsub.s32 %v1036, %v1038
    %v1040 = vrot.slane %v1032, %v1039
    %v1042 = vunpack.c.l.s4 1934713408
    %v1043 = vunpack.c.0.s8 %v1042
    %v1044 = vlaneseq
    %v1045 = vshrl.u32 %v1044, 7
    %v1046 = vsub.s32 %v1043, %v1045
    %v1047 = vrot.slane %v1033, %v1046
    %v1048 = vcombine.low %v1024, %v1040
    %v1049 = vcombine.high %v1024, %v1040
    %v1050 = vcombine.low %v1031, %v1047
    %v1051 = vcombine.high %v1031, %v1047
    %v1054 = vunpack.c.l.s4 1966171168
    %v1055 = vunpack.c.0.s8 %v1054
    %v1056 = vlaneseq
    %v1057 = vshrl.u32 %v1056, 7
    %v1058 = vsub.s32 %v1055, %v1057
    %v1059 = vrot.slane %v59, %v1058
    %v1060 = vcombine.high %v1059, %v1059
    %v1062 = vunpack.c.l.s4 1966171168
    %v1063 = vunpack.c.0.s8 %v1062
    %v1064 = vlaneseq
    %v1065 = vshrl.u32 %v1064, 7
    %v1066 = vsub.s32 %v1063, %v1065
    %v1067 = vrot.slane %v1059, %v1066
    %v1069 = vunpack.c.l.s4 1966171168
    %v1070 = vunpack.c.0.s8 %v1069
    %v1071 = vlaneseq
    %v1072 = vshrl.u32 %v1071, 7
    %v1073 = vsub.s32 %v1070, %v1072
    %v1074 = vrot.slane %v1060, %v1073
    %v1075 = vlaneseq
    %v1076 = vshrl.u32 %v1075, 7
    %v1077 = vsub.s32 0, %v1076
    %v1078 = vrot.slane %v1067, %v1077
    %v1079 = vlaneseq
    %v1080 = vshrl.u32 %v1079, 7
    %v1081 = vsub.s32 0, %v1080
    %v1082 = vrot.slane %v1074, %v1081
    %vm1085 = vcmask 64512
    %v1087 = vsel %vm1085, %v388, 0
    %v1090 = vsel %vm1085, %v684, 0
    %1092 = vmatprep.subr.mxu0 0.0
    %1093 = vmatpush1.xpose.msra.mxu0 %v1090
    %1094 = vmatprep.subr.mxu0 0.0
    %1095 = vmatpush1.xpose.msra.mxu0 0.0
    %1096 = vmatprep.subr.mxu0 0.0
    %1097 = vmatpush1.xpose.msra.mxu0 0.0
    %1098 = vmatprep.subr.mxu0 0.0
    %1099 = vmatpush1.xpose.msra.mxu0 0.0
    %1100 = vmatprep.subr.mxu0 0.0
    %1101 = vmatpush1.xpose.msra.mxu0 0.0
    %1102 = vmatprep.subr.mxu0 0.0
    %1103 = vmatpush1.xpose.msra.mxu0 0.0
    %1104 = vmatprep.subr.mxu0 0.0
    %1105 = vmatpush1.xpose.msra.mxu0 0.0
    %1106 = vmatprep.subr.mxu0 0.0
    %1107 = vmatpush1.xpose.msra.mxu0 0.0
    %1108 = vmatprep.subr.mxu0 0.0
    %1109 = vmatpush1.xpose.msra.mxu0 0.0
    %1110 = vmatprep.subr.mxu0 0.0
    %1111 = vmatpush1.xpose.msra.mxu0 0.0
    %1112 = vmatprep.subr.mxu0 0.0
    %1113 = vmatpush1.xpose.msra.mxu0 0.0
    %1114 = vmatprep.subr.mxu0 0.0
    %1115 = vmatpush1.xpose.msra.mxu0 0.0
    %1116 = vmatprep.subr.mxu0 0.0
    %1117 = vmatpush1.xpose.msra.mxu0 0.0
    %1118 = vmatprep.subr.mxu0 0.0
    %1119 = vmatpush1.xpose.msra.mxu0 0.0
    %1120 = vmatprep.subr.mxu0 0.0
    %1121 = vmatpush1.xpose.msra.mxu0 0.0
    %1122 = vmatprep.subr.mxu0 0.0
    %1123 = vmatpush1.xpose.msra.mxu0 0.0
    %1124 = vmatprep.subr.mxu0 0.0
    %1125 = vmatpush1.xpose.msra.mxu0 0.0
    %1126 = vmatprep.subr.mxu0 0.0
    %1127 = vmatpush1.xpose.msra.mxu0 0.0
    %1128 = vmatprep.subr.mxu0 0.0
    %1129 = vmatpush1.xpose.msra.mxu0 0.0
    %1130 = vmatprep.subr.mxu0 0.0
    %1131 = vmatpush1.xpose.msra.mxu0 0.0
    %1132 = vmatprep.subr.mxu0 0.0
    %1133 = vmatpush1.xpose.msra.mxu0 0.0
    %1134 = vmatprep.subr.mxu0 0.0
    %1135 = vmatpush1.xpose.msra.mxu0 0.0
    %1136 = vmatprep.subr.mxu0 0.0
    %1137 = vmatpush1.xpose.msra.mxu0 0.0
    %1138 = vmatprep.subr.mxu0 0.0
    %1139 = vmatpush1.xpose.msra.mxu0 0.0
    %1140 = vmatprep.subr.mxu0 0.0
    %1141 = vmatpush1.xpose.msra.mxu0 0.0
    %1142 = vmatprep.subr.mxu0 0.0
    %1143 = vmatpush1.xpose.msra.mxu0 0.0
    %1144 = vmatprep.subr.mxu0 0.0
    %1145 = vmatpush1.xpose.msra.mxu0 0.0
    %1146 = vmatprep.subr.mxu0 0.0
    %1147 = vmatpush1.xpose.msra.mxu0 0.0
    %1148 = vmatprep.subr.mxu0 0.0
    %1149 = vmatpush1.xpose.msra.mxu0 0.0
    %1150 = vmatprep.subr.mxu0 0.0
    %1151 = vmatpush1.xpose.msra.mxu0 0.0
    %1152 = vmatprep.subr.mxu0 0.0
    %1153 = vmatpush1.xpose.msra.mxu0 0.0
    %1154 = vmatprep.subr.mxu0 0.0
    %1155 = vmatpush1.xpose.msra.mxu0 0.0
    %1156 = vmatprep.mubr.f32.mxu0 0.0
    %1157 = vmatmul.mubr.f32.gmra.mrb[0].mxu0 %v1087
    %v1158 = vpop.f32.mrb[0].mxu0
    %v1159 = vadd.f32 %v1078, %v1158
    %v1160 = vpop.f32.mrb[0].mxu0
    %1161 = vdwg.mxu0
    %v1163 = vsel %vm1085, %v389, 0
    %v1166 = vsel %vm1085, %v685, 0
    %1168 = vmatprep.subr.mxu0 0.0
    %1169 = vmatpush1.xpose.msra.mxu0 %v1166
    %1170 = vmatprep.subr.mxu0 0.0
    %1171 = vmatpush1.xpose.msra.mxu0 0.0
    %1172 = vmatprep.subr.mxu0 0.0
    %1173 = vmatpush1.xpose.msra.mxu0 0.0
    %1174 = vmatprep.subr.mxu0 0.0
    %1175 = vmatpush1.xpose.msra.mxu0 0.0
    %1176 = vmatprep.subr.mxu0 0.0
    %1177 = vmatpush1.xpose.msra.mxu0 0.0
    %1178 = vmatprep.subr.mxu0 0.0
    %1179 = vmatpush1.xpose.msra.mxu0 0.0
    %1180 = vmatprep.subr.mxu0 0.0
    %1181 = vmatpush1.xpose.msra.mxu0 0.0
    %1182 = vmatprep.subr.mxu0 0.0
    %1183 = vmatpush1.xpose.msra.mxu0 0.0
    %1184 = vmatprep.subr.mxu0 0.0
    %1185 = vmatpush1.xpose.msra.mxu0 0.0
    %1186 = vmatprep.subr.mxu0 0.0
    %1187 = vmatpush1.xpose.msra.mxu0 0.0
    %1188 = vmatprep.subr.mxu0 0.0
    %1189 = vmatpush1.xpose.msra.mxu0 0.0
    %1190 = vmatprep.subr.mxu0 0.0
    %1191 = vmatpush1.xpose.msra.mxu0 0.0
    %1192 = vmatprep.subr.mxu0 0.0
    %1193 = vmatpush1.xpose.msra.mxu0 0.0
    %1194 = vmatprep.subr.mxu0 0.0
    %1195 = vmatpush1.xpose.msra.mxu0 0.0
    %1196 = vmatprep.subr.mxu0 0.0
    %1197 = vmatpush1.xpose.msra.mxu0 0.0
    %1198 = vmatprep.subr.mxu0 0.0
    %1199 = vmatpush1.xpose.msra.mxu0 0.0
    %1200 = vmatprep.subr.mxu0 0.0
    %1201 = vmatpush1.xpose.msra.mxu0 0.0
    %1202 = vmatprep.subr.mxu0 0.0
    %1203 = vmatpush1.xpose.msra.mxu0 0.0
    %1204 = vmatprep.subr.mxu0 0.0
    %1205 = vmatpush1.xpose.msra.mxu0 0.0
    %1206 = vmatprep.subr.mxu0 0.0
    %1207 = vmatpush1.xpose.msra.mxu0 0.0
    %1208 = vmatprep.subr.mxu0 0.0
    %1209 = vmatpush1.xpose.msra.mxu0 0.0
    %1210 = vmatprep.subr.mxu0 0.0
    %1211 = vmatpush1.xpose.msra.mxu0 0.0
    %1212 = vmatprep.subr.mxu0 0.0
    %1213 = vmatpush1.xpose.msra.mxu0 0.0
    %1214 = vmatprep.subr.mxu0 0.0
    %1215 = vmatpush1.xpose.msra.mxu0 0.0
    %1216 = vmatprep.subr.mxu0 0.0
    %1217 = vmatpush1.xpose.msra.mxu0 0.0
    %1218 = vmatprep.subr.mxu0 0.0
    %1219 = vmatpush1.xpose.msra.mxu0 0.0
    %1220 = vmatprep.subr.mxu0 0.0
    %1221 = vmatpush1.xpose.msra.mxu0 0.0
    %1222 = vmatprep.subr.mxu0 0.0
    %1223 = vmatpush1.xpose.msra.mxu0 0.0
    %1224 = vmatprep.subr.mxu0 0.0
    %1225 = vmatpush1.xpose.msra.mxu0 0.0
    %1226 = vmatprep.subr.mxu0 0.0
    %1227 = vmatpush1.xpose.msra.mxu0 0.0
    %1228 = vmatprep.subr.mxu0 0.0
    %1229 = vmatpush1.xpose.msra.mxu0 0.0
    %1230 = vmatprep.subr.mxu0 0.0
    %1231 = vmatpush1.xpose.msra.mxu0 0.0
    %1232 = vmatprep.mubr.f32.mxu0 0.0
    %1233 = vmatmul.mubr.f32.gmra.mrb[0].mxu0 %v1163
    %v1234 = vpop.f32.mrb[0].mxu0
    %v1235 = vadd.f32 %v1078, %v1234
    %v1236 = vpop.f32.mrb[0].mxu0
    %1237 = vdwg.mxu0
    %v1239 = vsel %vm1085, %v390, 0
    %v1242 = vsel %vm1085, %v686, 0
    %1244 = vmatprep.subr.mxu0 0.0
    %1245 = vmatpush1.xpose.msra.mxu0 %v1242
    %1246 = vmatprep.subr.mxu0 0.0
    %1247 = vmatpush1.xpose.msra.mxu0 0.0
    %1248 = vmatprep.subr.mxu0 0.0
    %1249 = vmatpush1.xpose.msra.mxu0 0.0
    %1250 = vmatprep.subr.mxu0 0.0
    %1251 = vmatpush1.xpose.msra.mxu0 0.0
    %1252 = vmatprep.subr.mxu0 0.0
    %1253 = vmatpush1.xpose.msra.mxu0 0.0
    %1254 = vmatprep.subr.mxu0 0.0
    %1255 = vmatpush1.xpose.msra.mxu0 0.0
    %1256 = vmatprep.subr.mxu0 0.0
    %1257 = vmatpush1.xpose.msra.mxu0 0.0
    %1258 = vmatprep.subr.mxu0 0.0
    %1259 = vmatpush1.xpose.msra.mxu0 0.0
    %1260 = vmatprep.subr.mxu0 0.0
    %1261 = vmatpush1.xpose.msra.mxu0 0.0
    %1262 = vmatprep.subr.mxu0 0.0
    %1263 = vmatpush1.xpose.msra.mxu0 0.0
    %1264 = vmatprep.subr.mxu0 0.0
    %1265 = vmatpush1.xpose.msra.mxu0 0.0
    %1266 = vmatprep.subr.mxu0 0.0
    %1267 = vmatpush1.xpose.msra.mxu0 0.0
    %1268 = vmatprep.subr.mxu0 0.0
    %1269 = vmatpush1.xpose.msra.mxu0 0.0
    %1270 = vmatprep.subr.mxu0 0.0
    %1271 = vmatpush1.xpose.msra.mxu0 0.0
    %1272 = vmatprep.subr.mxu0 0.0
    %1273 = vmatpush1.xpose.msra.mxu0 0.0
    %1274 = vmatprep.subr.mxu0 0.0
    %1275 = vmatpush1.xpose.msra.mxu0 0.0
    %1276 = vmatprep.subr.mxu0 0.0
    %1277 = vmatpush1.xpose.msra.mxu0 0.0
    %1278 = vmatprep.subr.mxu0 0.0
    %1279 = vmatpush1.xpose.msra.mxu0 0.0
    %1280 = vmatprep.subr.mxu0 0.0
    %1281 = vmatpush1.xpose.msra.mxu0 0.0
    %1282 = vmatprep.subr.mxu0 0.0
    %1283 = vmatpush1.xpose.msra.mxu0 0.0
    %1284 = vmatprep.subr.mxu0 0.0
    %1285 = vmatpush1.xpose.msra.mxu0 0.0
    %1286 = vmatprep.subr.mxu0 0.0
    %1287 = vmatpush1.xpose.msra.mxu0 0.0
    %1288 = vmatprep.subr.mxu0 0.0
    %1289 = vmatpush1.xpose.msra.mxu0 0.0
    %1290 = vmatprep.subr.mxu0 0.0
    %1291 = vmatpush1.xpose.msra.mxu0 0.0
    %1292 = vmatprep.subr.mxu0 0.0
    %1293 = vmatpush1.xpose.msra.mxu0 0.0
    %1294 = vmatprep.subr.mxu0 0.0
    %1295 = vmatpush1.xpose.msra.mxu0 0.0
    %1296 = vmatprep.subr.mxu0 0.0
    %1297 = vmatpush1.xpose.msra.mxu0 0.0
    %1298 = vmatprep.subr.mxu0 0.0
    %1299 = vmatpush1.xpose.msra.mxu0 0.0
    %1300 = vmatprep.subr.mxu0 0.0
    %1301 = vmatpush1.xpose.msra.mxu0 0.0
    %1302 = vmatprep.subr.mxu0 0.0
    %1303 = vmatpush1.xpose.msra.mxu0 0.0
    %1304 = vmatprep.subr.mxu0 0.0
    %1305 = vmatpush1.xpose.msra.mxu0 0.0
    %1306 = vmatprep.subr.mxu0 0.0
    %1307 = vmatpush1.xpose.msra.mxu0 0.0
    %1308 = vmatprep.mubr.f32.mxu0 0.0
    %1309 = vmatmul.mubr.f32.gmra.mrb[0].mxu0 %v1239
    %v1310 = vpop.f32.mrb[0].mxu0
    %v1311 = vadd.f32 %v1078, %v1310
    %v1312 = vpop.f32.mrb[0].mxu0
    %1313 = vdwg.mxu0
    %v1315 = vsel %vm1085, %v391, 0
    %v1318 = vsel %vm1085, %v687, 0
    %1320 = vmatprep.subr.mxu0 0.0
    %1321 = vmatpush1.xpose.msra.mxu0 %v1318
    %1322 = vmatprep.subr.mxu0 0.0
    %1323 = vmatpush1.xpose.msra.mxu0 0.0
    %1324 = vmatprep.subr.mxu0 0.0
    %1325 = vmatpush1.xpose.msra.mxu0 0.0
    %1326 = vmatprep.subr.mxu0 0.0
    %1327 = vmatpush1.xpose.msra.mxu0 0.0
    %1328 = vmatprep.subr.mxu0 0.0
    %1329 = vmatpush1.xpose.msra.mxu0 0.0
    %1330 = vmatprep.subr.mxu0 0.0
    %1331 = vmatpush1.xpose.msra.mxu0 0.0
    %1332 = vmatprep.subr.mxu0 0.0
    %1333 = vmatpush1.xpose.msra.mxu0 0.0
    %1334 = vmatprep.subr.mxu0 0.0
    %1335 = vmatpush1.xpose.msra.mxu0 0.0
    %1336 = vmatprep.subr.mxu0 0.0
    %1337 = vmatpush1.xpose.msra.mxu0 0.0
    %1338 = vmatprep.subr.mxu0 0.0
    %1339 = vmatpush1.xpose.msra.mxu0 0.0
    %1340 = vmatprep.subr.mxu0 0.0
    %1341 = vmatpush1.xpose.msra.mxu0 0.0
    %1342 = vmatprep.subr.mxu0 0.0
    %1343 = vmatpush1.xpose.msra.mxu0 0.0
    %1344 = vmatprep.subr.mxu0 0.0
    %1345 = vmatpush1.xpose.msra.mxu0 0.0
    %1346 = vmatprep.subr.mxu0 0.0
    %1347 = vmatpush1.xpose.msra.mxu0 0.0
    %1348 = vmatprep.subr.mxu0 0.0
    %1349 = vmatpush1.xpose.msra.mxu0 0.0
    %1350 = vmatprep.subr.mxu0 0.0
    %1351 = vmatpush1.xpose.msra.mxu0 0.0
    %1352 = vmatprep.subr.mxu0 0.0
    %1353 = vmatpush1.xpose.msra.mxu0 0.0
    %1354 = vmatprep.subr.mxu0 0.0
    %1355 = vmatpush1.xpose.msra.mxu0 0.0
    %1356 = vmatprep.subr.mxu0 0.0
    %1357 = vmatpush1.xpose.msra.mxu0 0.0
    %1358 = vmatprep.subr.mxu0 0.0
    %1359 = vmatpush1.xpose.msra.mxu0 0.0
    %1360 = vmatprep.subr.mxu0 0.0
    %1361 = vmatpush1.xpose.msra.mxu0 0.0
    %1362 = vmatprep.subr.mxu0 0.0
    %1363 = vmatpush1.xpose.msra.mxu0 0.0
    %1364 = vmatprep.subr.mxu0 0.0
    %1365 = vmatpush1.xpose.msra.mxu0 0.0
    %1366 = vmatprep.subr.mxu0 0.0
    %1367 = vmatpush1.xpose.msra.mxu0 0.0
    %1368 = vmatprep.subr.mxu0 0.0
    %1369 = vmatpush1.xpose.msra.mxu0 0.0
    %1370 = vmatprep.subr.mxu0 0.0
    %1371 = vmatpush1.xpose.msra.mxu0 0.0
    %1372 = vmatprep.subr.mxu0 0.0
    %1373 = vmatpush1.xpose.msra.mxu0 0.0
    %1374 = vmatprep.subr.mxu0 0.0
    %1375 = vmatpush1.xpose.msra.mxu0 0.0
    %1376 = vmatprep.subr.mxu0 0.0
    %1377 = vmatpush1.xpose.msra.mxu0 0.0
    %1378 = vmatprep.subr.mxu0 0.0
    %1379 = vmatpush1.xpose.msra.mxu0 0.0
    %1380 = vmatprep.subr.mxu0 0.0
    %1381 = vmatpush1.xpose.msra.mxu0 0.0
    %1382 = vmatprep.subr.mxu0 0.0
    %1383 = vmatpush1.xpose.msra.mxu0 0.0
    %1384 = vmatprep.mubr.f32.mxu0 0.0
    %1385 = vmatmul.mubr.f32.gmra.mrb[0].mxu0 %v1315
    %v1386 = vpop.f32.mrb[0].mxu0
    %v1387 = vadd.f32 %v1078, %v1386
    %v1388 = vpop.f32.mrb[0].mxu0
    %1389 = vdwg.mxu0
    %v1391 = vsel %vm1085, %v456, 0
    %v1394 = vsel %vm1085, %v752, 0
    %1396 = vmatprep.subr.mxu0 0.0
    %1397 = vmatpush1.xpose.msra.mxu0 %v1394
    %1398 = vmatprep.subr.mxu0 0.0
    %1399 = vmatpush1.xpose.msra.mxu0 0.0
    %1400 = vmatprep.subr.mxu0 0.0
    %1401 = vmatpush1.xpose.msra.mxu0 0.0
    %1402 = vmatprep.subr.mxu0 0.0
    %1403 = vmatpush1.xpose.msra.mxu0 0.0
    %1404 = vmatprep.subr.mxu0 0.0
    %1405 = vmatpush1.xpose.msra.mxu0 0.0
    %1406 = vmatprep.subr.mxu0 0.0
    %1407 = vmatpush1.xpose.msra.mxu0 0.0
    %1408 = vmatprep.subr.mxu0 0.0
    %1409 = vmatpush1.xpose.msra.mxu0 0.0
    %1410 = vmatprep.subr.mxu0 0.0
    %1411 = vmatpush1.xpose.msra.mxu0 0.0
    %1412 = vmatprep.subr.mxu0 0.0
    %1413 = vmatpush1.xpose.msra.mxu0 0.0
    %1414 = vmatprep.subr.mxu0 0.0
    %1415 = vmatpush1.xpose.msra.mxu0 0.0
    %1416 = vmatprep.subr.mxu0 0.0
    %1417 = vmatpush1.xpose.msra.mxu0 0.0
    %1418 = vmatprep.subr.mxu0 0.0
    %1419 = vmatpush1.xpose.msra.mxu0 0.0
    %1420 = vmatprep.subr.mxu0 0.0
    %1421 = vmatpush1.xpose.msra.mxu0 0.0
    %1422 = vmatprep.subr.mxu0 0.0
    %1423 = vmatpush1.xpose.msra.mxu0 0.0
    %1424 = vmatprep.subr.mxu0 0.0
    %1425 = vmatpush1.xpose.msra.mxu0 0.0
    %1426 = vmatprep.subr.mxu0 0.0
    %1427 = vmatpush1.xpose.msra.mxu0 0.0
    %1428 = vmatprep.subr.mxu0 0.0
    %1429 = vmatpush1.xpose.msra.mxu0 0.0
    %1430 = vmatprep.subr.mxu0 0.0
    %1431 = vmatpush1.xpose.msra.mxu0 0.0
    %1432 = vmatprep.subr.mxu0 0.0
    %1433 = vmatpush1.xpose.msra.mxu0 0.0
    %1434 = vmatprep.subr.mxu0 0.0
    %1435 = vmatpush1.xpose.msra.mxu0 0.0
    %1436 = vmatprep.subr.mxu0 0.0
    %1437 = vmatpush1.xpose.msra.mxu0 0.0
    %1438 = vmatprep.subr.mxu0 0.0
    %1439 = vmatpush1.xpose.msra.mxu0 0.0
    %1440 = vmatprep.subr.mxu0 0.0
    %1441 = vmatpush1.xpose.msra.mxu0 0.0
    %1442 = vmatprep.subr.mxu0 0.0
    %1443 = vmatpush1.xpose.msra.mxu0 0.0
    %1444 = vmatprep.subr.mxu0 0.0
    %1445 = vmatpush1.xpose.msra.mxu0 0.0
    %1446 = vmatprep.subr.mxu0 0.0
    %1447 = vmatpush1.xpose.msra.mxu0 0.0
    %1448 = vmatprep.subr.mxu0 0.0
    %1449 = vmatpush1.xpose.msra.mxu0 0.0
    %1450 = vmatprep.subr.mxu0 0.0
    %1451 = vmatpush1.xpose.msra.mxu0 0.0
    %1452 = vmatprep.subr.mxu0 0.0
    %1453 = vmatpush1.xpose.msra.mxu0 0.0
    %1454 = vmatprep.subr.mxu0 0.0
    %1455 = vmatpush1.xpose.msra.mxu0 0.0
    %1456 = vmatprep.subr.mxu0 0.0
    %1457 = vmatpush1.xpose.msra.mxu0 0.0
    %1458 = vmatprep.subr.mxu0 0.0
    %1459 = vmatpush1.xpose.msra.mxu0 0.0
    %1460 = vmatprep.mubr.f32.mxu0 0.0
    %1461 = vmatmul.mubr.f32.gmra.mrb[0].mxu0 %v1391
    %v1462 = vpop.f32.mrb[0].mxu0
    %v1463 = vadd.f32 %v1082, %v1462
    %v1464 = vpop.f32.mrb[0].mxu0
    %1465 = vdwg.mxu0
    %v1467 = vsel %vm1085, %v457, 0
    %v1470 = vsel %vm1085, %v753, 0
    %1472 = vmatprep.subr.mxu0 0.0
    %1473 = vmatpush1.xpose.msra.mxu0 %v1470
    %1474 = vmatprep.subr.mxu0 0.0
    %1475 = vmatpush1.xpose.msra.mxu0 0.0
    %1476 = vmatprep.subr.mxu0 0.0
    %1477 = vmatpush1.xpose.msra.mxu0 0.0
    %1478 = vmatprep.subr.mxu0 0.0
    %1479 = vmatpush1.xpose.msra.mxu0 0.0
    %1480 = vmatprep.subr.mxu0 0.0
    %1481 = vmatpush1.xpose.msra.mxu0 0.0
    %1482 = vmatprep.subr.mxu0 0.0
    %1483 = vmatpush1.xpose.msra.mxu0 0.0
    %1484 = vmatprep.subr.mxu0 0.0
    %1485 = vmatpush1.xpose.msra.mxu0 0.0
    %1486 = vmatprep.subr.mxu0 0.0
    %1487 = vmatpush1.xpose.msra.mxu0 0.0
    %1488 = vmatprep.subr.mxu0 0.0
    %1489 = vmatpush1.xpose.msra.mxu0 0.0
    %1490 = vmatprep.subr.mxu0 0.0
    %1491 = vmatpush1.xpose.msra.mxu0 0.0
    %1492 = vmatprep.subr.mxu0 0.0
    %1493 = vmatpush1.xpose.msra.mxu0 0.0
    %1494 = vmatprep.subr.mxu0 0.0
    %1495 = vmatpush1.xpose.msra.mxu0 0.0
    %1496 = vmatprep.subr.mxu0 0.0
    %1497 = vmatpush1.xpose.msra.mxu0 0.0
    %1498 = vmatprep.subr.mxu0 0.0
    %1499 = vmatpush1.xpose.msra.mxu0 0.0
    %1500 = vmatprep.subr.mxu0 0.0
    %1501 = vmatpush1.xpose.msra.mxu0 0.0
    %1502 = vmatprep.subr.mxu0 0.0
    %1503 = vmatpush1.xpose.msra.mxu0 0.0
    %1504 = vmatprep.subr.mxu0 0.0
    %1505 = vmatpush1.xpose.msra.mxu0 0.0
    %1506 = vmatprep.subr.mxu0 0.0
    %1507 = vmatpush1.xpose.msra.mxu0 0.0
    %1508 = vmatprep.subr.mxu0 0.0
    %1509 = vmatpush1.xpose.msra.mxu0 0.0
    %1510 = vmatprep.subr.mxu0 0.0
    %1511 = vmatpush1.xpose.msra.mxu0 0.0
    %1512 = vmatprep.subr.mxu0 0.0
    %1513 = vmatpush1.xpose.msra.mxu0 0.0
    %1514 = vmatprep.subr.mxu0 0.0
    %1515 = vmatpush1.xpose.msra.mxu0 0.0
    %1516 = vmatprep.subr.mxu0 0.0
    %1517 = vmatpush1.xpose.msra.mxu0 0.0
    %1518 = vmatprep.subr.mxu0 0.0
    %1519 = vmatpush1.xpose.msra.mxu0 0.0
    %1520 = vmatprep.subr.mxu0 0.0
    %1521 = vmatpush1.xpose.msra.mxu0 0.0
    %1522 = vmatprep.subr.mxu0 0.0
    %1523 = vmatpush1.xpose.msra.mxu0 0.0
    %1524 = vmatprep.subr.mxu0 0.0
    %1525 = vmatpush1.xpose.msra.mxu0 0.0
    %1526 = vmatprep.subr.mxu0 0.0
    %1527 = vmatpush1.xpose.msra.mxu0 0.0
    %1528 = vmatprep.subr.mxu0 0.0
    %1529 = vmatpush1.xpose.msra.mxu0 0.0
    %1530 = vmatprep.subr.mxu0 0.0
    %1531 = vmatpush1.xpose.msra.mxu0 0.0
    %1532 = vmatprep.subr.mxu0 0.0
    %1533 = vmatpush1.xpose.msra.mxu0 0.0
    %1534 = vmatprep.subr.mxu0 0.0
    %1535 = vmatpush1.xpose.msra.mxu0 0.0
    %1536 = vmatprep.mubr.f32.mxu0 0.0
    %1537 = vmatmul.mubr.f32.gmra.mrb[0].mxu0 %v1467
    %v1538 = vpop.f32.mrb[0].mxu0
    %v1539 = vadd.f32 %v1082, %v1538
    %v1540 = vpop.f32.mrb[0].mxu0
    %1541 = vdwg.mxu0
    %v1543 = vsel %vm1085, %v458, 0
    %v1546 = vsel %vm1085, %v754, 0
    %1548 = vmatprep.subr.mxu0 0.0
    %1549 = vmatpush1.xpose.msra.mxu0 %v1546
    %1550 = vmatprep.subr.mxu0 0.0
    %1551 = vmatpush1.xpose.msra.mxu0 0.0
    %1552 = vmatprep.subr.mxu0 0.0
    %1553 = vmatpush1.xpose.msra.mxu0 0.0
    %1554 = vmatprep.subr.mxu0 0.0
    %1555 = vmatpush1.xpose.msra.mxu0 0.0
    %1556 = vmatprep.subr.mxu0 0.0
    %1557 = vmatpush1.xpose.msra.mxu0 0.0
    %1558 = vmatprep.subr.mxu0 0.0
    %1559 = vmatpush1.xpose.msra.mxu0 0.0
    %1560 = vmatprep.subr.mxu0 0.0
    %1561 = vmatpush1.xpose.msra.mxu0 0.0
    %1562 = vmatprep.subr.mxu0 0.0
    %1563 = vmatpush1.xpose.msra.mxu0 0.0
    %1564 = vmatprep.subr.mxu0 0.0
    %1565 = vmatpush1.xpose.msra.mxu0 0.0
    %1566 = vmatprep.subr.mxu0 0.0
    %1567 = vmatpush1.xpose.msra.mxu0 0.0
    %1568 = vmatprep.subr.mxu0 0.0
    %1569 = vmatpush1.xpose.msra.mxu0 0.0
    %1570 = vmatprep.subr.mxu0 0.0
    %1571 = vmatpush1.xpose.msra.mxu0 0.0
    %1572 = vmatprep.subr.mxu0 0.0
    %1573 = vmatpush1.xpose.msra.mxu0 0.0
    %1574 = vmatprep.subr.mxu0 0.0
    %1575 = vmatpush1.xpose.msra.mxu0 0.0
    %1576 = vmatprep.subr.mxu0 0.0
    %1577 = vmatpush1.xpose.msra.mxu0 0.0
    %1578 = vmatprep.subr.mxu0 0.0
    %1579 = vmatpush1.xpose.msra.mxu0 0.0
    %1580 = vmatprep.subr.mxu0 0.0
    %1581 = vmatpush1.xpose.msra.mxu0 0.0
    %1582 = vmatprep.subr.mxu0 0.0
    %1583 = vmatpush1.xpose.msra.mxu0 0.0
    %1584 = vmatprep.subr.mxu0 0.0
    %1585 = vmatpush1.xpose.msra.mxu0 0.0
    %1586 = vmatprep.subr.mxu0 0.0
    %1587 = vmatpush1.xpose.msra.mxu0 0.0
    %1588 = vmatprep.subr.mxu0 0.0
    %1589 = vmatpush1.xpose.msra.mxu0 0.0
    %1590 = vmatprep.subr.mxu0 0.0
    %1591 = vmatpush1.xpose.msra.mxu0 0.0
    %1592 = vmatprep.subr.mxu0 0.0
    %1593 = vmatpush1.xpose.msra.mxu0 0.0
    %1594 = vmatprep.subr.mxu0 0.0
    %1595 = vmatpush1.xpose.msra.mxu0 0.0
    %1596 = vmatprep.subr.mxu0 0.0
    %1597 = vmatpush1.xpose.msra.mxu0 0.0
    %1598 = vmatprep.subr.mxu0 0.0
    %1599 = vmatpush1.xpose.msra.mxu0 0.0
    %1600 = vmatprep.subr.mxu0 0.0
    %1601 = vmatpush1.xpose.msra.mxu0 0.0
    %1602 = vmatprep.subr.mxu0 0.0
    %1603 = vmatpush1.xpose.msra.mxu0 0.0
    %1604 = vmatprep.subr.mxu0 0.0
    %1605 = vmatpush1.xpose.msra.mxu0 0.0
    %1606 = vmatprep.subr.mxu0 0.0
    %1607 = vmatpush1.xpose.msra.mxu0 0.0
    %1608 = vmatprep.subr.mxu0 0.0
    %1609 = vmatpush1.xpose.msra.mxu0 0.0
    %1610 = vmatprep.subr.mxu0 0.0
    %1611 = vmatpush1.xpose.msra.mxu0 0.0
    %1612 = vmatprep.mubr.f32.mxu0 0.0
    %1613 = vmatmul.mubr.f32.gmra.mrb[0].mxu0 %v1543
    %v1614 = vpop.f32.mrb[0].mxu0
    %v1615 = vadd.f32 %v1082, %v1614
    %v1616 = vpop.f32.mrb[0].mxu0
    %1617 = vdwg.mxu0
    %v1619 = vsel %vm1085, %v459, 0
    %v1622 = vsel %vm1085, %v755, 0
    %1624 = vmatprep.subr.mxu0 0.0
    %1625 = vmatpush1.xpose.msra.mxu0 %v1622
    %1626 = vmatprep.subr.mxu0 0.0
    %1627 = vmatpush1.xpose.msra.mxu0 0.0
    %1628 = vmatprep.subr.mxu0 0.0
    %1629 = vmatpush1.xpose.msra.mxu0 0.0
    %1630 = vmatprep.subr.mxu0 0.0
    %1631 = vmatpush1.xpose.msra.mxu0 0.0
    %1632 = vmatprep.subr.mxu0 0.0
    %1633 = vmatpush1.xpose.msra.mxu0 0.0
    %1634 = vmatprep.subr.mxu0 0.0
    %1635 = vmatpush1.xpose.msra.mxu0 0.0
    %1636 = vmatprep.subr.mxu0 0.0
    %1637 = vmatpush1.xpose.msra.mxu0 0.0
    %1638 = vmatprep.subr.mxu0 0.0
    %1639 = vmatpush1.xpose.msra.mxu0 0.0
    %1640 = vmatprep.subr.mxu0 0.0
    %1641 = vmatpush1.xpose.msra.mxu0 0.0
    %1642 = vmatprep.subr.mxu0 0.0
    %1643 = vmatpush1.xpose.msra.mxu0 0.0
    %1644 = vmatprep.subr.mxu0 0.0
    %1645 = vmatpush1.xpose.msra.mxu0 0.0
    %1646 = vmatprep.subr.mxu0 0.0
    %1647 = vmatpush1.xpose.msra.mxu0 0.0
    %1648 = vmatprep.subr.mxu0 0.0
    %1649 = vmatpush1.xpose.msra.mxu0 0.0
    %1650 = vmatprep.subr.mxu0 0.0
    %1651 = vmatpush1.xpose.msra.mxu0 0.0
    %1652 = vmatprep.subr.mxu0 0.0
    %1653 = vmatpush1.xpose.msra.mxu0 0.0
    %1654 = vmatprep.subr.mxu0 0.0
    %1655 = vmatpush1.xpose.msra.mxu0 0.0
    %1656 = vmatprep.subr.mxu0 0.0
    %1657 = vmatpush1.xpose.msra.mxu0 0.0
    %1658 = vmatprep.subr.mxu0 0.0
    %1659 = vmatpush1.xpose.msra.mxu0 0.0
    %1660 = vmatprep.subr.mxu0 0.0
    %1661 = vmatpush1.xpose.msra.mxu0 0.0
    %1662 = vmatprep.subr.mxu0 0.0
    %1663 = vmatpush1.xpose.msra.mxu0 0.0
    %1664 = vmatprep.subr.mxu0 0.0
    %1665 = vmatpush1.xpose.msra.mxu0 0.0
    %1666 = vmatprep.subr.mxu0 0.0
    %1667 = vmatpush1.xpose.msra.mxu0 0.0
    %1668 = vmatprep.subr.mxu0 0.0
    %1669 = vmatpush1.xpose.msra.mxu0 0.0
    %1670 = vmatprep.subr.mxu0 0.0
    %1671 = vmatpush1.xpose.msra.mxu0 0.0
    %1672 = vmatprep.subr.mxu0 0.0
    %1673 = vmatpush1.xpose.msra.mxu0 0.0
    %1674 = vmatprep.subr.mxu0 0.0
    %1675 = vmatpush1.xpose.msra.mxu0 0.0
    %1676 = vmatprep.subr.mxu0 0.0
    %1677 = vmatpush1.xpose.msra.mxu0 0.0
    %1678 = vmatprep.subr.mxu0 0.0
    %1679 = vmatpush1.xpose.msra.mxu0 0.0
    %1680 = vmatprep.subr.mxu0 0.0
    %1681 = vmatpush1.xpose.msra.mxu0 0.0
    %1682 = vmatprep.subr.mxu0 0.0
    %1683 = vmatpush1.xpose.msra.mxu0 0.0
    %1684 = vmatprep.subr.mxu0 0.0
    %1685 = vmatpush1.xpose.msra.mxu0 0.0
    %1686 = vmatprep.subr.mxu0 0.0
    %1687 = vmatpush1.xpose.msra.mxu0 0.0
    %1688 = vmatprep.mubr.f32.mxu0 0.0
    %1689 = vmatmul.mubr.f32.gmra.mrb[0].mxu0 %v1619
    %v1690 = vpop.f32.mrb[0].mxu0
    %v1691 = vadd.f32 %v1082, %v1690
    %v1692 = vpop.f32.mrb[0].mxu0
    %1693 = vdwg.mxu0
    %v1694 = vsel %vm1085, %v1159, -inf
    %1695 = vmax.xlane.f32.xlu0 %v1694
    %v1696 = vpop.xlane.xlu0 %1695
    %v1697 = vsel %vm1085, %v1235, -inf
    %1698 = vmax.xlane.f32.xlu0 %v1697
    %v1699 = vpop.xlane.xlu0 %1698
    %v1700 = vsel %vm1085, %v1311, -inf
    %1701 = vmax.xlane.f32.xlu0 %v1700
    %v1702 = vpop.xlane.xlu0 %1701
    %v1703 = vsel %vm1085, %v1387, -inf
    %1704 = vmax.xlane.f32.xlu0 %v1703
    %v1705 = vpop.xlane.xlu0 %1704
    %v1706 = vsel %vm1085, %v1463, -inf
    %1707 = vmax.xlane.f32.xlu0 %v1706
    %v1708 = vpop.xlane.xlu0 %1707
    %v1709 = vsel %vm1085, %v1539, -inf
    %1710 = vmax.xlane.f32.xlu0 %v1709
    %v1711 = vpop.xlane.xlu0 %1710
    %v1712 = vsel %vm1085, %v1615, -inf
    %1713 = vmax.xlane.f32.xlu0 %v1712
    %v1714 = vpop.xlane.xlu0 %1713
    %v1715 = vsel %vm1085, %v1691, -inf
    %1716 = vmax.xlane.f32.xlu0 %v1715
    %v1717 = vpop.xlane.xlu0 %1716
    %v1718 = vsub.f32 %v1159, %v1696
    %v1719 = vsub.f32 %v1235, %v1699
    %v1720 = vsub.f32 %v1311, %v1702
    %v1721 = vsub.f32 %v1387, %v1705
    %v1722 = vsub.f32 %v1463, %v1708
    %v1723 = vsub.f32 %v1539, %v1711
    %v1724 = vsub.f32 %v1615, %v1714
    %v1725 = vsub.f32 %v1691, %v1717
    %v1726 = vmul.f32 %v1718, 1.442695
    %v1727 = vpow.pop %v1726
    %v1728 = vmul.f32 %v1719, 1.442695
    %v1729 = vpow.pop %v1728
    %v1730 = vmul.f32 %v1720, 1.442695
    %v1731 = vpow.pop %v1730
    %v1732 = vmul.f32 %v1721, 1.442695
    %v1733 = vpow.pop %v1732
    %v1734 = vmul.f32 %v1722, 1.442695
    %v1735 = vpow.pop %v1734
    %v1736 = vmul.f32 %v1723, 1.442695
    %v1737 = vpow.pop %v1736
    %v1738 = vmul.f32 %v1724, 1.442695
    %v1739 = vpow.pop %v1738
    %v1740 = vmul.f32 %v1725, 1.442695
    %v1741 = vpow.pop %v1740
    %v1742 = vsel %vm1085, %v1727, 0.0
    %1743 = vadd.xlane.f32.xlu0 %v1742
    %v1744 = vpop.xlane.xlu0 %1743
    %v1745 = vsel %vm1085, %v1729, 0.0
    %1746 = vadd.xlane.f32.xlu0 %v1745
    %v1747 = vpop.xlane.xlu0 %1746
    %v1748 = vsel %vm1085, %v1731, 0.0
    %1749 = vadd.xlane.f32.xlu0 %v1748
    %v1750 = vpop.xlane.xlu0 %1749
    %v1751 = vsel %vm1085, %v1733, 0.0
    %1752 = vadd.xlane.f32.xlu0 %v1751
    %v1753 = vpop.xlane.xlu0 %1752
    %v1754 = vsel %vm1085, %v1735, 0.0
    %1755 = vadd.xlane.f32.xlu0 %v1754
    %v1756 = vpop.xlane.xlu0 %1755
    %v1757 = vsel %vm1085, %v1737, 0.0
    %1758 = vadd.xlane.f32.xlu0 %v1757
    %v1759 = vpop.xlane.xlu0 %1758
    %v1760 = vsel %vm1085, %v1739, 0.0
    %1761 = vadd.xlane.f32.xlu0 %v1760
    %v1762 = vpop.xlane.xlu0 %1761
    %v1763 = vsel %vm1085, %v1741, 0.0
    %1764 = vadd.xlane.f32.xlu0 %v1763
    %v1765 = vpop.xlane.xlu0 %1764
    %v1766 = vrcp.pop %v1744
    %v1767 = vrcp.pop %v1747
    %v1768 = vrcp.pop %v1750
    %v1769 = vrcp.pop %v1753
    %v1770 = vrcp.pop %v1756
    %v1771 = vrcp.pop %v1759
    %v1772 = vrcp.pop %v1762
    %v1773 = vrcp.pop %v1765
    %v1774 = vmul.f32 %v1727, %v1766
    %v1775 = vmul.f32 %v1729, %v1767
    %v1776 = vmul.f32 %v1731, %v1768
    %v1777 = vmul.f32 %v1733, %v1769
    %v1778 = vmul.f32 %v1735, %v1770
    %v1779 = vmul.f32 %v1737, %v1771
    %v1780 = vmul.f32 %v1739, %v1772
    %v1781 = vmul.f32 %v1741, %v1773
    %v1783 = vsel %vm1085, %v1774, 0
    %1785 = vmatprep.subr.mxu0 0.0
    %1786 = vmatpush1.msra.mxu0 %v980
    %1787 = vmatprep.subr.mxu0 0.0
    %1788 = vmatpush1.msra.mxu0 0.0
    %1789 = vmatprep.subr.mxu0 0.0
    %1790 = vmatpush1.msra.mxu0 0.0
    %1791 = vmatprep.subr.mxu0 0.0
    %1792 = vmatpush1.msra.mxu0 0.0
    %1793 = vmatprep.subr.mxu0 0.0
    %1794 = vmatpush1.msra.mxu0 0.0
    %1795 = vmatprep.subr.mxu0 0.0
    %1796 = vmatpush1.msra.mxu0 0.0
    %1797 = vmatprep.subr.mxu0 0.0
    %1798 = vmatpush1.msra.mxu0 0.0
    %1799 = vmatprep.subr.mxu0 0.0
    %1800 = vmatpush1.msra.mxu0 0.0
    %1801 = vmatprep.subr.mxu0 0.0
    %1802 = vmatpush1.msra.mxu0 0.0
    %1803 = vmatprep.subr.mxu0 0.0
    %1804 = vmatpush1.msra.mxu0 0.0
    %1805 = vmatprep.subr.mxu0 0.0
    %1806 = vmatpush1.msra.mxu0 0.0
    %1807 = vmatprep.subr.mxu0 0.0
    %1808 = vmatpush1.msra.mxu0 0.0
    %1809 = vmatprep.subr.mxu0 0.0
    %1810 = vmatpush1.msra.mxu0 0.0
    %1811 = vmatprep.subr.mxu0 0.0
    %1812 = vmatpush1.msra.mxu0 0.0
    %1813 = vmatprep.subr.mxu0 0.0
    %1814 = vmatpush1.msra.mxu0 0.0
    %1815 = vmatprep.subr.mxu0 0.0
    %1816 = vmatpush1.msra.mxu0 0.0
    %1817 = vmatprep.subr.mxu0 0.0
    %1818 = vmatpush1.msra.mxu0 0.0
    %1819 = vmatprep.subr.mxu0 0.0
    %1820 = vmatpush1.msra.mxu0 0.0
    %1821 = vmatprep.subr.mxu0 0.0
    %1822 = vmatpush1.msra.mxu0 0.0
    %1823 = vmatprep.subr.mxu0 0.0
    %1824 = vmatpush1.msra.mxu0 0.0
    %1825 = vmatprep.subr.mxu0 0.0
    %1826 = vmatpush1.msra.mxu0 0.0
    %1827 = vmatprep.subr.mxu0 0.0
    %1828 = vmatpush1.msra.mxu0 0.0
    %1829 = vmatprep.subr.mxu0 0.0
    %1830 = vmatpush1.msra.mxu0 0.0
    %1831 = vmatprep.subr.mxu0 0.0
    %1832 = vmatpush1.msra.mxu0 0.0
    %1833 = vmatprep.subr.mxu0 0.0
    %1834 = vmatpush1.msra.mxu0 0.0
    %1835 = vmatprep.subr.mxu0 0.0
    %1836 = vmatpush1.msra.mxu0 0.0
    %1837 = vmatprep.subr.mxu0 0.0
    %1838 = vmatpush1.msra.mxu0 0.0
    %1839 = vmatprep.subr.mxu0 0.0
    %1840 = vmatpush1.msra.mxu0 0.0
    %1841 = vmatprep.subr.mxu0 0.0
    %1842 = vmatpush1.msra.mxu0 0.0
    %1843 = vmatprep.subr.mxu0 0.0
    %1844 = vmatpush1.msra.mxu0 0.0
    %1845 = vmatprep.subr.mxu0 0.0
    %1846 = vmatpush1.msra.mxu0 0.0
    %1847 = vmatprep.subr.mxu0 0.0
    %1848 = vmatpush1.msra.mxu0 0.0
    %1849 = vmatprep.mubr.f32.mxu0 0.0
    %1850 = vmatmul.mubr.f32.gmra.mrb[0].mxu0 %v1783
    %v1851 = vpop.f32.mrb[0].mxu0
    %v1852 = vadd.f32 0.0, %v1851
    %v1853 = vpop.f32.mrb[0].mxu0
    %1854 = vdwg.mxu0
    %v1856 = vsel %vm1085, %v1775, 0
    %1858 = vmatprep.subr.mxu0 0.0
    %1859 = vmatpush1.msra.mxu0 %v981
    %1860 = vmatprep.subr.mxu0 0.0
    %1861 = vmatpush1.msra.mxu0 0.0
    %1862 = vmatprep.subr.mxu0 0.0
    %1863 = vmatpush1.msra.mxu0 0.0
    %1864 = vmatprep.subr.mxu0 0.0
    %1865 = vmatpush1.msra.mxu0 0.0
    %1866 = vmatprep.subr.mxu0 0.0
    %1867 = vmatpush1.msra.mxu0 0.0
    %1868 = vmatprep.subr.mxu0 0.0
    %1869 = vmatpush1.msra.mxu0 0.0
    %1870 = vmatprep.subr.mxu0 0.0
    %1871 = vmatpush1.msra.mxu0 0.0
    %1872 = vmatprep.subr.mxu0 0.0
    %1873 = vmatpush1.msra.mxu0 0.0
    %1874 = vmatprep.subr.mxu0 0.0
    %1875 = vmatpush1.msra.mxu0 0.0
    %1876 = vmatprep.subr.mxu0 0.0
    %1877 = vmatpush1.msra.mxu0 0.0
    %1878 = vmatprep.subr.mxu0 0.0
    %1879 = vmatpush1.msra.mxu0 0.0
    %1880 = vmatprep.subr.mxu0 0.0
    %1881 = vmatpush1.msra.mxu0 0.0
    %1882 = vmatprep.subr.mxu0 0.0
    %1883 = vmatpush1.msra.mxu0 0.0
    %1884 = vmatprep.subr.mxu0 0.0
    %1885 = vmatpush1.msra.mxu0 0.0
    %1886 = vmatprep.subr.mxu0 0.0
    %1887 = vmatpush1.msra.mxu0 0.0
    %1888 = vmatprep.subr.mxu0 0.0
    %1889 = vmatpush1.msra.mxu0 0.0
    %1890 = vmatprep.subr.mxu0 0.0
    %1891 = vmatpush1.msra.mxu0 0.0
    %1892 = vmatprep.subr.mxu0 0.0
    %1893 = vmatpush1.msra.mxu0 0.0
    %1894 = vmatprep.subr.mxu0 0.0
    %1895 = vmatpush1.msra.mxu0 0.0
    %1896 = vmatprep.subr.mxu0 0.0
    %1897 = vmatpush1.msra.mxu0 0.0
    %1898 = vmatprep.subr.mxu0 0.0
    %1899 = vmatpush1.msra.mxu0 0.0
    %1900 = vmatprep.subr.mxu0 0.0
    %1901 = vmatpush1.msra.mxu0 0.0
    %1902 = vmatprep.subr.mxu0 0.0
    %1903 = vmatpush1.msra.mxu0 0.0
    %1904 = vmatprep.subr.mxu0 0.0
    %1905 = vmatpush1.msra.mxu0 0.0
    %1906 = vmatprep.subr.mxu0 0.0
    %1907 = vmatpush1.msra.mxu0 0.0
    %1908 = vmatprep.subr.mxu0 0.0
    %1909 = vmatpush1.msra.mxu0 0.0
    %1910 = vmatprep.subr.mxu0 0.0
    %1911 = vmatpush1.msra.mxu0 0.0
    %1912 = vmatprep.subr.mxu0 0.0
    %1913 = vmatpush1.msra.mxu0 0.0
    %1914 = vmatprep.subr.mxu0 0.0
    %1915 = vmatpush1.msra.mxu0 0.0
    %1916 = vmatprep.subr.mxu0 0.0
    %1917 = vmatpush1.msra.mxu0 0.0
    %1918 = vmatprep.subr.mxu0 0.0
    %1919 = vmatpush1.msra.mxu0 0.0
    %1920 = vmatprep.subr.mxu0 0.0
    %1921 = vmatpush1.msra.mxu0 0.0
    %1922 = vmatprep.mubr.f32.mxu0 0.0
    %1923 = vmatmul.mubr.f32.gmra.mrb[0].mxu0 %v1856
    %v1924 = vpop.f32.mrb[0].mxu0
    %v1925 = vadd.f32 0.0, %v1924
    %v1926 = vpop.f32.mrb[0].mxu0
    %1927 = vdwg.mxu0
    %v1929 = vsel %vm1085, %v1776, 0
    %1931 = vmatprep.subr.mxu0 0.0
    %1932 = vmatpush1.msra.mxu0 %v982
    %1933 = vmatprep.subr.mxu0 0.0
    %1934 = vmatpush1.msra.mxu0 0.0
    %1935 = vmatprep.subr.mxu0 0.0
    %1936 = vmatpush1.msra.mxu0 0.0
    %1937 = vmatprep.subr.mxu0 0.0
    %1938 = vmatpush1.msra.mxu0 0.0
    %1939 = vmatprep.subr.mxu0 0.0
    %1940 = vmatpush1.msra.mxu0 0.0
    %1941 = vmatprep.subr.mxu0 0.0
    %1942 = vmatpush1.msra.mxu0 0.0
    %1943 = vmatprep.subr.mxu0 0.0
    %1944 = vmatpush1.msra.mxu0 0.0
    %1945 = vmatprep.subr.mxu0 0.0
    %1946 = vmatpush1.msra.mxu0 0.0
    %1947 = vmatprep.subr.mxu0 0.0
    %1948 = vmatpush1.msra.mxu0 0.0
    %1949 = vmatprep.subr.mxu0 0.0
    %1950 = vmatpush1.msra.mxu0 0.0
    %1951 = vmatprep.subr.mxu0 0.0
    %1952 = vmatpush1.msra.mxu0 0.0
    %1953 = vmatprep.subr.mxu0 0.0
    %1954 = vmatpush1.msra.mxu0 0.0
    %1955 = vmatprep.subr.mxu0 0.0
    %1956 = vmatpush1.msra.mxu0 0.0
    %1957 = vmatprep.subr.mxu0 0.0
    %1958 = vmatpush1.msra.mxu0 0.0
    %1959 = vmatprep.subr.mxu0 0.0
    %1960 = vmatpush1.msra.mxu0 0.0
    %1961 = vmatprep.subr.mxu0 0.0
    %1962 = vmatpush1.msra.mxu0 0.0
    %1963 = vmatprep.subr.mxu0 0.0
    %1964 = vmatpush1.msra.mxu0 0.0
    %1965 = vmatprep.subr.mxu0 0.0
    %1966 = vmatpush1.msra.mxu0 0.0
    %1967 = vmatprep.subr.mxu0 0.0
    %1968 = vmatpush1.msra.mxu0 0.0
    %1969 = vmatprep.subr.mxu0 0.0
    %1970 = vmatpush1.msra.mxu0 0.0
    %1971 = vmatprep.subr.mxu0 0.0
    %1972 = vmatpush1.msra.mxu0 0.0
    %1973 = vmatprep.subr.mxu0 0.0
    %1974 = vmatpush1.msra.mxu0 0.0
    %1975 = vmatprep.subr.mxu0 0.0
    %1976 = vmatpush1.msra.mxu0 0.0
    %1977 = vmatprep.subr.mxu0 0.0
    %1978 = vmatpush1.msra.mxu0 0.0
    %1979 = vmatprep.subr.mxu0 0.0
    %1980 = vmatpush1.msra.mxu0 0.0
    %1981 = vmatprep.subr.mxu0 0.0
    %1982 = vmatpush1.msra.mxu0 0.0
    %1983 = vmatprep.subr.mxu0 0.0
    %1984 = vmatpush1.msra.mxu0 0.0
    %1985 = vmatprep.subr.mxu0 0.0
    %1986 = vmatpush1.msra.mxu0 0.0
    %1987 = vmatprep.subr.mxu0 0.0
    %1988 = vmatpush1.msra.mxu0 0.0
    %1989 = vmatprep.subr.mxu0 0.0
    %1990 = vmatpush1.msra.mxu0 0.0
    %1991 = vmatprep.subr.mxu0 0.0
    %1992 = vmatpush1.msra.mxu0 0.0
    %1993 = vmatprep.subr.mxu0 0.0
    %1994 = vmatpush1.msra.mxu0 0.0
    %1995 = vmatprep.mubr.f32.mxu0 0.0
    %1996 = vmatmul.mubr.f32.gmra.mrb[0].mxu0 %v1929
    %v1997 = vpop.f32.mrb[0].mxu0
    %v1998 = vadd.f32 0.0, %v1997
    %v1999 = vpop.f32.mrb[0].mxu0
    %2000 = vdwg.mxu0
    %v2002 = vsel %vm1085, %v1777, 0
    %2004 = vmatprep.subr.mxu0 0.0
    %2005 = vmatpush1.msra.mxu0 %v983
    %2006 = vmatprep.subr.mxu0 0.0
    %2007 = vmatpush1.msra.mxu0 0.0
    %2008 = vmatprep.subr.mxu0 0.0
    %2009 = vmatpush1.msra.mxu0 0.0
    %2010 = vmatprep.subr.mxu0 0.0
    %2011 = vmatpush1.msra.mxu0 0.0
    %2012 = vmatprep.subr.mxu0 0.0
    %2013 = vmatpush1.msra.mxu0 0.0
    %2014 = vmatprep.subr.mxu0 0.0
    %2015 = vmatpush1.msra.mxu0 0.0
    %2016 = vmatprep.subr.mxu0 0.0
    %2017 = vmatpush1.msra.mxu0 0.0
    %2018 = vmatprep.subr.mxu0 0.0
    %2019 = vmatpush1.msra.mxu0 0.0
    %2020 = vmatprep.subr.mxu0 0.0
    %2021 = vmatpush1.msra.mxu0 0.0
    %2022 = vmatprep.subr.mxu0 0.0
    %2023 = vmatpush1.msra.mxu0 0.0
    %2024 = vmatprep.subr.mxu0 0.0
    %2025 = vmatpush1.msra.mxu0 0.0
    %2026 = vmatprep.subr.mxu0 0.0
    %2027 = vmatpush1.msra.mxu0 0.0
    %2028 = vmatprep.subr.mxu0 0.0
    %2029 = vmatpush1.msra.mxu0 0.0
    %2030 = vmatprep.subr.mxu0 0.0
    %2031 = vmatpush1.msra.mxu0 0.0
    %2032 = vmatprep.subr.mxu0 0.0
    %2033 = vmatpush1.msra.mxu0 0.0
    %2034 = vmatprep.subr.mxu0 0.0
    %2035 = vmatpush1.msra.mxu0 0.0
    %2036 = vmatprep.subr.mxu0 0.0
    %2037 = vmatpush1.msra.mxu0 0.0
    %2038 = vmatprep.subr.mxu0 0.0
    %2039 = vmatpush1.msra.mxu0 0.0
    %2040 = vmatprep.subr.mxu0 0.0
    %2041 = vmatpush1.msra.mxu0 0.0
    %2042 = vmatprep.subr.mxu0 0.0
    %2043 = vmatpush1.msra.mxu0 0.0
    %2044 = vmatprep.subr.mxu0 0.0
    %2045 = vmatpush1.msra.mxu0 0.0
    %2046 = vmatprep.subr.mxu0 0.0
    %2047 = vmatpush1.msra.mxu0 0.0
    %2048 = vmatprep.subr.mxu0 0.0
    %2049 = vmatpush1.msra.mxu0 0.0
    %2050 = vmatprep.subr.mxu0 0.0
    %2051 = vmatpush1.msra.mxu0 0.0
    %2052 = vmatprep.subr.mxu0 0.0
    %2053 = vmatpush1.msra.mxu0 0.0
    %2054 = vmatprep.subr.mxu0 0.0
    %2055 = vmatpush1.msra.mxu0 0.0
    %2056 = vmatprep.subr.mxu0 0.0
    %2057 = vmatpush1.msra.mxu0 0.0
    %2058 = vmatprep.subr.mxu0 0.0
    %2059 = vmatpush1.msra.mxu0 0.0
    %2060 = vmatprep.subr.mxu0 0.0
    %2061 = vmatpush1.msra.mxu0 0.0
    %2062 = vmatprep.subr.mxu0 0.0
    %2063 = vmatpush1.msra.mxu0 0.0
    %2064 = vmatprep.subr.mxu0 0.0
    %2065 = vmatpush1.msra.mxu0 0.0
    %2066 = vmatprep.subr.mxu0 0.0
    %2067 = vmatpush1.msra.mxu0 0.0
    %2068 = vmatprep.mubr.f32.mxu0 0.0
    %2069 = vmatmul.mubr.f32.gmra.mrb[0].mxu0 %v2002
    %v2070 = vpop.f32.mrb[0].mxu0
    %v2071 = vadd.f32 0.0, %v2070
    %v2072 = vpop.f32.mrb[0].mxu0
    %2073 = vdwg.mxu0
    %v2075 = vsel %vm1085, %v1778, 0
    %2077 = vmatprep.subr.mxu0 0.0
    %2078 = vmatpush1.msra.mxu0 %v1048
    %2079 = vmatprep.subr.mxu0 0.0
    %2080 = vmatpush1.msra.mxu0 0.0
    %2081 = vmatprep.subr.mxu0 0.0
    %2082 = vmatpush1.msra.mxu0 0.0
    %2083 = vmatprep.subr.mxu0 0.0
    %2084 = vmatpush1.msra.mxu0 0.0
    %2085 = vmatprep.subr.mxu0 0.0
    %2086 = vmatpush1.msra.mxu0 0.0
    %2087 = vmatprep.subr.mxu0 0.0
    %2088 = vmatpush1.msra.mxu0 0.0
    %2089 = vmatprep.subr.mxu0 0.0
    %2090 = vmatpush1.msra.mxu0 0.0
    %2091 = vmatprep.subr.mxu0 0.0
    %2092 = vmatpush1.msra.mxu0 0.0
    %2093 = vmatprep.subr.mxu0 0.0
    %2094 = vmatpush1.msra.mxu0 0.0
    %2095 = vmatprep.subr.mxu0 0.0
    %2096 = vmatpush1.msra.mxu0 0.0
    %2097 = vmatprep.subr.mxu0 0.0
    %2098 = vmatpush1.msra.mxu0 0.0
    %2099 = vmatprep.subr.mxu0 0.0
    %2100 = vmatpush1.msra.mxu0 0.0
    %2101 = vmatprep.subr.mxu0 0.0
    %2102 = vmatpush1.msra.mxu0 0.0
    %2103 = vmatprep.subr.mxu0 0.0
    %2104 = vmatpush1.msra.mxu0 0.0
    %2105 = vmatprep.subr.mxu0 0.0
    %2106 = vmatpush1.msra.mxu0 0.0
    %2107 = vmatprep.subr.mxu0 0.0
    %2108 = vmatpush1.msra.mxu0 0.0
    %2109 = vmatprep.subr.mxu0 0.0
    %2110 = vmatpush1.msra.mxu0 0.0
    %2111 = vmatprep.subr.mxu0 0.0
    %2112 = vmatpush1.msra.mxu0 0.0
    %2113 = vmatprep.subr.mxu0 0.0
    %2114 = vmatpush1.msra.mxu0 0.0
    %2115 = vmatprep.subr.mxu0 0.0
    %2116 = vmatpush1.msra.mxu0 0.0
    %2117 = vmatprep.subr.mxu0 0.0
    %2118 = vmatpush1.msra.mxu0 0.0
    %2119 = vmatprep.subr.mxu0 0.0
    %2120 = vmatpush1.msra.mxu0 0.0
    %2121 = vmatprep.subr.mxu0 0.0
    %2122 = vmatpush1.msra.mxu0 0.0
    %2123 = vmatprep.subr.mxu0 0.0
    %2124 = vmatpush1.msra.mxu0 0.0
    %2125 = vmatprep.subr.mxu0 0.0
    %2126 = vmatpush1.msra.mxu0 0.0
    %2127 = vmatprep.subr.mxu0 0.0
    %2128 = vmatpush1.msra.mxu0 0.0
    %2129 = vmatprep.subr.mxu0 0.0
    %2130 = vmatpush1.msra.mxu0 0.0
    %2131 = vmatprep.subr.mxu0 0.0
    %2132 = vmatpush1.msra.mxu0 0.0
    %2133 = vmatprep.subr.mxu0 0.0
    %2134 = vmatpush1.msra.mxu0 0.0
    %2135 = vmatprep.subr.mxu0 0.0
    %2136 = vmatpush1.msra.mxu0 0.0
    %2137 = vmatprep.subr.mxu0 0.0
    %2138 = vmatpush1.msra.mxu0 0.0
    %2139 = vmatprep.subr.mxu0 0.0
    %2140 = vmatpush1.msra.mxu0 0.0
    %2141 = vmatprep.mubr.f32.mxu0 0.0
    %2142 = vmatmul.mubr.f32.gmra.mrb[0].mxu0 %v2075
    %v2143 = vpop.f32.mrb[0].mxu0
    %v2144 = vadd.f32 0.0, %v2143
    %v2145 = vpop.f32.mrb[0].mxu0
    %2146 = vdwg.mxu0
    %v2148 = vsel %vm1085, %v1779, 0
    %2150 = vmatprep.subr.mxu0 0.0
    %2151 = vmatpush1.msra.mxu0 %v1049
    %2152 = vmatprep.subr.mxu0 0.0
    %2153 = vmatpush1.msra.mxu0 0.0
    %2154 = vmatprep.subr.mxu0 0.0
    %2155 = vmatpush1.msra.mxu0 0.0
    %2156 = vmatprep.subr.mxu0 0.0
    %2157 = vmatpush1.msra.mxu0 0.0
    %2158 = vmatprep.subr.mxu0 0.0
    %2159 = vmatpush1.msra.mxu0 0.0
    %2160 = vmatprep.subr.mxu0 0.0
    %2161 = vmatpush1.msra.mxu0 0.0
    %2162 = vmatprep.subr.mxu0 0.0
    %2163 = vmatpush1.msra.mxu0 0.0
    %2164 = vmatprep.subr.mxu0 0.0
    %2165 = vmatpush1.msra.mxu0 0.0
    %2166 = vmatprep.subr.mxu0 0.0
    %2167 = vmatpush1.msra.mxu0 0.0
    %2168 = vmatprep.subr.mxu0 0.0
    %2169 = vmatpush1.msra.mxu0 0.0
    %2170 = vmatprep.subr.mxu0 0.0
    %2171 = vmatpush1.msra.mxu0 0.0
    %2172 = vmatprep.subr.mxu0 0.0
    %2173 = vmatpush1.msra.mxu0 0.0
    %2174 = vmatprep.subr.mxu0 0.0
    %2175 = vmatpush1.msra.mxu0 0.0
    %2176 = vmatprep.subr.mxu0 0.0
    %2177 = vmatpush1.msra.mxu0 0.0
    %2178 = vmatprep.subr.mxu0 0.0
    %2179 = vmatpush1.msra.mxu0 0.0
    %2180 = vmatprep.subr.mxu0 0.0
    %2181 = vmatpush1.msra.mxu0 0.0
    %2182 = vmatprep.subr.mxu0 0.0
    %2183 = vmatpush1.msra.mxu0 0.0
    %2184 = vmatprep.subr.mxu0 0.0
    %2185 = vmatpush1.msra.mxu0 0.0
    %2186 = vmatprep.subr.mxu0 0.0
    %2187 = vmatpush1.msra.mxu0 0.0
    %2188 = vmatprep.subr.mxu0 0.0
    %2189 = vmatpush1.msra.mxu0 0.0
    %2190 = vmatprep.subr.mxu0 0.0
    %2191 = vmatpush1.msra.mxu0 0.0
    %2192 = vmatprep.subr.mxu0 0.0
    %2193 = vmatpush1.msra.mxu0 0.0
    %2194 = vmatprep.subr.mxu0 0.0
    %2195 = vmatpush1.msra.mxu0 0.0
    %2196 = vmatprep.subr.mxu0 0.0
    %2197 = vmatpush1.msra.mxu0 0.0
    %2198 = vmatprep.subr.mxu0 0.0
    %2199 = vmatpush1.msra.mxu0 0.0
    %2200 = vmatprep.subr.mxu0 0.0
    %2201 = vmatpush1.msra.mxu0 0.0
    %2202 = vmatprep.subr.mxu0 0.0
    %2203 = vmatpush1.msra.mxu0 0.0
    %2204 = vmatprep.subr.mxu0 0.0
    %2205 = vmatpush1.msra.mxu0 0.0
    %2206 = vmatprep.subr.mxu0 0.0
    %2207 = vmatpush1.msra.mxu0 0.0
    %2208 = vmatprep.subr.mxu0 0.0
    %2209 = vmatpush1.msra.mxu0 0.0
    %2210 = vmatprep.subr.mxu0 0.0
    %2211 = vmatpush1.msra.mxu0 0.0
    %2212 = vmatprep.subr.mxu0 0.0
    %2213 = vmatpush1.msra.mxu0 0.0
    %2214 = vmatprep.mubr.f32.mxu0 0.0
    %2215 = vmatmul.mubr.f32.gmra.mrb[0].mxu0 %v2148
    %v2216 = vpop.f32.mrb[0].mxu0
    %v2217 = vadd.f32 0.0, %v2216
    %v2218 = vpop.f32.mrb[0].mxu0
    %2219 = vdwg.mxu0
    %v2221 = vsel %vm1085, %v1780, 0
    %2223 = vmatprep.subr.mxu0 0.0
    %2224 = vmatpush1.msra.mxu0 %v1050
    %2225 = vmatprep.subr.mxu0 0.0
    %2226 = vmatpush1.msra.mxu0 0.0
    %2227 = vmatprep.subr.mxu0 0.0
    %2228 = vmatpush1.msra.mxu0 0.0
    %2229 = vmatprep.subr.mxu0 0.0
    %2230 = vmatpush1.msra.mxu0 0.0
    %2231 = vmatprep.subr.mxu0 0.0
    %2232 = vmatpush1.msra.mxu0 0.0
    %2233 = vmatprep.subr.mxu0 0.0
    %2234 = vmatpush1.msra.mxu0 0.0
    %2235 = vmatprep.subr.mxu0 0.0
    %2236 = vmatpush1.msra.mxu0 0.0
    %2237 = vmatprep.subr.mxu0 0.0
    %2238 = vmatpush1.msra.mxu0 0.0
    %2239 = vmatprep.subr.mxu0 0.0
    %2240 = vmatpush1.msra.mxu0 0.0
    %2241 = vmatprep.subr.mxu0 0.0
    %2242 = vmatpush1.msra.mxu0 0.0
    %2243 = vmatprep.subr.mxu0 0.0
    %2244 = vmatpush1.msra.mxu0 0.0
    %2245 = vmatprep.subr.mxu0 0.0
    %2246 = vmatpush1.msra.mxu0 0.0
    %2247 = vmatprep.subr.mxu0 0.0
    %2248 = vmatpush1.msra.mxu0 0.0
    %2249 = vmatprep.subr.mxu0 0.0
    %2250 = vmatpush1.msra.mxu0 0.0
    %2251 = vmatprep.subr.mxu0 0.0
    %2252 = vmatpush1.msra.mxu0 0.0
    %2253 = vmatprep.subr.mxu0 0.0
    %2254 = vmatpush1.msra.mxu0 0.0
    %2255 = vmatprep.subr.mxu0 0.0
    %2256 = vmatpush1.msra.mxu0 0.0
    %2257 = vmatprep.subr.mxu0 0.0
    %2258 = vmatpush1.msra.mxu0 0.0
    %2259 = vmatprep.subr.mxu0 0.0
    %2260 = vmatpush1.msra.mxu0 0.0
    %2261 = vmatprep.subr.mxu0 0.0
    %2262 = vmatpush1.msra.mxu0 0.0
    %2263 = vmatprep.subr.mxu0 0.0
    %2264 = vmatpush1.msra.mxu0 0.0
    %2265 = vmatprep.subr.mxu0 0.0
    %2266 = vmatpush1.msra.mxu0 0.0
    %2267 = vmatprep.subr.mxu0 0.0
    %2268 = vmatpush1.msra.mxu0 0.0
    %2269 = vmatprep.subr.mxu0 0.0
    %2270 = vmatpush1.msra.mxu0 0.0
    %2271 = vmatprep.subr.mxu0 0.0
    %2272 = vmatpush1.msra.mxu0 0.0
    %2273 = vmatprep.subr.mxu0 0.0
    %2274 = vmatpush1.msra.mxu0 0.0
    %2275 = vmatprep.subr.mxu0 0.0
    %2276 = vmatpush1.msra.mxu0 0.0
    %2277 = vmatprep.subr.mxu0 0.0
    %2278 = vmatpush1.msra.mxu0 0.0
    %2279 = vmatprep.subr.mxu0 0.0
    %2280 = vmatpush1.msra.mxu0 0.0
    %2281 = vmatprep.subr.mxu0 0.0
    %2282 = vmatpush1.msra.mxu0 0.0
    %2283 = vmatprep.subr.mxu0 0.0
    %2284 = vmatpush1.msra.mxu0 0.0
    %2285 = vmatprep.subr.mxu0 0.0
    %2286 = vmatpush1.msra.mxu0 0.0
    %2287 = vmatprep.mubr.f32.mxu0 0.0
    %2288 = vmatmul.mubr.f32.gmra.mrb[0].mxu0 %v2221
    %v2289 = vpop.f32.mrb[0].mxu0
    %v2290 = vadd.f32 0.0, %v2289
    %v2291 = vpop.f32.mrb[0].mxu0
    %2292 = vdwg.mxu0
    %v2294 = vsel %vm1085, %v1781, 0
    %2296 = vmatprep.subr.mxu0 0.0
    %2297 = vmatpush1.msra.mxu0 %v1051
    %2298 = vmatprep.subr.mxu0 0.0
    %2299 = vmatpush1.msra.mxu0 0.0
    %2300 = vmatprep.subr.mxu0 0.0
    %2301 = vmatpush1.msra.mxu0 0.0
    %2302 = vmatprep.subr.mxu0 0.0
    %2303 = vmatpush1.msra.mxu0 0.0
    %2304 = vmatprep.subr.mxu0 0.0
    %2305 = vmatpush1.msra.mxu0 0.0
    %2306 = vmatprep.subr.mxu0 0.0
    %2307 = vmatpush1.msra.mxu0 0.0
    %2308 = vmatprep.subr.mxu0 0.0
    %2309 = vmatpush1.msra.mxu0 0.0
    %2310 = vmatprep.subr.mxu0 0.0
    %2311 = vmatpush1.msra.mxu0 0.0
    %2312 = vmatprep.subr.mxu0 0.0
    %2313 = vmatpush1.msra.mxu0 0.0
    %2314 = vmatprep.subr.mxu0 0.0
    %2315 = vmatpush1.msra.mxu0 0.0
    %2316 = vmatprep.subr.mxu0 0.0
    %2317 = vmatpush1.msra.mxu0 0.0
    %2318 = vmatprep.subr.mxu0 0.0
    %2319 = vmatpush1.msra.mxu0 0.0
    %2320 = vmatprep.subr.mxu0 0.0
    %2321 = vmatpush1.msra.mxu0 0.0
    %2322 = vmatprep.subr.mxu0 0.0
    %2323 = vmatpush1.msra.mxu0 0.0
    %2324 = vmatprep.subr.mxu0 0.0
    %2325 = vmatpush1.msra.mxu0 0.0
    %2326 = vmatprep.subr.mxu0 0.0
    %2327 = vmatpush1.msra.mxu0 0.0
    %2328 = vmatprep.subr.mxu0 0.0
    %2329 = vmatpush1.msra.mxu0 0.0
    %2330 = vmatprep.subr.mxu0 0.0
    %2331 = vmatpush1.msra.mxu0 0.0
    %2332 = vmatprep.subr.mxu0 0.0
    %2333 = vmatpush1.msra.mxu0 0.0
    %2334 = vmatprep.subr.mxu0 0.0
    %2335 = vmatpush1.msra.mxu0 0.0
    %2336 = vmatprep.subr.mxu0 0.0
    %2337 = vmatpush1.msra.mxu0 0.0
    %2338 = vmatprep.subr.mxu0 0.0
    %2339 = vmatpush1.msra.mxu0 0.0
    %2340 = vmatprep.subr.mxu0 0.0
    %2341 = vmatpush1.msra.mxu0 0.0
    %2342 = vmatprep.subr.mxu0 0.0
    %2343 = vmatpush1.msra.mxu0 0.0
    %2344 = vmatprep.subr.mxu0 0.0
    %2345 = vmatpush1.msra.mxu0 0.0
    %2346 = vmatprep.subr.mxu0 0.0
    %2347 = vmatpush1.msra.mxu0 0.0
    %2348 = vmatprep.subr.mxu0 0.0
    %2349 = vmatpush1.msra.mxu0 0.0
    %2350 = vmatprep.subr.mxu0 0.0
    %2351 = vmatpush1.msra.mxu0 0.0
    %2352 = vmatprep.subr.mxu0 0.0
    %2353 = vmatpush1.msra.mxu0 0.0
    %2354 = vmatprep.subr.mxu0 0.0
    %2355 = vmatpush1.msra.mxu0 0.0
    %2356 = vmatprep.subr.mxu0 0.0
    %2357 = vmatpush1.msra.mxu0 0.0
    %2358 = vmatprep.subr.mxu0 0.0
    %2359 = vmatpush1.msra.mxu0 0.0
    %2360 = vmatprep.mubr.f32.mxu0 0.0
    %2361 = vmatmul.mubr.f32.gmra.mrb[0].mxu0 %v2294
    %v2362 = vpop.f32.mrb[0].mxu0
    %v2363 = vadd.f32 0.0, %v2362
    %v2364 = vpop.f32.mrb[0].mxu0
    %2365 = vdwg.mxu0
    %v2366 = vcombine.low %v1852, %v1998
    %v2367 = vcombine.high %v1852, %v1998
    %v2369 = vunpack.c.l.s4 1983009808
    %v2370 = vunpack.c.0.s8 %v2369
    %v2371 = vlaneseq
    %v2372 = vshrl.u32 %v2371, 7
    %v2373 = vsub.s32 %v2370, %v2372
    %v2374 = vrot.slane %v2366, %v2373
    %v2376 = vunpack.c.l.s4 1983009808
    %v2377 = vunpack.c.0.s8 %v2376
    %v2378 = vlaneseq
    %v2379 = vshrl.u32 %v2378, 7
    %v2380 = vsub.s32 %v2377, %v2379
    %v2381 = vrot.slane %v2367, %v2380
    %v2382 = vcombine.low %v1925, %v2071
    %v2383 = vcombine.high %v1925, %v2071
    %v2385 = vunpack.c.l.s4 1983009808
    %v2386 = vunpack.c.0.s8 %v2385
    %v2387 = vlaneseq
    %v2388 = vshrl.u32 %v2387, 7
    %v2389 = vsub.s32 %v2386, %v2388
    %v2390 = vrot.slane %v2382, %v2389
    %v2392 = vunpack.c.l.s4 1983009808
    %v2393 = vunpack.c.0.s8 %v2392
    %v2394 = vlaneseq
    %v2395 = vshrl.u32 %v2394, 7
    %v2396 = vsub.s32 %v2393, %v2395
    %v2397 = vrot.slane %v2383, %v2396
    %v2398 = vcombine.low %v2374, %v2390
    %v2399 = vcombine.high %v2374, %v2390
    %v2401 = vunpack.c.l.s4 1934713408
    %v2402 = vunpack.c.0.s8 %v2401
    %v2403 = vlaneseq
    %v2404 = vshrl.u32 %v2403, 7
    %v2405 = vsub.s32 %v2402, %v2404
    %v2406 = vrot.slane %v2398, %v2405
    %v2408 = vunpack.c.l.s4 1934713408
    %v2409 = vunpack.c.0.s8 %v2408
    %v2410 = vlaneseq
    %v2411 = vshrl.u32 %v2410, 7
    %v2412 = vsub.s32 %v2409, %v2411
    %v2413 = vrot.slane %v2399, %v2412
    %v2414 = vcombine.low %v2381, %v2397
    %v2415 = vcombine.high %v2381, %v2397
    %v2417 = vunpack.c.l.s4 1934713408
    %v2418 = vunpack.c.0.s8 %v2417
    %v2419 = vlaneseq
    %v2420 = vshrl.u32 %v2419, 7
    %v2421 = vsub.s32 %v2418, %v2420
    %v2422 = vrot.slane %v2414, %v2421
    %v2424 = vunpack.c.l.s4 1934713408
    %v2425 = vunpack.c.0.s8 %v2424
    %v2426 = vlaneseq
    %v2427 = vshrl.u32 %v2426, 7
    %v2428 = vsub.s32 %v2425, %v2427
    %v2429 = vrot.slane %v2415, %v2428
    %v2430 = vcombine.high %v2406, 0.0
    %v2431 = vcombine.high %v2413, 0.0
    %v2432 = vcombine.high %v2422, 0.0
    %v2433 = vcombine.high %v2429, 0.0
    %v2434 = vcombine.low %v2144, %v2290
    %v2435 = vcombine.high %v2144, %v2290
    %v2437 = vunpack.c.l.s4 1983009808
    %v2438 = vunpack.c.0.s8 %v2437
    %v2439 = vlaneseq
    %v2440 = vshrl.u32 %v2439, 7
    %v2441 = vsub.s32 %v2438, %v2440
    %v2442 = vrot.slane %v2434, %v2441
    %v2444 = vunpack.c.l.s4 1983009808
    %v2445 = vunpack.c.0.s8 %v2444
    %v2446 = vlaneseq
    %v2447 = vshrl.u32 %v2446, 7
    %v2448 = vsub.s32 %v2445, %v2447
    %v2449 = vrot.slane %v2435, %v2448
    %v2450 = vcombine.low %v2217, %v2363
    %v2451 = vcombine.high %v2217, %v2363
    %v2453 = vunpack.c.l.s4 1983009808
    %v2454 = vunpack.c.0.s8 %v2453
    %v2455 = vlaneseq
    %v2456 = vshrl.u32 %v2455, 7
    %v2457 = vsub.s32 %v2454, %v2456
    %v2458 = vrot.slane %v2450, %v2457
    %v2460 = vunpack.c.l.s4 1983009808
    %v2461 = vunpack.c.0.s8 %v2460
    %v2462 = vlaneseq
    %v2463 = vshrl.u32 %v2462, 7
    %v2464 = vsub.s32 %v2461, %v2463
    %v2465 = vrot.slane %v2451, %v2464
    %v2466 = vcombine.low %v2442, %v2458
    %v2467 = vcombine.high %v2442, %v2458
    %v2469 = vunpack.c.l.s4 1934713408
    %v2470 = vunpack.c.0.s8 %v2469
    %v2471 = vlaneseq
    %v2472 = vshrl.u32 %v2471, 7
    %v2473 = vsub.s32 %v2470, %v2472
    %v2474 = vrot.slane %v2466, %v2473
    %v2476 = vunpack.c.l.s4 1934713408
    %v2477 = vunpack.c.0.s8 %v2476
    %v2478 = vlaneseq
    %v2479 = vshrl.u32 %v2478, 7
    %v2480 = vsub.s32 %v2477, %v2479
    %v2481 = vrot.slane %v2467, %v2480
    %v2482 = vcombine.low %v2449, %v2465
    %v2483 = vcombine.high %v2449, %v2465
    %v2485 = vunpack.c.l.s4 1934713408
    %v2486 = vunpack.c.0.s8 %v2485
    %v2487 = vlaneseq
    %v2488 = vshrl.u32 %v2487, 7
    %v2489 = vsub.s32 %v2486, %v2488
    %v2490 = vrot.slane %v2482, %v2489
    %v2492 = vunpack.c.l.s4 1934713408
    %v2493 = vunpack.c.0.s8 %v2492
    %v2494 = vlaneseq
    %v2495 = vshrl.u32 %v2494, 7
    %v2496 = vsub.s32 %v2493, %v2495
    %v2497 = vrot.slane %v2483, %v2496
    %v2498 = vcombine.high %v2474, 0.0
    %v2499 = vcombine.high %v2481, 0.0
    %v2500 = vcombine.high %v2490, 0.0
    %v2501 = vcombine.high %v2497, 0.0
    %v2502 = vcombine.low %v2406, %v2413
    %v2504 = vunpack.c.l.s4 1983009808
    %v2505 = vunpack.c.0.s8 %v2504
    %v2506 = vlaneseq
    %v2507 = vshrl.u32 %v2506, 7
    %v2508 = vsub.s32 %v2505, %v2507
    %v2509 = vrot.slane %v2502, %v2508
    %v2510 = vcombine.low %v2430, %v2431
    %v2512 = vunpack.c.l.s4 1983009808
    %v2513 = vunpack.c.0.s8 %v2512
    %v2514 = vlaneseq
    %v2515 = vshrl.u32 %v2514, 7
    %v2516 = vsub.s32 %v2513, %v2515
    %v2517 = vrot.slane %v2510, %v2516
    %v2518 = vcombine.low %v2422, %v2429
    %v2520 = vunpack.c.l.s4 1983009808
    %v2521 = vunpack.c.0.s8 %v2520
    %v2522 = vlaneseq
    %v2523 = vshrl.u32 %v2522, 7
    %v2524 = vsub.s32 %v2521, %v2523
    %v2525 = vrot.slane %v2518, %v2524
    %v2526 = vcombine.low %v2432, %v2433
    %v2528 = vunpack.c.l.s4 1983009808
    %v2529 = vunpack.c.0.s8 %v2528
    %v2530 = vlaneseq
    %v2531 = vshrl.u32 %v2530, 7
    %v2532 = vsub.s32 %v2529, %v2531
    %v2533 = vrot.slane %v2526, %v2532
    %v2534 = vcombine.low %v2509, %v2517
    %v2535 = vcombine.high %v2509, %v2517
    %v2537 = vunpack.c.l.s4 1934713408
    %v2538 = vunpack.c.0.s8 %v2537
    %v2539 = vlaneseq
    %v2540 = vshrl.u32 %v2539, 7
    %v2541 = vsub.s32 %v2538, %v2540
    %v2542 = vrot.slane %v2534, %v2541
    %v2544 = vunpack.c.l.s4 1934713408
    %v2545 = vunpack.c.0.s8 %v2544
    %v2546 = vlaneseq
    %v2547 = vshrl.u32 %v2546, 7
    %v2548 = vsub.s32 %v2545, %v2547
    %v2549 = vrot.slane %v2535, %v2548
    %v2550 = vcombine.low %v2525, %v2533
    %v2551 = vcombine.high %v2525, %v2533
    %v2553 = vunpack.c.l.s4 1934713408
    %v2554 = vunpack.c.0.s8 %v2553
    %v2555 = vlaneseq
    %v2556 = vshrl.u32 %v2555, 7
    %v2557 = vsub.s32 %v2554, %v2556
    %v2558 = vrot.slane %v2550, %v2557
    %v2560 = vunpack.c.l.s4 1934713408
    %v2561 = vunpack.c.0.s8 %v2560
    %v2562 = vlaneseq
    %v2563 = vshrl.u32 %v2562, 7
    %v2564 = vsub.s32 %v2561, %v2563
    %v2565 = vrot.slane %v2551, %v2564
    %v2566 = vcombine.low %v2542, %v2558
    %v2567 = vcombine.high %v2542, %v2558
    %v2568 = vcombine.low %v2549, %v2565
    %v2569 = vcombine.high %v2549, %v2565
    %v2570 = vcombine.low %v2474, %v2481
    %v2572 = vunpack.c.l.s4 1983009808
    %v2573 = vunpack.c.0.s8 %v2572
    %v2574 = vlaneseq
    %v2575 = vshrl.u32 %v2574, 7
    %v2576 = vsub.s32 %v2573, %v2575
    %v2577 = vrot.slane %v2570, %v2576
    %v2578 = vcombine.low %v2498, %v2499
    %v2580 = vunpack.c.l.s4 1983009808
    %v2581 = vunpack.c.0.s8 %v2580
    %v2582 = vlaneseq
    %v2583 = vshrl.u32 %v2582, 7
    %v2584 = vsub.s32 %v2581, %v2583
    %v2585 = vrot.slane %v2578, %v2584
    %v2586 = vcombine.low %v2490, %v2497
    %v2588 = vunpack.c.l.s4 1983009808
    %v2589 = vunpack.c.0.s8 %v2588
    %v2590 = vlaneseq
    %v2591 = vshrl.u32 %v2590, 7
    %v2592 = vsub.s32 %v2589, %v2591
    %v2593 = vrot.slane %v2586, %v2592
    %v2594 = vcombine.low %v2500, %v2501
    %v2596 = vunpack.c.l.s4 1983009808
    %v2597 = vunpack.c.0.s8 %v2596
    %v2598 = vlaneseq
    %v2599 = vshrl.u32 %v2598, 7
    %v2600 = vsub.s32 %v2597, %v2599
    %v2601 = vrot.slane %v2594, %v2600
    %v2602 = vcombine.low %v2577, %v2585
    %v2603 = vcombine.high %v2577, %v2585
    %v2605 = vunpack.c.l.s4 1934713408
    %v2606 = vunpack.c.0.s8 %v2605
    %v2607 = vlaneseq
    %v2608 = vshrl.u32 %v2607, 7
    %v2609 = vsub.s32 %v2606, %v2608
    %v2610 = vrot.slane %v2602, %v2609
    %v2612 = vunpack.c.l.s4 1934713408
    %v2613 = vunpack.c.0.s8 %v2612
    %v2614 = vlaneseq
    %v2615 = vshrl.u32 %v2614, 7
    %v2616 = vsub.s32 %v2613, %v2615
    %v2617 = vrot.slane %v2603, %v2616
    %v2618 = vcombine.low %v2593, %v2601
    %v2619 = vcombine.high %v2593, %v2601
    %v2621 = vunpack.c.l.s4 1934713408
    %v2622 = vunpack.c.0.s8 %v2621
    %v2623 = vlaneseq
    %v2624 = vshrl.u32 %v2623, 7
    %v2625 = vsub.s32 %v2622, %v2624
    %v2626 = vrot.slane %v2618, %v2625
    %v2628 = vunpack.c.l.s4 1934713408
    %v2629 = vunpack.c.0.s8 %v2628
    %v2630 = vlaneseq
    %v2631 = vshrl.u32 %v2630, 7
    %v2632 = vsub.s32 %v2629, %v2631
    %v2633 = vrot.slane %v2619, %v2632
    %v2634 = vcombine.low %v2610, %v2626
    %v2635 = vcombine.high %v2610, %v2626
    %v2636 = vcombine.low %v2617, %v2633
    %v2637 = vcombine.high %v2617, %v2633
    %2640 = vrot.lane.b32.xlu0 %v2567, 8
    %v2641 = vpop.permute.xlu0 %2640
    %2642 = vrot.lane.b32.xlu0 %v2635, 8
    %v2643 = vpop.permute.xlu0 %2642
    %2648 = vrot.lane.b32.xlu0 %v2568, 16
    %v2649 = vpop.permute.xlu0 %2648
    %2650 = vrot.lane.b32.xlu0 %v2636, 16
    %v2651 = vpop.permute.xlu0 %2650
    %2656 = vrot.lane.b32.xlu0 %v2569, 24
    %v2657 = vpop.permute.xlu0 %2656
    %2658 = vrot.lane.b32.xlu0 %v2637, 24
    %v2659 = vpop.permute.xlu0 %2658
    %v2662 = vsel %vm1085, %v2566, %v2641
    %v2663 = vsel %vm1085, %v2634, %v2643
    %vm2664 = vcmask 130048
    %v2665 = vsel %vm2664, %v2662, %v2649
    %v2666 = vsel %vm2664, %v2663, %v2651
    %vm2667 = vcmask 195584
    %v2668 = vsel %vm2667, %v2665, %v2657
    %v2669 = vsel %vm2667, %v2666, %v2659
    %v2670 = vlaneseq
    %v2671 = vshrl.u32 %v2670, 7
    %v2672 = vsub.s32 2, %v2671
    %v2673 = vrot.slane %v81, %v2672
    %v2675 = vsel %vm86, %v2668, 0
    %v2678 = vsel %vm86, %v2669, 0
    %2680 = vmatprep.subr.mxu0 0.0
    %2681 = vmatpush1.msra.mxu0 %v69
    %2682 = vmatprep.subr.mxu0 0.0
    %2683 = vmatpush1.msra.mxu0 %v70
    %2684 = vmatprep.subr.mxu0 0.0
    %2685 = vmatpush1.msra.mxu0 %v71
    %2686 = vmatprep.subr.mxu0 0.0
    %2687 = vmatpush1.msra.mxu0 %v72
    %2688 = vmatprep.subr.mxu0 0.0
    %2689 = vmatpush1.msra.mxu0 0.0
    %2690 = vmatprep.subr.mxu0 0.0
    %2691 = vmatpush1.msra.mxu0 0.0
    %2692 = vmatprep.subr.mxu0 0.0
    %2693 = vmatpush1.msra.mxu0 0.0
    %2694 = vmatprep.subr.mxu0 0.0
    %2695 = vmatpush1.msra.mxu0 0.0
    %2696 = vmatprep.subr.mxu0 0.0
    %2697 = vmatpush1.msra.mxu0 0.0
    %2698 = vmatprep.subr.mxu0 0.0
    %2699 = vmatpush1.msra.mxu0 0.0
    %2700 = vmatprep.subr.mxu0 0.0
    %2701 = vmatpush1.msra.mxu0 0.0
    %2702 = vmatprep.subr.mxu0 0.0
    %2703 = vmatpush1.msra.mxu0 0.0
    %2704 = vmatprep.subr.mxu0 0.0
    %2705 = vmatpush1.msra.mxu0 0.0
    %2706 = vmatprep.subr.mxu0 0.0
    %2707 = vmatpush1.msra.mxu0 0.0
    %2708 = vmatprep.subr.mxu0 0.0
    %2709 = vmatpush1.msra.mxu0 0.0
    %2710 = vmatprep.subr.mxu0 0.0
    %2711 = vmatpush1.msra.mxu0 0.0
    %2712 = vmatprep.subr.mxu0 0.0
    %2713 = vmatpush1.msra.mxu0 0.0
    %2714 = vmatprep.subr.mxu0 0.0
    %2715 = vmatpush1.msra.mxu0 0.0
    %2716 = vmatprep.subr.mxu0 0.0
    %2717 = vmatpush1.msra.mxu0 0.0
    %2718 = vmatprep.subr.mxu0 0.0
    %2719 = vmatpush1.msra.mxu0 0.0
    %2720 = vmatprep.subr.mxu0 0.0
    %2721 = vmatpush1.msra.mxu0 0.0
    %2722 = vmatprep.subr.mxu0 0.0
    %2723 = vmatpush1.msra.mxu0 0.0
    %2724 = vmatprep.subr.mxu0 0.0
    %2725 = vmatpush1.msra.mxu0 0.0
    %2726 = vmatprep.subr.mxu0 0.0
    %2727 = vmatpush1.msra.mxu0 0.0
    %2728 = vmatprep.subr.mxu0 0.0
    %2729 = vmatpush1.msra.mxu0 0.0
    %2730 = vmatprep.subr.mxu0 0.0
    %2731 = vmatpush1.msra.mxu0 0.0
    %2732 = vmatprep.subr.mxu0 0.0
    %2733 = vmatpush1.msra.mxu0 0.0
    %2734 = vmatprep.subr.mxu0 0.0
    %2735 = vmatpush1.msra.mxu0 0.0
    %2736 = vmatprep.subr.mxu0 0.0
    %2737 = vmatpush1.msra.mxu0 0.0
    %2738 = vmatprep.subr.mxu0 0.0
    %2739 = vmatpush1.msra.mxu0 0.0
    %2740 = vmatprep.subr.mxu0 0.0
    %2741 = vmatpush1.msra.mxu0 0.0
    %2742 = vmatprep.subr.mxu0 0.0
    %2743 = vmatpush1.msra.mxu0 0.0
    %2744 = vmatprep.mubr.f32.mxu0 0.0
    %2745 = vmatmul.mubr.f32.gmra.mrb[0].mxu0 %v2675
    %v2746 = vpop.f32.mrb[0].mxu0
    %v2747 = vadd.f32 %v2673, %v2746
    %v2748 = vpop.f32.mrb[0].mxu0
    %2749 = vmatprep.mubr.f32.mxu0 0.0
    %2750 = vmatmul.mubr.f32.gmra.mrb[0].mxu0 %v2678
    %v2751 = vpop.f32.mrb[0].mxu0
    %v2752 = vadd.f32 %v2673, %v2751
    %v2753 = vpop.f32.mrb[0].mxu0
    %2754 = vdwg.mxu0
    %v2755 = vadd.f32 %v55, %v2747
    %v2756 = vadd.f32 %v56, %v2752
    %v2757 = vsel %vm86, %v2755, 0.0
    %2758 = vadd.xlane.f32.xlu0 %v2757
    %v2759 = vpop.xlane.xlu0 %2758
    %v2760 = vsel %vm86, %v2756, 0.0
    %2761 = vadd.xlane.f32.xlu0 %v2760
    %v2762 = vpop.xlane.xlu0 %2761
    %v2763 = vrcp.pop 32.0
    %v2764 = vmul.f32 %v2759, %v2763
    %v2765 = vmul.f32 %v2762, %v2763
    %v2766 = vsub.f32 %v2755, %v2764
    %v2767 = vsub.f32 %v2756, %v2765
    %v2768 = vmul.f32 %v2766, %v2766
    %v2769 = vmul.f32 %v2767, %v2767
    %v2770 = vsel %vm86, %v2768, 0.0
    %2771 = vadd.xlane.f32.xlu0 %v2770
    %v2772 = vpop.xlane.xlu0 %2771
    %v2773 = vsel %vm86, %v2769, 0.0
    %2774 = vadd.xlane.f32.xlu0 %v2773
    %v2775 = vpop.xlane.xlu0 %2774
    %v2776 = vmul.f32 %v2772, %v2763
    %v2777 = vmul.f32 %v2775, %v2763
    %v2778 = vadd.f32 %v2776, 1e-05
    %v2779 = vadd.f32 %v2777, 1e-05
    %v2780 = vrsqrt.pop %v2778
    %v2781 = vrsqrt.pop %v2779
    %v2782 = vmul.f32 %v2766, %v2780
    %v2783 = vmul.f32 %v2767, %v2781
    %v2784 = vlaneseq
    %v2785 = vshrl.u32 %v2784, 7
    %v2786 = vsub.s32 3, %v2785
    %v2787 = vrot.slane %v81, %v2786
    %v2788 = vmul.f32 %v2782, %v2787
    %v2789 = vmul.f32 %v2783, %v2787
    %v2790 = vlaneseq
    %v2791 = vshrl.u32 %v2790, 7
    %v2792 = vsub.s32 4, %v2791
    %v2793 = vrot.slane %v81, %v2792
    %v2794 = vadd.f32 %v2788, %v2793
    %v2795 = vadd.f32 %v2789, %v2793
    %2800 = vrot.lane.b32.xlu0 %v61, 32
    %v2801 = vpop.permute.xlu0 %2800
    %2802 = vrot.lane.b32.xlu0 %v62, 32
    %v2803 = vpop.permute.xlu0 %2802
    %2804 = vrot.lane.b32.xlu0 %v63, 32
    %v2805 = vpop.permute.xlu0 %2804
    %2806 = vrot.lane.b32.xlu0 %v64, 32
    %v2807 = vpop.permute.xlu0 %2806
    %2813 = vrot.lane.b32.xlu0 %v2673, 96
    %v2814 = vpop.permute.xlu0 %2813
    %v2817 = vsel %vm86, %v2794, 0
    %v2820 = vsel %vm86, %v2795, 0
    %2822 = vmatprep.subr.mxu0 0.0
    %2823 = vmatpush1.msra.mxu0 %v2801
    %2824 = vmatprep.subr.mxu0 0.0
    %2825 = vmatpush1.msra.mxu0 %v2803
    %2826 = vmatprep.subr.mxu0 0.0
    %2827 = vmatpush1.msra.mxu0 %v2805
    %2828 = vmatprep.subr.mxu0 0.0
    %2829 = vmatpush1.msra.mxu0 %v2807
    %2830 = vmatprep.subr.mxu0 0.0
    %2831 = vmatpush1.msra.mxu0 0.0
    %2832 = vmatprep.subr.mxu0 0.0
    %2833 = vmatpush1.msra.mxu0 0.0
    %2834 = vmatprep.subr.mxu0 0.0
    %2835 = vmatpush1.msra.mxu0 0.0
    %2836 = vmatprep.subr.mxu0 0.0
    %2837 = vmatpush1.msra.mxu0 0.0
    %2838 = vmatprep.subr.mxu0 0.0
    %2839 = vmatpush1.msra.mxu0 0.0
    %2840 = vmatprep.subr.mxu0 0.0
    %2841 = vmatpush1.msra.mxu0 0.0
    %2842 = vmatprep.subr.mxu0 0.0
    %2843 = vmatpush1.msra.mxu0 0.0
    %2844 = vmatprep.subr.mxu0 0.0
    %2845 = vmatpush1.msra.mxu0 0.0
    %2846 = vmatprep.subr.mxu0 0.0
    %2847 = vmatpush1.msra.mxu0 0.0
    %2848 = vmatprep.subr.mxu0 0.0
    %2849 = vmatpush1.msra.mxu0 0.0
    %2850 = vmatprep.subr.mxu0 0.0
    %2851 = vmatpush1.msra.mxu0 0.0
    %2852 = vmatprep.subr.mxu0 0.0
    %2853 = vmatpush1.msra.mxu0 0.0
    %2854 = vmatprep.subr.mxu0 0.0
    %2855 = vmatpush1.msra.mxu0 0.0
    %2856 = vmatprep.subr.mxu0 0.0
    %2857 = vmatpush1.msra.mxu0 0.0
    %2858 = vmatprep.subr.mxu0 0.0
    %2859 = vmatpush1.msra.mxu0 0.0
    %2860 = vmatprep.subr.mxu0 0.0
    %2861 = vmatpush1.msra.mxu0 0.0
    %2862 = vmatprep.subr.mxu0 0.0
    %2863 = vmatpush1.msra.mxu0 0.0
    %2864 = vmatprep.subr.mxu0 0.0
    %2865 = vmatpush1.msra.mxu0 0.0
    %2866 = vmatprep.subr.mxu0 0.0
    %2867 = vmatpush1.msra.mxu0 0.0
    %2868 = vmatprep.subr.mxu0 0.0
    %2869 = vmatpush1.msra.mxu0 0.0
    %2870 = vmatprep.subr.mxu0 0.0
    %2871 = vmatpush1.msra.mxu0 0.0
    %2872 = vmatprep.subr.mxu0 0.0
    %2873 = vmatpush1.msra.mxu0 0.0
    %2874 = vmatprep.subr.mxu0 0.0
    %2875 = vmatpush1.msra.mxu0 0.0
    %2876 = vmatprep.subr.mxu0 0.0
    %2877 = vmatpush1.msra.mxu0 0.0
    %2878 = vmatprep.subr.mxu0 0.0
    %2879 = vmatpush1.msra.mxu0 0.0
    %2880 = vmatprep.subr.mxu0 0.0
    %2881 = vmatpush1.msra.mxu0 0.0
    %2882 = vmatprep.subr.mxu0 0.0
    %2883 = vmatpush1.msra.mxu0 0.0
    %2884 = vmatprep.subr.mxu0 0.0
    %2885 = vmatpush1.msra.mxu0 0.0
    %2886 = vmatprep.mubr.f32.mxu0 0.0
    %2887 = vmatmul.mubr.f32.gmra.mrb[0].mxu0 %v2817
    %v2888 = vpop.f32.mrb[0].mxu0
    %v2889 = vadd.f32 %v2814, %v2888
    %v2890 = vpop.f32.mrb[0].mxu0
    %2891 = vmatprep.mubr.f32.mxu0 0.0
    %2892 = vmatmul.mubr.f32.gmra.mrb[0].mxu0 %v2820
    %v2893 = vpop.f32.mrb[0].mxu0
    %v2894 = vadd.f32 %v2814, %v2893
    %v2895 = vpop.f32.mrb[0].mxu0
    %2896 = vdwg.mxu0
    %v2897 = vlaneseq
    %v2898 = vshrl.u32 %v2897, 7
    %v2899 = vsub.s32 1, %v2898
    %v2900 = vrot.slane %v81, %v2899
    %v2902 = vsel %vm86, %v57, 0
    %v2905 = vsel %vm86, %v58, 0
    %2907 = vmatprep.subr.mxu0 0.0
    %2908 = vmatpush1.msra.mxu0 %v65
    %2909 = vmatprep.subr.mxu0 0.0
    %2910 = vmatpush1.msra.mxu0 %v66
    %2911 = vmatprep.subr.mxu0 0.0
    %2912 = vmatpush1.msra.mxu0 %v67
    %2913 = vmatprep.subr.mxu0 0.0
    %2914 = vmatpush1.msra.mxu0 %v68
    %2915 = vmatprep.subr.mxu0 0.0
    %2916 = vmatpush1.msra.mxu0 0.0
    %2917 = vmatprep.subr.mxu0 0.0
    %2918 = vmatpush1.msra.mxu0 0.0
    %2919 = vmatprep.subr.mxu0 0.0
    %2920 = vmatpush1.msra.mxu0 0.0
    %2921 = vmatprep.subr.mxu0 0.0
    %2922 = vmatpush1.msra.mxu0 0.0
    %2923 = vmatprep.subr.mxu0 0.0
    %2924 = vmatpush1.msra.mxu0 0.0
    %2925 = vmatprep.subr.mxu0 0.0
    %2926 = vmatpush1.msra.mxu0 0.0
    %2927 = vmatprep.subr.mxu0 0.0
    %2928 = vmatpush1.msra.mxu0 0.0
    %2929 = vmatprep.subr.mxu0 0.0
    %2930 = vmatpush1.msra.mxu0 0.0
    %2931 = vmatprep.subr.mxu0 0.0
    %2932 = vmatpush1.msra.mxu0 0.0
    %2933 = vmatprep.subr.mxu0 0.0
    %2934 = vmatpush1.msra.mxu0 0.0
    %2935 = vmatprep.subr.mxu0 0.0
    %2936 = vmatpush1.msra.mxu0 0.0
    %2937 = vmatprep.subr.mxu0 0.0
    %2938 = vmatpush1.msra.mxu0 0.0
    %2939 = vmatprep.subr.mxu0 0.0
    %2940 = vmatpush1.msra.mxu0 0.0
    %2941 = vmatprep.subr.mxu0 0.0
    %2942 = vmatpush1.msra.mxu0 0.0
    %2943 = vmatprep.subr.mxu0 0.0
    %2944 = vmatpush1.msra.mxu0 0.0
    %2945 = vmatprep.subr.mxu0 0.0
    %2946 = vmatpush1.msra.mxu0 0.0
    %2947 = vmatprep.subr.mxu0 0.0
    %2948 = vmatpush1.msra.mxu0 0.0
    %2949 = vmatprep.subr.mxu0 0.0
    %2950 = vmatpush1.msra.mxu0 0.0
    %2951 = vmatprep.subr.mxu0 0.0
    %2952 = vmatpush1.msra.mxu0 0.0
    %2953 = vmatprep.subr.mxu0 0.0
    %2954 = vmatpush1.msra.mxu0 0.0
    %2955 = vmatprep.subr.mxu0 0.0
    %2956 = vmatpush1.msra.mxu0 0.0
    %2957 = vmatprep.subr.mxu0 0.0
    %2958 = vmatpush1.msra.mxu0 0.0
    %2959 = vmatprep.subr.mxu0 0.0
    %2960 = vmatpush1.msra.mxu0 0.0
    %2961 = vmatprep.subr.mxu0 0.0
    %2962 = vmatpush1.msra.mxu0 0.0
    %2963 = vmatprep.subr.mxu0 0.0
    %2964 = vmatpush1.msra.mxu0 0.0
    %2965 = vmatprep.subr.mxu0 0.0
    %2966 = vmatpush1.msra.mxu0 0.0
    %2967 = vmatprep.subr.mxu0 0.0
    %2968 = vmatpush1.msra.mxu0 0.0
    %2969 = vmatprep.subr.mxu0 0.0
    %2970 = vmatpush1.msra.mxu0 0.0
    %2971 = vmatprep.mubr.f32.mxu0 0.0
    %2972 = vmatmul.mubr.f32.gmra.mrb[0].mxu0 %v2902
    %v2973 = vpop.f32.mrb[0].mxu0
    %v2974 = vadd.f32 %v2900, %v2973
    %v2975 = vpop.f32.mrb[0].mxu0
    %2976 = vmatprep.mubr.f32.mxu0 0.0
    %2977 = vmatmul.mubr.f32.gmra.mrb[0].mxu0 %v2905
    %v2978 = vpop.f32.mrb[0].mxu0
    %v2979 = vadd.f32 %v2900, %v2978
    %v2980 = vpop.f32.mrb[0].mxu0
    %2981 = vdwg.mxu0
    %2984 = vrot.lane.b32.xlu0 %v2889, 120
    %v2985 = vpop.permute.xlu0 %2984
    %2986 = vrot.lane.b32.xlu0 %v2894, 120
    %v2987 = vpop.permute.xlu0 %2986
    %2990 = vrot.lane.b32.xlu0 %v2889, 112
    %v2991 = vpop.permute.xlu0 %2990
    %2992 = vrot.lane.b32.xlu0 %v2894, 112
    %v2993 = vpop.permute.xlu0 %2992
    %2996 = vrot.lane.b32.xlu0 %v2889, 104
    %v2997 = vpop.permute.xlu0 %2996
    %2998 = vrot.lane.b32.xlu0 %v2894, 104
    %v2999 = vpop.permute.xlu0 %2998
    %v3002 = vcombine.low %v2889, %v2991
    %v3003 = vcombine.high %v2889, %v2991
    %v3005 = vunpack.c.l.s4 1983009808
    %v3006 = vunpack.c.0.s8 %v3005
    %v3007 = vlaneseq
    %v3008 = vshrl.u32 %v3007, 7
    %v3009 = vsub.s32 %v3006, %v3008
    %v3010 = vrot.slane %v3002, %v3009
    %v3012 = vunpack.c.l.s4 1983009808
    %v3013 = vunpack.c.0.s8 %v3012
    %v3014 = vlaneseq
    %v3015 = vshrl.u32 %v3014, 7
    %v3016 = vsub.s32 %v3013, %v3015
    %v3017 = vrot.slane %v3003, %v3016
    %v3018 = vcombine.low %v2985, %v2997
    %v3019 = vcombine.high %v2985, %v2997
    %v3021 = vunpack.c.l.s4 1983009808
    %v3022 = vunpack.c.0.s8 %v3021
    %v3023 = vlaneseq
    %v3024 = vshrl.u32 %v3023, 7
    %v3025 = vsub.s32 %v3022, %v3024
    %v3026 = vrot.slane %v3018, %v3025
    %v3028 = vunpack.c.l.s4 1983009808
    %v3029 = vunpack.c.0.s8 %v3028
    %v3030 = vlaneseq
    %v3031 = vshrl.u32 %v3030, 7
    %v3032 = vsub.s32 %v3029, %v3031
    %v3033 = vrot.slane %v3019, %v3032
    %v3034 = vcombine.low %v3010, %v3026
    %v3035 = vcombine.high %v3010, %v3026
    %v3037 = vunpack.c.l.s4 1934713408
    %v3038 = vunpack.c.0.s8 %v3037
    %v3039 = vlaneseq
    %v3040 = vshrl.u32 %v3039, 7
    %v3041 = vsub.s32 %v3038, %v3040
    %v3042 = vrot.slane %v3034, %v3041
    %v3044 = vunpack.c.l.s4 1934713408
    %v3045 = vunpack.c.0.s8 %v3044
    %v3046 = vlaneseq
    %v3047 = vshrl.u32 %v3046, 7
    %v3048 = vsub.s32 %v3045, %v3047
    %v3049 = vrot.slane %v3035, %v3048
    %v3050 = vcombine.low %v3017, %v3033
    %v3051 = vcombine.high %v3017, %v3033
    %v3053 = vunpack.c.l.s4 1934713408
    %v3054 = vunpack.c.0.s8 %v3053
    %v3055 = vlaneseq
    %v3056 = vshrl.u32 %v3055, 7
    %v3057 = vsub.s32 %v3054, %v3056
    %v3058 = vrot.slane %v3050, %v3057
    %v3060 = vunpack.c.l.s4 1934713408
    %v3061 = vunpack.c.0.s8 %v3060
    %v3062 = vlaneseq
    %v3063 = vshrl.u32 %v3062, 7
    %v3064 = vsub.s32 %v3061, %v3063
    %v3065 = vrot.slane %v3051, %v3064
    %v3066 = vcombine.high %v3042, 0.0
    %v3067 = vcombine.high %v3049, 0.0
    %v3068 = vcombine.high %v3058, 0.0
    %v3069 = vcombine.high %v3065, 0.0
    %v3070 = vcombine.low %v2894, %v2993
    %v3071 = vcombine.high %v2894, %v2993
    %v3073 = vunpack.c.l.s4 1983009808
    %v3074 = vunpack.c.0.s8 %v3073
    %v3075 = vlaneseq
    %v3076 = vshrl.u32 %v3075, 7
    %v3077 = vsub.s32 %v3074, %v3076
    %v3078 = vrot.slane %v3070, %v3077
    %v3080 = vunpack.c.l.s4 1983009808
    %v3081 = vunpack.c.0.s8 %v3080
    %v3082 = vlaneseq
    %v3083 = vshrl.u32 %v3082, 7
    %v3084 = vsub.s32 %v3081, %v3083
    %v3085 = vrot.slane %v3071, %v3084
    %v3086 = vcombine.low %v2987, %v2999
    %v3087 = vcombine.high %v2987, %v2999
    %v3089 = vunpack.c.l.s4 1983009808
    %v3090 = vunpack.c.0.s8 %v3089
    %v3091 = vlaneseq
    %v3092 = vshrl.u32 %v3091, 7
    %v3093 = vsub.s32 %v3090, %v3092
    %v3094 = vrot.slane %v3086, %v3093
    %v3096 = vunpack.c.l.s4 1983009808
    %v3097 = vunpack.c.0.s8 %v3096
    %v3098 = vlaneseq
    %v3099 = vshrl.u32 %v3098, 7
    %v3100 = vsub.s32 %v3097, %v3099
    %v3101 = vrot.slane %v3087, %v3100
    %v3102 = vcombine.low %v3078, %v3094
    %v3103 = vcombine.high %v3078, %v3094
    %v3105 = vunpack.c.l.s4 1934713408
    %v3106 = vunpack.c.0.s8 %v3105
    %v3107 = vlaneseq
    %v3108 = vshrl.u32 %v3107, 7
    %v3109 = vsub.s32 %v3106, %v3108
    %v3110 = vrot.slane %v3102, %v3109
    %v3112 = vunpack.c.l.s4 1934713408
    %v3113 = vunpack.c.0.s8 %v3112
    %v3114 = vlaneseq
    %v3115 = vshrl.u32 %v3114, 7
    %v3116 = vsub.s32 %v3113, %v3115
    %v3117 = vrot.slane %v3103, %v3116
    %v3118 = vcombine.low %v3085, %v3101
    %v3119 = vcombine.high %v3085, %v3101
    %v3121 = vunpack.c.l.s4 1934713408
    %v3122 = vunpack.c.0.s8 %v3121
    %v3123 = vlaneseq
    %v3124 = vshrl.u32 %v3123, 7
    %v3125 = vsub.s32 %v3122, %v3124
    %v3126 = vrot.slane %v3118, %v3125
    %v3128 = vunpack.c.l.s4 1934713408
    %v3129 = vunpack.c.0.s8 %v3128
    %v3130 = vlaneseq
    %v3131 = vshrl.u32 %v3130, 7
    %v3132 = vsub.s32 %v3129, %v3131
    %v3133 = vrot.slane %v3119, %v3132
    %v3134 = vcombine.high %v3110, 0.0
    %v3135 = vcombine.high %v3117, 0.0
    %v3136 = vcombine.high %v3126, 0.0
    %v3137 = vcombine.high %v3133, 0.0
    %v3138 = vcombine.low %v3042, %v3049
    %v3140 = vunpack.c.l.s4 1983009808
    %v3141 = vunpack.c.0.s8 %v3140
    %v3142 = vlaneseq
    %v3143 = vshrl.u32 %v3142, 7
    %v3144 = vsub.s32 %v3141, %v3143
    %v3145 = vrot.slane %v3138, %v3144
    %v3146 = vcombine.low %v3066, %v3067
    %v3148 = vunpack.c.l.s4 1983009808
    %v3149 = vunpack.c.0.s8 %v3148
    %v3150 = vlaneseq
    %v3151 = vshrl.u32 %v3150, 7
    %v3152 = vsub.s32 %v3149, %v3151
    %v3153 = vrot.slane %v3146, %v3152
    %v3154 = vcombine.low %v3058, %v3065
    %v3156 = vunpack.c.l.s4 1983009808
    %v3157 = vunpack.c.0.s8 %v3156
    %v3158 = vlaneseq
    %v3159 = vshrl.u32 %v3158, 7
    %v3160 = vsub.s32 %v3157, %v3159
    %v3161 = vrot.slane %v3154, %v3160
    %v3162 = vcombine.low %v3068, %v3069
    %v3164 = vunpack.c.l.s4 1983009808
    %v3165 = vunpack.c.0.s8 %v3164
    %v3166 = vlaneseq
    %v3167 = vshrl.u32 %v3166, 7
    %v3168 = vsub.s32 %v3165, %v3167
    %v3169 = vrot.slane %v3162, %v3168
    %v3170 = vcombine.low %v3145, %v3153
    %v3171 = vcombine.high %v3145, %v3153
    %v3173 = vunpack.c.l.s4 1934713408
    %v3174 = vunpack.c.0.s8 %v3173
    %v3175 = vlaneseq
    %v3176 = vshrl.u32 %v3175, 7
    %v3177 = vsub.s32 %v3174, %v3176
    %v3178 = vrot.slane %v3170, %v3177
    %v3180 = vunpack.c.l.s4 1934713408
    %v3181 = vunpack.c.0.s8 %v3180
    %v3182 = vlaneseq
    %v3183 = vshrl.u32 %v3182, 7
    %v3184 = vsub.s32 %v3181, %v3183
    %v3185 = vrot.slane %v3171, %v3184
    %v3186 = vcombine.low %v3161, %v3169
    %v3187 = vcombine.high %v3161, %v3169
    %v3189 = vunpack.c.l.s4 1934713408
    %v3190 = vunpack.c.0.s8 %v3189
    %v3191 = vlaneseq
    %v3192 = vshrl.u32 %v3191, 7
    %v3193 = vsub.s32 %v3190, %v3192
    %v3194 = vrot.slane %v3186, %v3193
    %v3196 = vunpack.c.l.s4 1934713408
    %v3197 = vunpack.c.0.s8 %v3196
    %v3198 = vlaneseq
    %v3199 = vshrl.u32 %v3198, 7
    %v3200 = vsub.s32 %v3197, %v3199
    %v3201 = vrot.slane %v3187, %v3200
    %v3202 = vcombine.low %v3178, %v3194
    %v3203 = vcombine.high %v3178, %v3194
    %v3204 = vcombine.low %v3185, %v3201
    %v3205 = vcombine.high %v3185, %v3201
    %v3206 = vcombine.low %v3110, %v3117
    %v3208 = vunpack.c.l.s4 1983009808
    %v3209 = vunpack.c.0.s8 %v3208
    %v3210 = vlaneseq
    %v3211 = vshrl.u32 %v3210, 7
    %v3212 = vsub.s32 %v3209, %v3211
    %v3213 = vrot.slane %v3206, %v3212
    %v3214 = vcombine.low %v3134, %v3135
    %v3216 = vunpack.c.l.s4 1983009808
    %v3217 = vunpack.c.0.s8 %v3216
    %v3218 = vlaneseq
    %v3219 = vshrl.u32 %v3218, 7
    %v3220 = vsub.s32 %v3217, %v3219
    %v3221 = vrot.slane %v3214, %v3220
    %v3222 = vcombine.low %v3126, %v3133
    %v3224 = vunpack.c.l.s4 1983009808
    %v3225 = vunpack.c.0.s8 %v3224
    %v3226 = vlaneseq
    %v3227 = vshrl.u32 %v3226, 7
    %v3228 = vsub.s32 %v3225, %v3227
    %v3229 = vrot.slane %v3222, %v3228
    %v3230 = vcombine.low %v3136, %v3137
    %v3232 = vunpack.c.l.s4 1983009808
    %v3233 = vunpack.c.0.s8 %v3232
    %v3234 = vlaneseq
    %v3235 = vshrl.u32 %v3234, 7
    %v3236 = vsub.s32 %v3233, %v3235
    %v3237 = vrot.slane %v3230, %v3236
    %v3238 = vcombine.low %v3213, %v3221
    %v3239 = vcombine.high %v3213, %v3221
    %v3241 = vunpack.c.l.s4 1934713408
    %v3242 = vunpack.c.0.s8 %v3241
    %v3243 = vlaneseq
    %v3244 = vshrl.u32 %v3243, 7
    %v3245 = vsub.s32 %v3242, %v3244
    %v3246 = vrot.slane %v3238, %v3245
    %v3248 = vunpack.c.l.s4 1934713408
    %v3249 = vunpack.c.0.s8 %v3248
    %v3250 = vlaneseq
    %v3251 = vshrl.u32 %v3250, 7
    %v3252 = vsub.s32 %v3249, %v3251
    %v3253 = vrot.slane %v3239, %v3252
    %v3254 = vcombine.low %v3229, %v3237
    %v3255 = vcombine.high %v3229, %v3237
    %v3257 = vunpack.c.l.s4 1934713408
    %v3258 = vunpack.c.0.s8 %v3257
    %v3259 = vlaneseq
    %v3260 = vshrl.u32 %v3259, 7
    %v3261 = vsub.s32 %v3258, %v3260
    %v3262 = vrot.slane %v3254, %v3261
    %v3264 = vunpack.c.l.s4 1934713408
    %v3265 = vunpack.c.0.s8 %v3264
    %v3266 = vlaneseq
    %v3267 = vshrl.u32 %v3266, 7
    %v3268 = vsub.s32 %v3265, %v3267
    %v3269 = vrot.slane %v3255, %v3268
    %v3270 = vcombine.low %v3246, %v3262
    %v3271 = vcombine.high %v3246, %v3262
    %v3272 = vcombine.low %v3253, %v3269
    %v3273 = vcombine.high %v3253, %v3269
    %3276 = vrot.lane.b32.xlu0 %v2974, 120
    %v3277 = vpop.permute.xlu0 %3276
    %3278 = vrot.lane.b32.xlu0 %v2979, 120
    %v3279 = vpop.permute.xlu0 %3278
    %3282 = vrot.lane.b32.xlu0 %v2974, 112
    %v3283 = vpop.permute.xlu0 %3282
    %3284 = vrot.lane.b32.xlu0 %v2979, 112
    %v3285 = vpop.permute.xlu0 %3284
    %3288 = vrot.lane.b32.xlu0 %v2974, 104
    %v3289 = vpop.permute.xlu0 %3288
    %3290 = vrot.lane.b32.xlu0 %v2979, 104
    %v3291 = vpop.permute.xlu0 %3290
    %v3294 = vcombine.low %v2974, %v3283
    %v3295 = vcombine.high %v2974, %v3283
    %v3297 = vunpack.c.l.s4 1983009808
    %v3298 = vunpack.c.0.s8 %v3297
    %v3299 = vlaneseq
    %v3300 = vshrl.u32 %v3299, 7
    %v3301 = vsub.s32 %v3298, %v3300
    %v3302 = vrot.slane %v3294, %v3301
    %v3304 = vunpack.c.l.s4 1983009808
    %v3305 = vunpack.c.0.s8 %v3304
    %v3306 = vlaneseq
    %v3307 = vshrl.u32 %v3306, 7
    %v3308 = vsub.s32 %v3305, %v3307
    %v3309 = vrot.slane %v3295, %v3308
    %v3310 = vcombine.low %v3277, %v3289
    %v3311 = vcombine.high %v3277, %v3289
    %v3313 = vunpack.c.l.s4 1983009808
    %v3314 = vunpack.c.0.s8 %v3313
    %v3315 = vlaneseq
    %v3316 = vshrl.u32 %v3315, 7
    %v3317 = vsub.s32 %v3314, %v3316
    %v3318 = vrot.slane %v3310, %v3317
    %v3320 = vunpack.c.l.s4 1983009808
    %v3321 = vunpack.c.0.s8 %v3320
    %v3322 = vlaneseq
    %v3323 = vshrl.u32 %v3322, 7
    %v3324 = vsub.s32 %v3321, %v3323
    %v3325 = vrot.slane %v3311, %v3324
    %v3326 = vcombine.low %v3302, %v3318
    %v3327 = vcombine.high %v3302, %v3318
    %v3329 = vunpack.c.l.s4 1934713408
    %v3330 = vunpack.c.0.s8 %v3329
    %v3331 = vlaneseq
    %v3332 = vshrl.u32 %v3331, 7
    %v3333 = vsub.s32 %v3330, %v3332
    %v3334 = vrot.slane %v3326, %v3333
    %v3336 = vunpack.c.l.s4 1934713408
    %v3337 = vunpack.c.0.s8 %v3336
    %v3338 = vlaneseq
    %v3339 = vshrl.u32 %v3338, 7
    %v3340 = vsub.s32 %v3337, %v3339
    %v3341 = vrot.slane %v3327, %v3340
    %v3342 = vcombine.low %v3309, %v3325
    %v3343 = vcombine.high %v3309, %v3325
    %v3345 = vunpack.c.l.s4 1934713408
    %v3346 = vunpack.c.0.s8 %v3345
    %v3347 = vlaneseq
    %v3348 = vshrl.u32 %v3347, 7
    %v3349 = vsub.s32 %v3346, %v3348
    %v3350 = vrot.slane %v3342, %v3349
    %v3352 = vunpack.c.l.s4 1934713408
    %v3353 = vunpack.c.0.s8 %v3352
    %v3354 = vlaneseq
    %v3355 = vshrl.u32 %v3354, 7
    %v3356 = vsub.s32 %v3353, %v3355
    %v3357 = vrot.slane %v3343, %v3356
    %v3358 = vcombine.high %v3334, 0.0
    %v3359 = vcombine.high %v3341, 0.0
    %v3360 = vcombine.high %v3350, 0.0
    %v3361 = vcombine.high %v3357, 0.0
    %v3362 = vcombine.low %v2979, %v3285
    %v3363 = vcombine.high %v2979, %v3285
    %v3365 = vunpack.c.l.s4 1983009808
    %v3366 = vunpack.c.0.s8 %v3365
    %v3367 = vlaneseq
    %v3368 = vshrl.u32 %v3367, 7
    %v3369 = vsub.s32 %v3366, %v3368
    %v3370 = vrot.slane %v3362, %v3369
    %v3372 = vunpack.c.l.s4 1983009808
    %v3373 = vunpack.c.0.s8 %v3372
    %v3374 = vlaneseq
    %v3375 = vshrl.u32 %v3374, 7
    %v3376 = vsub.s32 %v3373, %v3375
    %v3377 = vrot.slane %v3363, %v3376
    %v3378 = vcombine.low %v3279, %v3291
    %v3379 = vcombine.high %v3279, %v3291
    %v3381 = vunpack.c.l.s4 1983009808
    %v3382 = vunpack.c.0.s8 %v3381
    %v3383 = vlaneseq
    %v3384 = vshrl.u32 %v3383, 7
    %v3385 = vsub.s32 %v3382, %v3384
    %v3386 = vrot.slane %v3378, %v3385
    %v3388 = vunpack.c.l.s4 1983009808
    %v3389 = vunpack.c.0.s8 %v3388
    %v3390 = vlaneseq
    %v3391 = vshrl.u32 %v3390, 7
    %v3392 = vsub.s32 %v3389, %v3391
    %v3393 = vrot.slane %v3379, %v3392
    %v3394 = vcombine.low %v3370, %v3386
    %v3395 = vcombine.high %v3370, %v3386
    %v3397 = vunpack.c.l.s4 1934713408
    %v3398 = vunpack.c.0.s8 %v3397
    %v3399 = vlaneseq
    %v3400 = vshrl.u32 %v3399, 7
    %v3401 = vsub.s32 %v3398, %v3400
    %v3402 = vrot.slane %v3394, %v3401
    %v3404 = vunpack.c.l.s4 1934713408
    %v3405 = vunpack.c.0.s8 %v3404
    %v3406 = vlaneseq
    %v3407 = vshrl.u32 %v3406, 7
    %v3408 = vsub.s32 %v3405, %v3407
    %v3409 = vrot.slane %v3395, %v3408
    %v3410 = vcombine.low %v3377, %v3393
    %v3411 = vcombine.high %v3377, %v3393
    %v3413 = vunpack.c.l.s4 1934713408
    %v3414 = vunpack.c.0.s8 %v3413
    %v3415 = vlaneseq
    %v3416 = vshrl.u32 %v3415, 7
    %v3417 = vsub.s32 %v3414, %v3416
    %v3418 = vrot.slane %v3410, %v3417
    %v3420 = vunpack.c.l.s4 1934713408
    %v3421 = vunpack.c.0.s8 %v3420
    %v3422 = vlaneseq
    %v3423 = vshrl.u32 %v3422, 7
    %v3424 = vsub.s32 %v3421, %v3423
    %v3425 = vrot.slane %v3411, %v3424
    %v3426 = vcombine.high %v3402, 0.0
    %v3427 = vcombine.high %v3409, 0.0
    %v3428 = vcombine.high %v3418, 0.0
    %v3429 = vcombine.high %v3425, 0.0
    %v3430 = vcombine.low %v3334, %v3341
    %v3432 = vunpack.c.l.s4 1983009808
    %v3433 = vunpack.c.0.s8 %v3432
    %v3434 = vlaneseq
    %v3435 = vshrl.u32 %v3434, 7
    %v3436 = vsub.s32 %v3433, %v3435
    %v3437 = vrot.slane %v3430, %v3436
    %v3438 = vcombine.low %v3358, %v3359
    %v3440 = vunpack.c.l.s4 1983009808
    %v3441 = vunpack.c.0.s8 %v3440
    %v3442 = vlaneseq
    %v3443 = vshrl.u32 %v3442, 7
    %v3444 = vsub.s32 %v3441, %v3443
    %v3445 = vrot.slane %v3438, %v3444
    %v3446 = vcombine.low %v3350, %v3357
    %v3448 = vunpack.c.l.s4 1983009808
    %v3449 = vunpack.c.0.s8 %v3448
    %v3450 = vlaneseq
    %v3451 = vshrl.u32 %v3450, 7
    %v3452 = vsub.s32 %v3449, %v3451
    %v3453 = vrot.slane %v3446, %v3452
    %v3454 = vcombine.low %v3360, %v3361
    %v3456 = vunpack.c.l.s4 1983009808
    %v3457 = vunpack.c.0.s8 %v3456
    %v3458 = vlaneseq
    %v3459 = vshrl.u32 %v3458, 7
    %v3460 = vsub.s32 %v3457, %v3459
    %v3461 = vrot.slane %v3454, %v3460
    %v3462 = vcombine.low %v3437, %v3445
    %v3463 = vcombine.high %v3437, %v3445
    %v3465 = vunpack.c.l.s4 1934713408
    %v3466 = vunpack.c.0.s8 %v3465
    %v3467 = vlaneseq
    %v3468 = vshrl.u32 %v3467, 7
    %v3469 = vsub.s32 %v3466, %v3468
    %v3470 = vrot.slane %v3462, %v3469
    %v3472 = vunpack.c.l.s4 1934713408
    %v3473 = vunpack.c.0.s8 %v3472
    %v3474 = vlaneseq
    %v3475 = vshrl.u32 %v3474, 7
    %v3476 = vsub.s32 %v3473, %v3475
    %v3477 = vrot.slane %v3463, %v3476
    %v3478 = vcombine.low %v3453, %v3461
    %v3479 = vcombine.high %v3453, %v3461
    %v3481 = vunpack.c.l.s4 1934713408
    %v3482 = vunpack.c.0.s8 %v3481
    %v3483 = vlaneseq
    %v3484 = vshrl.u32 %v3483, 7
    %v3485 = vsub.s32 %v3482, %v3484
    %v3486 = vrot.slane %v3478, %v3485
    %v3488 = vunpack.c.l.s4 1934713408
    %v3489 = vunpack.c.0.s8 %v3488
    %v3490 = vlaneseq
    %v3491 = vshrl.u32 %v3490, 7
    %v3492 = vsub.s32 %v3489, %v3491
    %v3493 = vrot.slane %v3479, %v3492
    %v3494 = vcombine.low %v3470, %v3486
    %v3495 = vcombine.high %v3470, %v3486
    %v3496 = vcombine.low %v3477, %v3493
    %v3497 = vcombine.high %v3477, %v3493
    %v3498 = vcombine.low %v3402, %v3409
    %v3500 = vunpack.c.l.s4 1983009808
    %v3501 = vunpack.c.0.s8 %v3500
    %v3502 = vlaneseq
    %v3503 = vshrl.u32 %v3502, 7
    %v3504 = vsub.s32 %v3501, %v3503
    %v3505 = vrot.slane %v3498, %v3504
    %v3506 = vcombine.low %v3426, %v3427
    %v3508 = vunpack.c.l.s4 1983009808
    %v3509 = vunpack.c.0.s8 %v3508
    %v3510 = vlaneseq
    %v3511 = vshrl.u32 %v3510, 7
    %v3512 = vsub.s32 %v3509, %v3511
    %v3513 = vrot.slane %v3506, %v3512
    %v3514 = vcombine.low %v3418, %v3425
    %v3516 = vunpack.c.l.s4 1983009808
    %v3517 = vunpack.c.0.s8 %v3516
    %v3518 = vlaneseq
    %v3519 = vshrl.u32 %v3518, 7
    %v3520 = vsub.s32 %v3517, %v3519
    %v3521 = vrot.slane %v3514, %v3520
    %v3522 = vcombine.low %v3428, %v3429
    %v3524 = vunpack.c.l.s4 1983009808
    %v3525 = vunpack.c.0.s8 %v3524
    %v3526 = vlaneseq
    %v3527 = vshrl.u32 %v3526, 7
    %v3528 = vsub.s32 %v3525, %v3527
    %v3529 = vrot.slane %v3522, %v3528
    %v3530 = vcombine.low %v3505, %v3513
    %v3531 = vcombine.high %v3505, %v3513
    %v3533 = vunpack.c.l.s4 1934713408
    %v3534 = vunpack.c.0.s8 %v3533
    %v3535 = vlaneseq
    %v3536 = vshrl.u32 %v3535, 7
    %v3537 = vsub.s32 %v3534, %v3536
    %v3538 = vrot.slane %v3530, %v3537
    %v3540 = vunpack.c.l.s4 1934713408
    %v3541 = vunpack.c.0.s8 %v3540
    %v3542 = vlaneseq
    %v3543 = vshrl.u32 %v3542, 7
    %v3544 = vsub.s32 %v3541, %v3543
    %v3545 = vrot.slane %v3531, %v3544
    %v3546 = vcombine.low %v3521, %v3529
    %v3547 = vcombine.high %v3521, %v3529
    %v3549 = vunpack.c.l.s4 1934713408
    %v3550 = vunpack.c.0.s8 %v3549
    %v3551 = vlaneseq
    %v3552 = vshrl.u32 %v3551, 7
    %v3553 = vsub.s32 %v3550, %v3552
    %v3554 = vrot.slane %v3546, %v3553
    %v3556 = vunpack.c.l.s4 1934713408
    %v3557 = vunpack.c.0.s8 %v3556
    %v3558 = vlaneseq
    %v3559 = vshrl.u32 %v3558, 7
    %v3560 = vsub.s32 %v3557, %v3559
    %v3561 = vrot.slane %v3547, %v3560
    %v3562 = vcombine.low %v3538, %v3554
    %v3563 = vcombine.high %v3538, %v3554
    %v3564 = vcombine.low %v3545, %v3561
    %v3565 = vcombine.high %v3545, %v3561
    %3566 = vrot.lane.b32.xlu0 %v2974, 96
    %v3567 = vpop.permute.xlu0 %3566
    %3568 = vrot.lane.b32.xlu0 %v2979, 96
    %v3569 = vpop.permute.xlu0 %3568
    %3570 = vrot.lane.b32.xlu0 %v3277, 96
    %v3571 = vpop.permute.xlu0 %3570
    %3572 = vrot.lane.b32.xlu0 %v3279, 96
    %v3573 = vpop.permute.xlu0 %3572
    %3574 = vrot.lane.b32.xlu0 %v3283, 96
    %v3575 = vpop.permute.xlu0 %3574
    %3576 = vrot.lane.b32.xlu0 %v3285, 96
    %v3577 = vpop.permute.xlu0 %3576
    %3578 = vrot.lane.b32.xlu0 %v3289, 96
    %v3579 = vpop.permute.xlu0 %3578
    %3580 = vrot.lane.b32.xlu0 %v3291, 96
    %v3581 = vpop.permute.xlu0 %3580
    %v3590 = vcombine.low %v3567, %v3575
    %v3591 = vcombine.high %v3567, %v3575
    %v3593 = vunpack.c.l.s4 1983009808
    %v3594 = vunpack.c.0.s8 %v3593
    %v3595 = vlaneseq
    %v3596 = vshrl.u32 %v3595, 7
    %v3597 = vsub.s32 %v3594, %v3596
    %v3598 = vrot.slane %v3590, %v3597
    %v3600 = vunpack.c.l.s4 1983009808
    %v3601 = vunpack.c.0.s8 %v3600
    %v3602 = vlaneseq
    %v3603 = vshrl.u32 %v3602, 7
    %v3604 = vsub.s32 %v3601, %v3603
    %v3605 = vrot.slane %v3591, %v3604
    %v3606 = vcombine.low %v3571, %v3579
    %v3607 = vcombine.high %v3571, %v3579
    %v3609 = vunpack.c.l.s4 1983009808
    %v3610 = vunpack.c.0.s8 %v3609
    %v3611 = vlaneseq
    %v3612 = vshrl.u32 %v3611, 7
    %v3613 = vsub.s32 %v3610, %v3612
    %v3614 = vrot.slane %v3606, %v3613
    %v3616 = vunpack.c.l.s4 1983009808
    %v3617 = vunpack.c.0.s8 %v3616
    %v3618 = vlaneseq
    %v3619 = vshrl.u32 %v3618, 7
    %v3620 = vsub.s32 %v3617, %v3619
    %v3621 = vrot.slane %v3607, %v3620
    %v3622 = vcombine.low %v3598, %v3614
    %v3623 = vcombine.high %v3598, %v3614
    %v3625 = vunpack.c.l.s4 1934713408
    %v3626 = vunpack.c.0.s8 %v3625
    %v3627 = vlaneseq
    %v3628 = vshrl.u32 %v3627, 7
    %v3629 = vsub.s32 %v3626, %v3628
    %v3630 = vrot.slane %v3622, %v3629
    %v3632 = vunpack.c.l.s4 1934713408
    %v3633 = vunpack.c.0.s8 %v3632
    %v3634 = vlaneseq
    %v3635 = vshrl.u32 %v3634, 7
    %v3636 = vsub.s32 %v3633, %v3635
    %v3637 = vrot.slane %v3623, %v3636
    %v3638 = vcombine.low %v3605, %v3621
    %v3639 = vcombine.high %v3605, %v3621
    %v3641 = vunpack.c.l.s4 1934713408
    %v3642 = vunpack.c.0.s8 %v3641
    %v3643 = vlaneseq
    %v3644 = vshrl.u32 %v3643, 7
    %v3645 = vsub.s32 %v3642, %v3644
    %v3646 = vrot.slane %v3638, %v3645
    %v3648 = vunpack.c.l.s4 1934713408
    %v3649 = vunpack.c.0.s8 %v3648
    %v3650 = vlaneseq
    %v3651 = vshrl.u32 %v3650, 7
    %v3652 = vsub.s32 %v3649, %v3651
    %v3653 = vrot.slane %v3639, %v3652
    %v3654 = vcombine.high %v3630, 0.0
    %v3655 = vcombine.high %v3637, 0.0
    %v3656 = vcombine.high %v3646, 0.0
    %v3657 = vcombine.high %v3653, 0.0
    %v3658 = vcombine.low %v3569, %v3577
    %v3659 = vcombine.high %v3569, %v3577
    %v3661 = vunpack.c.l.s4 1983009808
    %v3662 = vunpack.c.0.s8 %v3661
    %v3663 = vlaneseq
    %v3664 = vshrl.u32 %v3663, 7
    %v3665 = vsub.s32 %v3662, %v3664
    %v3666 = vrot.slane %v3658, %v3665
    %v3668 = vunpack.c.l.s4 1983009808
    %v3669 = vunpack.c.0.s8 %v3668
    %v3670 = vlaneseq
    %v3671 = vshrl.u32 %v3670, 7
    %v3672 = vsub.s32 %v3669, %v3671
    %v3673 = vrot.slane %v3659, %v3672
    %v3674 = vcombine.low %v3573, %v3581
    %v3675 = vcombine.high %v3573, %v3581
    %v3677 = vunpack.c.l.s4 1983009808
    %v3678 = vunpack.c.0.s8 %v3677
    %v3679 = vlaneseq
    %v3680 = vshrl.u32 %v3679, 7
    %v3681 = vsub.s32 %v3678, %v3680
    %v3682 = vrot.slane %v3674, %v3681
    %v3684 = vunpack.c.l.s4 1983009808
    %v3685 = vunpack.c.0.s8 %v3684
    %v3686 = vlaneseq
    %v3687 = vshrl.u32 %v3686, 7
    %v3688 = vsub.s32 %v3685, %v3687
    %v3689 = vrot.slane %v3675, %v3688
    %v3690 = vcombine.low %v3666, %v3682
    %v3691 = vcombine.high %v3666, %v3682
    %v3693 = vunpack.c.l.s4 1934713408
    %v3694 = vunpack.c.0.s8 %v3693
    %v3695 = vlaneseq
    %v3696 = vshrl.u32 %v3695, 7
    %v3697 = vsub.s32 %v3694, %v3696
    %v3698 = vrot.slane %v3690, %v3697
    %v3700 = vunpack.c.l.s4 1934713408
    %v3701 = vunpack.c.0.s8 %v3700
    %v3702 = vlaneseq
    %v3703 = vshrl.u32 %v3702, 7
    %v3704 = vsub.s32 %v3701, %v3703
    %v3705 = vrot.slane %v3691, %v3704
    %v3706 = vcombine.low %v3673, %v3689
    %v3707 = vcombine.high %v3673, %v3689
    %v3709 = vunpack.c.l.s4 1934713408
    %v3710 = vunpack.c.0.s8 %v3709
    %v3711 = vlaneseq
    %v3712 = vshrl.u32 %v3711, 7
    %v3713 = vsub.s32 %v3710, %v3712
    %v3714 = vrot.slane %v3706, %v3713
    %v3716 = vunpack.c.l.s4 1934713408
    %v3717 = vunpack.c.0.s8 %v3716
    %v3718 = vlaneseq
    %v3719 = vshrl.u32 %v3718, 7
    %v3720 = vsub.s32 %v3717, %v3719
    %v3721 = vrot.slane %v3707, %v3720
    %v3722 = vcombine.high %v3698, 0.0
    %v3723 = vcombine.high %v3705, 0.0
    %v3724 = vcombine.high %v3714, 0.0
    %v3725 = vcombine.high %v3721, 0.0
    %v3726 = vcombine.low %v3630, %v3637
    %v3728 = vunpack.c.l.s4 1983009808
    %v3729 = vunpack.c.0.s8 %v3728
    %v3730 = vlaneseq
    %v3731 = vshrl.u32 %v3730, 7
    %v3732 = vsub.s32 %v3729, %v3731
    %v3733 = vrot.slane %v3726, %v3732
    %v3734 = vcombine.low %v3654, %v3655
    %v3736 = vunpack.c.l.s4 1983009808
    %v3737 = vunpack.c.0.s8 %v3736
    %v3738 = vlaneseq
    %v3739 = vshrl.u32 %v3738, 7
    %v3740 = vsub.s32 %v3737, %v3739
    %v3741 = vrot.slane %v3734, %v3740
    %v3742 = vcombine.low %v3646, %v3653
    %v3744 = vunpack.c.l.s4 1983009808
    %v3745 = vunpack.c.0.s8 %v3744
    %v3746 = vlaneseq
    %v3747 = vshrl.u32 %v3746, 7
    %v3748 = vsub.s32 %v3745, %v3747
    %v3749 = vrot.slane %v3742, %v3748
    %v3750 = vcombine.low %v3656, %v3657
    %v3752 = vunpack.c.l.s4 1983009808
    %v3753 = vunpack.c.0.s8 %v3752
    %v3754 = vlaneseq
    %v3755 = vshrl.u32 %v3754, 7
    %v3756 = vsub.s32 %v3753, %v3755
    %v3757 = vrot.slane %v3750, %v3756
    %v3758 = vcombine.low %v3733, %v3741
    %v3759 = vcombine.high %v3733, %v3741
    %v3761 = vunpack.c.l.s4 1934713408
    %v3762 = vunpack.c.0.s8 %v3761
    %v3763 = vlaneseq
    %v3764 = vshrl.u32 %v3763, 7
    %v3765 = vsub.s32 %v3762, %v3764
    %v3766 = vrot.slane %v3758, %v3765
    %v3768 = vunpack.c.l.s4 1934713408
    %v3769 = vunpack.c.0.s8 %v3768
    %v3770 = vlaneseq
    %v3771 = vshrl.u32 %v3770, 7
    %v3772 = vsub.s32 %v3769, %v3771
    %v3773 = vrot.slane %v3759, %v3772
    %v3774 = vcombine.low %v3749, %v3757
    %v3775 = vcombine.high %v3749, %v3757
    %v3777 = vunpack.c.l.s4 1934713408
    %v3778 = vunpack.c.0.s8 %v3777
    %v3779 = vlaneseq
    %v3780 = vshrl.u32 %v3779, 7
    %v3781 = vsub.s32 %v3778, %v3780
    %v3782 = vrot.slane %v3774, %v3781
    %v3784 = vunpack.c.l.s4 1934713408
    %v3785 = vunpack.c.0.s8 %v3784
    %v3786 = vlaneseq
    %v3787 = vshrl.u32 %v3786, 7
    %v3788 = vsub.s32 %v3785, %v3787
    %v3789 = vrot.slane %v3775, %v3788
    %v3790 = vcombine.low %v3766, %v3782
    %v3791 = vcombine.high %v3766, %v3782
    %v3792 = vcombine.low %v3773, %v3789
    %v3793 = vcombine.high %v3773, %v3789
    %v3794 = vcombine.low %v3698, %v3705
    %v3796 = vunpack.c.l.s4 1983009808
    %v3797 = vunpack.c.0.s8 %v3796
    %v3798 = vlaneseq
    %v3799 = vshrl.u32 %v3798, 7
    %v3800 = vsub.s32 %v3797, %v3799
    %v3801 = vrot.slane %v3794, %v3800
    %v3802 = vcombine.low %v3722, %v3723
    %v3804 = vunpack.c.l.s4 1983009808
    %v3805 = vunpack.c.0.s8 %v3804
    %v3806 = vlaneseq
    %v3807 = vshrl.u32 %v3806, 7
    %v3808 = vsub.s32 %v3805, %v3807
    %v3809 = vrot.slane %v3802, %v3808
    %v3810 = vcombine.low %v3714, %v3721
    %v3812 = vunpack.c.l.s4 1983009808
    %v3813 = vunpack.c.0.s8 %v3812
    %v3814 = vlaneseq
    %v3815 = vshrl.u32 %v3814, 7
    %v3816 = vsub.s32 %v3813, %v3815
    %v3817 = vrot.slane %v3810, %v3816
    %v3818 = vcombine.low %v3724, %v3725
    %v3820 = vunpack.c.l.s4 1983009808
    %v3821 = vunpack.c.0.s8 %v3820
    %v3822 = vlaneseq
    %v3823 = vshrl.u32 %v3822, 7
    %v3824 = vsub.s32 %v3821, %v3823
    %v3825 = vrot.slane %v3818, %v3824
    %v3826 = vcombine.low %v3801, %v3809
    %v3827 = vcombine.high %v3801, %v3809
    %v3829 = vunpack.c.l.s4 1934713408
    %v3830 = vunpack.c.0.s8 %v3829
    %v3831 = vlaneseq
    %v3832 = vshrl.u32 %v3831, 7
    %v3833 = vsub.s32 %v3830, %v3832
    %v3834 = vrot.slane %v3826, %v3833
    %v3836 = vunpack.c.l.s4 1934713408
    %v3837 = vunpack.c.0.s8 %v3836
    %v3838 = vlaneseq
    %v3839 = vshrl.u32 %v3838, 7
    %v3840 = vsub.s32 %v3837, %v3839
    %v3841 = vrot.slane %v3827, %v3840
    %v3842 = vcombine.low %v3817, %v3825
    %v3843 = vcombine.high %v3817, %v3825
    %v3845 = vunpack.c.l.s4 1934713408
    %v3846 = vunpack.c.0.s8 %v3845
    %v3847 = vlaneseq
    %v3848 = vshrl.u32 %v3847, 7
    %v3849 = vsub.s32 %v3846, %v3848
    %v3850 = vrot.slane %v3842, %v3849
    %v3852 = vunpack.c.l.s4 1934713408
    %v3853 = vunpack.c.0.s8 %v3852
    %v3854 = vlaneseq
    %v3855 = vshrl.u32 %v3854, 7
    %v3856 = vsub.s32 %v3853, %v3855
    %v3857 = vrot.slane %v3843, %v3856
    %v3858 = vcombine.low %v3834, %v3850
    %v3859 = vcombine.high %v3834, %v3850
    %v3860 = vcombine.low %v3841, %v3857
    %v3861 = vcombine.high %v3841, %v3857
    %v3864 = vunpack.c.l.s4 1966171168
    %v3865 = vunpack.c.0.s8 %v3864
    %v3866 = vlaneseq
    %v3867 = vshrl.u32 %v3866, 7
    %v3868 = vsub.s32 %v3865, %v3867
    %v3869 = vrot.slane %v60, %v3868
    %v3870 = vcombine.high %v3869, %v3869
    %v3872 = vunpack.c.l.s4 1966171168
    %v3873 = vunpack.c.0.s8 %v3872
    %v3874 = vlaneseq
    %v3875 = vshrl.u32 %v3874, 7
    %v3876 = vsub.s32 %v3873, %v3875
    %v3877 = vrot.slane %v3869, %v3876
    %v3879 = vunpack.c.l.s4 1966171168
    %v3880 = vunpack.c.0.s8 %v3879
    %v3881 = vlaneseq
    %v3882 = vshrl.u32 %v3881, 7
    %v3883 = vsub.s32 %v3880, %v3882
    %v3884 = vrot.slane %v3870, %v3883
    %v3885 = vlaneseq
    %v3886 = vshrl.u32 %v3885, 7
    %v3887 = vsub.s32 0, %v3886
    %v3888 = vrot.slane %v3877, %v3887
    %v3889 = vlaneseq
    %v3890 = vshrl.u32 %v3889, 7
    %v3891 = vsub.s32 0, %v3890
    %v3892 = vrot.slane %v3884, %v3891
    %v3896 = vsel %vm1085, %v3202, 0
    %v3899 = vsel %vm1085, %v3494, 0
    %3901 = vmatprep.subr.mxu0 0.0
    %3902 = vmatpush1.xpose.msra.mxu0 %v3899
    %3903 = vmatprep.subr.mxu0 0.0
    %3904 = vmatpush1.xpose.msra.mxu0 0.0
    %3905 = vmatprep.subr.mxu0 0.0
    %3906 = vmatpush1.xpose.msra.mxu0 0.0
    %3907 = vmatprep.subr.mxu0 0.0
    %3908 = vmatpush1.xpose.msra.mxu0 0.0
    %3909 = vmatprep.subr.mxu0 0.0
    %3910 = vmatpush1.xpose.msra.mxu0 0.0
    %3911 = vmatprep.subr.mxu0 0.0
    %3912 = vmatpush1.xpose.msra.mxu0 0.0
    %3913 = vmatprep.subr.mxu0 0.0
    %3914 = vmatpush1.xpose.msra.mxu0 0.0
    %3915 = vmatprep.subr.mxu0 0.0
    %3916 = vmatpush1.xpose.msra.mxu0 0.0
    %3917 = vmatprep.subr.mxu0 0.0
    %3918 = vmatpush1.xpose.msra.mxu0 0.0
    %3919 = vmatprep.subr.mxu0 0.0
    %3920 = vmatpush1.xpose.msra.mxu0 0.0
    %3921 = vmatprep.subr.mxu0 0.0
    %3922 = vmatpush1.xpose.msra.mxu0 0.0
    %3923 = vmatprep.subr.mxu0 0.0
    %3924 = vmatpush1.xpose.msra.mxu0 0.0
    %3925 = vmatprep.subr.mxu0 0.0
    %3926 = vmatpush1.xpose.msra.mxu0 0.0
    %3927 = vmatprep.subr.mxu0 0.0
    %3928 = vmatpush1.xpose.msra.mxu0 0.0
    %3929 = vmatprep.subr.mxu0 0.0
    %3930 = vmatpush1.xpose.msra.mxu0 0.0
    %3931 = vmatprep.subr.mxu0 0.0
    %3932 = vmatpush1.xpose.msra.mxu0 0.0
    %3933 = vmatprep.subr.mxu0 0.0
    %3934 = vmatpush1.xpose.msra.mxu0 0.0
    %3935 = vmatprep.subr.mxu0 0.0
    %3936 = vmatpush1.xpose.msra.mxu0 0.0
    %3937 = vmatprep.subr.mxu0 0.0
    %3938 = vmatpush1.xpose.msra.mxu0 0.0
    %3939 = vmatprep.subr.mxu0 0.0
    %3940 = vmatpush1.xpose.msra.mxu0 0.0
    %3941 = vmatprep.subr.mxu0 0.0
    %3942 = vmatpush1.xpose.msra.mxu0 0.0
    %3943 = vmatprep.subr.mxu0 0.0
    %3944 = vmatpush1.xpose.msra.mxu0 0.0
    %3945 = vmatprep.subr.mxu0 0.0
    %3946 = vmatpush1.xpose.msra.mxu0 0.0
    %3947 = vmatprep.subr.mxu0 0.0
    %3948 = vmatpush1.xpose.msra.mxu0 0.0
    %3949 = vmatprep.subr.mxu0 0.0
    %3950 = vmatpush1.xpose.msra.mxu0 0.0
    %3951 = vmatprep.subr.mxu0 0.0
    %3952 = vmatpush1.xpose.msra.mxu0 0.0
    %3953 = vmatprep.subr.mxu0 0.0
    %3954 = vmatpush1.xpose.msra.mxu0 0.0
    %3955 = vmatprep.subr.mxu0 0.0
    %3956 = vmatpush1.xpose.msra.mxu0 0.0
    %3957 = vmatprep.subr.mxu0 0.0
    %3958 = vmatpush1.xpose.msra.mxu0 0.0
    %3959 = vmatprep.subr.mxu0 0.0
    %3960 = vmatpush1.xpose.msra.mxu0 0.0
    %3961 = vmatprep.subr.mxu0 0.0
    %3962 = vmatpush1.xpose.msra.mxu0 0.0
    %3963 = vmatprep.subr.mxu0 0.0
    %3964 = vmatpush1.xpose.msra.mxu0 0.0
    %3965 = vmatprep.mubr.f32.mxu0 0.0
    %3966 = vmatmul.mubr.f32.gmra.mrb[0].mxu0 %v3896
    %v3967 = vpop.f32.mrb[0].mxu0
    %v3968 = vadd.f32 %v3888, %v3967
    %v3969 = vpop.f32.mrb[0].mxu0
    %3970 = vdwg.mxu0
    %v3972 = vsel %vm1085, %v3203, 0
    %v3975 = vsel %vm1085, %v3495, 0
    %3977 = vmatprep.subr.mxu0 0.0
    %3978 = vmatpush1.xpose.msra.mxu0 %v3975
    %3979 = vmatprep.subr.mxu0 0.0
    %3980 = vmatpush1.xpose.msra.mxu0 0.0
    %3981 = vmatprep.subr.mxu0 0.0
    %3982 = vmatpush1.xpose.msra.mxu0 0.0
    %3983 = vmatprep.subr.mxu0 0.0
    %3984 = vmatpush1.xpose.msra.mxu0 0.0
    %3985 = vmatprep.subr.mxu0 0.0
    %3986 = vmatpush1.xpose.msra.mxu0 0.0
    %3987 = vmatprep.subr.mxu0 0.0
    %3988 = vmatpush1.xpose.msra.mxu0 0.0
    %3989 = vmatprep.subr.mxu0 0.0
    %3990 = vmatpush1.xpose.msra.mxu0 0.0
    %3991 = vmatprep.subr.mxu0 0.0
    %3992 = vmatpush1.xpose.msra.mxu0 0.0
    %3993 = vmatprep.subr.mxu0 0.0
    %3994 = vmatpush1.xpose.msra.mxu0 0.0
    %3995 = vmatprep.subr.mxu0 0.0
    %3996 = vmatpush1.xpose.msra.mxu0 0.0
    %3997 = vmatprep.subr.mxu0 0.0
    %3998 = vmatpush1.xpose.msra.mxu0 0.0
    %3999 = vmatprep.subr.mxu0 0.0
    %4000 = vmatpush1.xpose.msra.mxu0 0.0
    %4001 = vmatprep.subr.mxu0 0.0
    %4002 = vmatpush1.xpose.msra.mxu0 0.0
    %4003 = vmatprep.subr.mxu0 0.0
    %4004 = vmatpush1.xpose.msra.mxu0 0.0
    %4005 = vmatprep.subr.mxu0 0.0
    %4006 = vmatpush1.xpose.msra.mxu0 0.0
    %4007 = vmatprep.subr.mxu0 0.0
    %4008 = vmatpush1.xpose.msra.mxu0 0.0
    %4009 = vmatprep.subr.mxu0 0.0
    %4010 = vmatpush1.xpose.msra.mxu0 0.0
    %4011 = vmatprep.subr.mxu0 0.0
    %4012 = vmatpush1.xpose.msra.mxu0 0.0
    %4013 = vmatprep.subr.mxu0 0.0
    %4014 = vmatpush1.xpose.msra.mxu0 0.0
    %4015 = vmatprep.subr.mxu0 0.0
    %4016 = vmatpush1.xpose.msra.mxu0 0.0
    %4017 = vmatprep.subr.mxu0 0.0
    %4018 = vmatpush1.xpose.msra.mxu0 0.0
    %4019 = vmatprep.subr.mxu0 0.0
    %4020 = vmatpush1.xpose.msra.mxu0 0.0
    %4021 = vmatprep.subr.mxu0 0.0
    %4022 = vmatpush1.xpose.msra.mxu0 0.0
    %4023 = vmatprep.subr.mxu0 0.0
    %4024 = vmatpush1.xpose.msra.mxu0 0.0
    %4025 = vmatprep.subr.mxu0 0.0
    %4026 = vmatpush1.xpose.msra.mxu0 0.0
    %4027 = vmatprep.subr.mxu0 0.0
    %4028 = vmatpush1.xpose.msra.mxu0 0.0
    %4029 = vmatprep.subr.mxu0 0.0
    %4030 = vmatpush1.xpose.msra.mxu0 0.0
    %4031 = vmatprep.subr.mxu0 0.0
    %4032 = vmatpush1.xpose.msra.mxu0 0.0
    %4033 = vmatprep.subr.mxu0 0.0
    %4034 = vmatpush1.xpose.msra.mxu0 0.0
    %4035 = vmatprep.subr.mxu0 0.0
    %4036 = vmatpush1.xpose.msra.mxu0 0.0
    %4037 = vmatprep.subr.mxu0 0.0
    %4038 = vmatpush1.xpose.msra.mxu0 0.0
    %4039 = vmatprep.subr.mxu0 0.0
    %4040 = vmatpush1.xpose.msra.mxu0 0.0
    %4041 = vmatprep.mubr.f32.mxu0 0.0
    %4042 = vmatmul.mubr.f32.gmra.mrb[0].mxu0 %v3972
    %v4043 = vpop.f32.mrb[0].mxu0
    %v4044 = vadd.f32 %v3888, %v4043
    %v4045 = vpop.f32.mrb[0].mxu0
    %4046 = vdwg.mxu0
    %v4048 = vsel %vm1085, %v3204, 0
    %v4051 = vsel %vm1085, %v3496, 0
    %4053 = vmatprep.subr.mxu0 0.0
    %4054 = vmatpush1.xpose.msra.mxu0 %v4051
    %4055 = vmatprep.subr.mxu0 0.0
    %4056 = vmatpush1.xpose.msra.mxu0 0.0
    %4057 = vmatprep.subr.mxu0 0.0
    %4058 = vmatpush1.xpose.msra.mxu0 0.0
    %4059 = vmatprep.subr.mxu0 0.0
    %4060 = vmatpush1.xpose.msra.mxu0 0.0
    %4061 = vmatprep.subr.mxu0 0.0
    %4062 = vmatpush1.xpose.msra.mxu0 0.0
    %4063 = vmatprep.subr.mxu0 0.0
    %4064 = vmatpush1.xpose.msra.mxu0 0.0
    %4065 = vmatprep.subr.mxu0 0.0
    %4066 = vmatpush1.xpose.msra.mxu0 0.0
    %4067 = vmatprep.subr.mxu0 0.0
    %4068 = vmatpush1.xpose.msra.mxu0 0.0
    %4069 = vmatprep.subr.mxu0 0.0
    %4070 = vmatpush1.xpose.msra.mxu0 0.0
    %4071 = vmatprep.subr.mxu0 0.0
    %4072 = vmatpush1.xpose.msra.mxu0 0.0
    %4073 = vmatprep.subr.mxu0 0.0
    %4074 = vmatpush1.xpose.msra.mxu0 0.0
    %4075 = vmatprep.subr.mxu0 0.0
    %4076 = vmatpush1.xpose.msra.mxu0 0.0
    %4077 = vmatprep.subr.mxu0 0.0
    %4078 = vmatpush1.xpose.msra.mxu0 0.0
    %4079 = vmatprep.subr.mxu0 0.0
    %4080 = vmatpush1.xpose.msra.mxu0 0.0
    %4081 = vmatprep.subr.mxu0 0.0
    %4082 = vmatpush1.xpose.msra.mxu0 0.0
    %4083 = vmatprep.subr.mxu0 0.0
    %4084 = vmatpush1.xpose.msra.mxu0 0.0
    %4085 = vmatprep.subr.mxu0 0.0
    %4086 = vmatpush1.xpose.msra.mxu0 0.0
    %4087 = vmatprep.subr.mxu0 0.0
    %4088 = vmatpush1.xpose.msra.mxu0 0.0
    %4089 = vmatprep.subr.mxu0 0.0
    %4090 = vmatpush1.xpose.msra.mxu0 0.0
    %4091 = vmatprep.subr.mxu0 0.0
    %4092 = vmatpush1.xpose.msra.mxu0 0.0
    %4093 = vmatprep.subr.mxu0 0.0
    %4094 = vmatpush1.xpose.msra.mxu0 0.0
    %4095 = vmatprep.subr.mxu0 0.0
    %4096 = vmatpush1.xpose.msra.mxu0 0.0
    %4097 = vmatprep.subr.mxu0 0.0
    %4098 = vmatpush1.xpose.msra.mxu0 0.0
    %4099 = vmatprep.subr.mxu0 0.0
    %4100 = vmatpush1.xpose.msra.mxu0 0.0
    %4101 = vmatprep.subr.mxu0 0.0
    %4102 = vmatpush1.xpose.msra.mxu0 0.0
    %4103 = vmatprep.subr.mxu0 0.0
    %4104 = vmatpush1.xpose.msra.mxu0 0.0
    %4105 = vmatprep.subr.mxu0 0.0
    %4106 = vmatpush1.xpose.msra.mxu0 0.0
    %4107 = vmatprep.subr.mxu0 0.0
    %4108 = vmatpush1.xpose.msra.mxu0 0.0
    %4109 = vmatprep.subr.mxu0 0.0
    %4110 = vmatpush1.xpose.msra.mxu0 0.0
    %4111 = vmatprep.subr.mxu0 0.0
    %4112 = vmatpush1.xpose.msra.mxu0 0.0
    %4113 = vmatprep.subr.mxu0 0.0
    %4114 = vmatpush1.xpose.msra.mxu0 0.0
    %4115 = vmatprep.subr.mxu0 0.0
    %4116 = vmatpush1.xpose.msra.mxu0 0.0
    %4117 = vmatprep.mubr.f32.mxu0 0.0
    %4118 = vmatmul.mubr.f32.gmra.mrb[0].mxu0 %v4048
    %v4119 = vpop.f32.mrb[0].mxu0
    %v4120 = vadd.f32 %v3888, %v4119
    %v4121 = vpop.f32.mrb[0].mxu0
    %4122 = vdwg.mxu0
    %v4124 = vsel %vm1085, %v3205, 0
    %v4127 = vsel %vm1085, %v3497, 0
    %4129 = vmatprep.subr.mxu0 0.0
    %4130 = vmatpush1.xpose.msra.mxu0 %v4127
    %4131 = vmatprep.subr.mxu0 0.0
    %4132 = vmatpush1.xpose.msra.mxu0 0.0
    %4133 = vmatprep.subr.mxu0 0.0
    %4134 = vmatpush1.xpose.msra.mxu0 0.0
    %4135 = vmatprep.subr.mxu0 0.0
    %4136 = vmatpush1.xpose.msra.mxu0 0.0
    %4137 = vmatprep.subr.mxu0 0.0
    %4138 = vmatpush1.xpose.msra.mxu0 0.0
    %4139 = vmatprep.subr.mxu0 0.0
    %4140 = vmatpush1.xpose.msra.mxu0 0.0
    %4141 = vmatprep.subr.mxu0 0.0
    %4142 = vmatpush1.xpose.msra.mxu0 0.0
    %4143 = vmatprep.subr.mxu0 0.0
    %4144 = vmatpush1.xpose.msra.mxu0 0.0
    %4145 = vmatprep.subr.mxu0 0.0
    %4146 = vmatpush1.xpose.msra.mxu0 0.0
    %4147 = vmatprep.subr.mxu0 0.0
    %4148 = vmatpush1.xpose.msra.mxu0 0.0
    %4149 = vmatprep.subr.mxu0 0.0
    %4150 = vmatpush1.xpose.msra.mxu0 0.0
    %4151 = vmatprep.subr.mxu0 0.0
    %4152 = vmatpush1.xpose.msra.mxu0 0.0
    %4153 = vmatprep.subr.mxu0 0.0
    %4154 = vmatpush1.xpose.msra.mxu0 0.0
    %4155 = vmatprep.subr.mxu0 0.0
    %4156 = vmatpush1.xpose.msra.mxu0 0.0
    %4157 = vmatprep.subr.mxu0 0.0
    %4158 = vmatpush1.xpose.msra.mxu0 0.0
    %4159 = vmatprep.subr.mxu0 0.0
    %4160 = vmatpush1.xpose.msra.mxu0 0.0
    %4161 = vmatprep.subr.mxu0 0.0
    %4162 = vmatpush1.xpose.msra.mxu0 0.0
    %4163 = vmatprep.subr.mxu0 0.0
    %4164 = vmatpush1.xpose.msra.mxu0 0.0
    %4165 = vmatprep.subr.mxu0 0.0
    %4166 = vmatpush1.xpose.msra.mxu0 0.0
    %4167 = vmatprep.subr.mxu0 0.0
    %4168 = vmatpush1.xpose.msra.mxu0 0.0
    %4169 = vmatprep.subr.mxu0 0.0
    %4170 = vmatpush1.xpose.msra.mxu0 0.0
    %4171 = vmatprep.subr.mxu0 0.0
    %4172 = vmatpush1.xpose.msra.mxu0 0.0
    %4173 = vmatprep.subr.mxu0 0.0
    %4174 = vmatpush1.xpose.msra.mxu0 0.0
    %4175 = vmatprep.subr.mxu0 0.0
    %4176 = vmatpush1.xpose.msra.mxu0 0.0
    %4177 = vmatprep.subr.mxu0 0.0
    %4178 = vmatpush1.xpose.msra.mxu0 0.0
    %4179 = vmatprep.subr.mxu0 0.0
    %4180 = vmatpush1.xpose.msra.mxu0 0.0
    %4181 = vmatprep.subr.mxu0 0.0
    %4182 = vmatpush1.xpose.msra.mxu0 0.0
    %4183 = vmatprep.subr.mxu0 0.0
    %4184 = vmatpush1.xpose.msra.mxu0 0.0
    %4185 = vmatprep.subr.mxu0 0.0
    %4186 = vmatpush1.xpose.msra.mxu0 0.0
    %4187 = vmatprep.subr.mxu0 0.0
    %4188 = vmatpush1.xpose.msra.mxu0 0.0
    %4189 = vmatprep.subr.mxu0 0.0
    %4190 = vmatpush1.xpose.msra.mxu0 0.0
    %4191 = vmatprep.subr.mxu0 0.0
    %4192 = vmatpush1.xpose.msra.mxu0 0.0
    %4193 = vmatprep.mubr.f32.mxu0 0.0
    %4194 = vmatmul.mubr.f32.gmra.mrb[0].mxu0 %v4124
    %v4195 = vpop.f32.mrb[0].mxu0
    %v4196 = vadd.f32 %v3888, %v4195
    %v4197 = vpop.f32.mrb[0].mxu0
    %4198 = vdwg.mxu0
    %v4200 = vsel %vm1085, %v3270, 0
    %v4203 = vsel %vm1085, %v3562, 0
    %4205 = vmatprep.subr.mxu0 0.0
    %4206 = vmatpush1.xpose.msra.mxu0 %v4203
    %4207 = vmatprep.subr.mxu0 0.0
    %4208 = vmatpush1.xpose.msra.mxu0 0.0
    %4209 = vmatprep.subr.mxu0 0.0
    %4210 = vmatpush1.xpose.msra.mxu0 0.0
    %4211 = vmatprep.subr.mxu0 0.0
    %4212 = vmatpush1.xpose.msra.mxu0 0.0
    %4213 = vmatprep.subr.mxu0 0.0
    %4214 = vmatpush1.xpose.msra.mxu0 0.0
    %4215 = vmatprep.subr.mxu0 0.0
    %4216 = vmatpush1.xpose.msra.mxu0 0.0
    %4217 = vmatprep.subr.mxu0 0.0
    %4218 = vmatpush1.xpose.msra.mxu0 0.0
    %4219 = vmatprep.subr.mxu0 0.0
    %4220 = vmatpush1.xpose.msra.mxu0 0.0
    %4221 = vmatprep.subr.mxu0 0.0
    %4222 = vmatpush1.xpose.msra.mxu0 0.0
    %4223 = vmatprep.subr.mxu0 0.0
    %4224 = vmatpush1.xpose.msra.mxu0 0.0
    %4225 = vmatprep.subr.mxu0 0.0
    %4226 = vmatpush1.xpose.msra.mxu0 0.0
    %4227 = vmatprep.subr.mxu0 0.0
    %4228 = vmatpush1.xpose.msra.mxu0 0.0
    %4229 = vmatprep.subr.mxu0 0.0
    %4230 = vmatpush1.xpose.msra.mxu0 0.0
    %4231 = vmatprep.subr.mxu0 0.0
    %4232 = vmatpush1.xpose.msra.mxu0 0.0
    %4233 = vmatprep.subr.mxu0 0.0
    %4234 = vmatpush1.xpose.msra.mxu0 0.0
    %4235 = vmatprep.subr.mxu0 0.0
    %4236 = vmatpush1.xpose.msra.mxu0 0.0
    %4237 = vmatprep.subr.mxu0 0.0
    %4238 = vmatpush1.xpose.msra.mxu0 0.0
    %4239 = vmatprep.subr.mxu0 0.0
    %4240 = vmatpush1.xpose.msra.mxu0 0.0
    %4241 = vmatprep.subr.mxu0 0.0
    %4242 = vmatpush1.xpose.msra.mxu0 0.0
    %4243 = vmatprep.subr.mxu0 0.0
    %4244 = vmatpush1.xpose.msra.mxu0 0.0
    %4245 = vmatprep.subr.mxu0 0.0
    %4246 = vmatpush1.xpose.msra.mxu0 0.0
    %4247 = vmatprep.subr.mxu0 0.0
    %4248 = vmatpush1.xpose.msra.mxu0 0.0
    %4249 = vmatprep.subr.mxu0 0.0
    %4250 = vmatpush1.xpose.msra.mxu0 0.0
    %4251 = vmatprep.subr.mxu0 0.0
    %4252 = vmatpush1.xpose.msra.mxu0 0.0
    %4253 = vmatprep.subr.mxu0 0.0
    %4254 = vmatpush1.xpose.msra.mxu0 0.0
    %4255 = vmatprep.subr.mxu0 0.0
    %4256 = vmatpush1.xpose.msra.mxu0 0.0
    %4257 = vmatprep.subr.mxu0 0.0
    %4258 = vmatpush1.xpose.msra.mxu0 0.0
    %4259 = vmatprep.subr.mxu0 0.0
    %4260 = vmatpush1.xpose.msra.mxu0 0.0
    %4261 = vmatprep.subr.mxu0 0.0
    %4262 = vmatpush1.xpose.msra.mxu0 0.0
    %4263 = vmatprep.subr.mxu0 0.0
    %4264 = vmatpush1.xpose.msra.mxu0 0.0
    %4265 = vmatprep.subr.mxu0 0.0
    %4266 = vmatpush1.xpose.msra.mxu0 0.0
    %4267 = vmatprep.subr.mxu0 0.0
    %4268 = vmatpush1.xpose.msra.mxu0 0.0
    %4269 = vmatprep.mubr.f32.mxu0 0.0
    %4270 = vmatmul.mubr.f32.gmra.mrb[0].mxu0 %v4200
    %v4271 = vpop.f32.mrb[0].mxu0
    %v4272 = vadd.f32 %v3892, %v4271
    %v4273 = vpop.f32.mrb[0].mxu0
    %4274 = vdwg.mxu0
    %v4276 = vsel %vm1085, %v3271, 0
    %v4279 = vsel %vm1085, %v3563, 0
    %4281 = vmatprep.subr.mxu0 0.0
    %4282 = vmatpush1.xpose.msra.mxu0 %v4279
    %4283 = vmatprep.subr.mxu0 0.0
    %4284 = vmatpush1.xpose.msra.mxu0 0.0
    %4285 = vmatprep.subr.mxu0 0.0
    %4286 = vmatpush1.xpose.msra.mxu0 0.0
    %4287 = vmatprep.subr.mxu0 0.0
    %4288 = vmatpush1.xpose.msra.mxu0 0.0
    %4289 = vmatprep.subr.mxu0 0.0
    %4290 = vmatpush1.xpose.msra.mxu0 0.0
    %4291 = vmatprep.subr.mxu0 0.0
    %4292 = vmatpush1.xpose.msra.mxu0 0.0
    %4293 = vmatprep.subr.mxu0 0.0
    %4294 = vmatpush1.xpose.msra.mxu0 0.0
    %4295 = vmatprep.subr.mxu0 0.0
    %4296 = vmatpush1.xpose.msra.mxu0 0.0
    %4297 = vmatprep.subr.mxu0 0.0
    %4298 = vmatpush1.xpose.msra.mxu0 0.0
    %4299 = vmatprep.subr.mxu0 0.0
    %4300 = vmatpush1.xpose.msra.mxu0 0.0
    %4301 = vmatprep.subr.mxu0 0.0
    %4302 = vmatpush1.xpose.msra.mxu0 0.0
    %4303 = vmatprep.subr.mxu0 0.0
    %4304 = vmatpush1.xpose.msra.mxu0 0.0
    %4305 = vmatprep.subr.mxu0 0.0
    %4306 = vmatpush1.xpose.msra.mxu0 0.0
    %4307 = vmatprep.subr.mxu0 0.0
    %4308 = vmatpush1.xpose.msra.mxu0 0.0
    %4309 = vmatprep.subr.mxu0 0.0
    %4310 = vmatpush1.xpose.msra.mxu0 0.0
    %4311 = vmatprep.subr.mxu0 0.0
    %4312 = vmatpush1.xpose.msra.mxu0 0.0
    %4313 = vmatprep.subr.mxu0 0.0
    %4314 = vmatpush1.xpose.msra.mxu0 0.0
    %4315 = vmatprep.subr.mxu0 0.0
    %4316 = vmatpush1.xpose.msra.mxu0 0.0
    %4317 = vmatprep.subr.mxu0 0.0
    %4318 = vmatpush1.xpose.msra.mxu0 0.0
    %4319 = vmatprep.subr.mxu0 0.0
    %4320 = vmatpush1.xpose.msra.mxu0 0.0
    %4321 = vmatprep.subr.mxu0 0.0
    %4322 = vmatpush1.xpose.msra.mxu0 0.0
    %4323 = vmatprep.subr.mxu0 0.0
    %4324 = vmatpush1.xpose.msra.mxu0 0.0
    %4325 = vmatprep.subr.mxu0 0.0
    %4326 = vmatpush1.xpose.msra.mxu0 0.0
    %4327 = vmatprep.subr.mxu0 0.0
    %4328 = vmatpush1.xpose.msra.mxu0 0.0
    %4329 = vmatprep.subr.mxu0 0.0
    %4330 = vmatpush1.xpose.msra.mxu0 0.0
    %4331 = vmatprep.subr.mxu0 0.0
    %4332 = vmatpush1.xpose.msra.mxu0 0.0
    %4333 = vmatprep.subr.mxu0 0.0
    %4334 = vmatpush1.xpose.msra.mxu0 0.0
    %4335 = vmatprep.subr.mxu0 0.0
    %4336 = vmatpush1.xpose.msra.mxu0 0.0
    %4337 = vmatprep.subr.mxu0 0.0
    %4338 = vmatpush1.xpose.msra.mxu0 0.0
    %4339 = vmatprep.subr.mxu0 0.0
    %4340 = vmatpush1.xpose.msra.mxu0 0.0
    %4341 = vmatprep.subr.mxu0 0.0
    %4342 = vmatpush1.xpose.msra.mxu0 0.0
    %4343 = vmatprep.subr.mxu0 0.0
    %4344 = vmatpush1.xpose.msra.mxu0 0.0
    %4345 = vmatprep.mubr.f32.mxu0 0.0
    %4346 = vmatmul.mubr.f32.gmra.mrb[0].mxu0 %v4276
    %v4347 = vpop.f32.mrb[0].mxu0
    %v4348 = vadd.f32 %v3892, %v4347
    %v4349 = vpop.f32.mrb[0].mxu0
    %4350 = vdwg.mxu0
    %v4352 = vsel %vm1085, %v3272, 0
    %v4355 = vsel %vm1085, %v3564, 0
    %4357 = vmatprep.subr.mxu0 0.0
    %4358 = vmatpush1.xpose.msra.mxu0 %v4355
    %4359 = vmatprep.subr.mxu0 0.0
    %4360 = vmatpush1.xpose.msra.mxu0 0.0
    %4361 = vmatprep.subr.mxu0 0.0
    %4362 = vmatpush1.xpose.msra.mxu0 0.0
    %4363 = vmatprep.subr.mxu0 0.0
    %4364 = vmatpush1.xpose.msra.mxu0 0.0
    %4365 = vmatprep.subr.mxu0 0.0
    %4366 = vmatpush1.xpose.msra.mxu0 0.0
    %4367 = vmatprep.subr.mxu0 0.0
    %4368 = vmatpush1.xpose.msra.mxu0 0.0
    %4369 = vmatprep.subr.mxu0 0.0
    %4370 = vmatpush1.xpose.msra.mxu0 0.0
    %4371 = vmatprep.subr.mxu0 0.0
    %4372 = vmatpush1.xpose.msra.mxu0 0.0
    %4373 = vmatprep.subr.mxu0 0.0
    %4374 = vmatpush1.xpose.msra.mxu0 0.0
    %4375 = vmatprep.subr.mxu0 0.0
    %4376 = vmatpush1.xpose.msra.mxu0 0.0
    %4377 = vmatprep.subr.mxu0 0.0
    %4378 = vmatpush1.xpose.msra.mxu0 0.0
    %4379 = vmatprep.subr.mxu0 0.0
    %4380 = vmatpush1.xpose.msra.mxu0 0.0
    %4381 = vmatprep.subr.mxu0 0.0
    %4382 = vmatpush1.xpose.msra.mxu0 0.0
    %4383 = vmatprep.subr.mxu0 0.0
    %4384 = vmatpush1.xpose.msra.mxu0 0.0
    %4385 = vmatprep.subr.mxu0 0.0
    %4386 = vmatpush1.xpose.msra.mxu0 0.0
    %4387 = vmatprep.subr.mxu0 0.0
    %4388 = vmatpush1.xpose.msra.mxu0 0.0
    %4389 = vmatprep.subr.mxu0 0.0
    %4390 = vmatpush1.xpose.msra.mxu0 0.0
    %4391 = vmatprep.subr.mxu0 0.0
    %4392 = vmatpush1.xpose.msra.mxu0 0.0
    %4393 = vmatprep.subr.mxu0 0.0
    %4394 = vmatpush1.xpose.msra.mxu0 0.0
    %4395 = vmatprep.subr.mxu0 0.0
    %4396 = vmatpush1.xpose.msra.mxu0 0.0
    %4397 = vmatprep.subr.mxu0 0.0
    %4398 = vmatpush1.xpose.msra.mxu0 0.0
    %4399 = vmatprep.subr.mxu0 0.0
    %4400 = vmatpush1.xpose.msra.mxu0 0.0
    %4401 = vmatprep.subr.mxu0 0.0
    %4402 = vmatpush1.xpose.msra.mxu0 0.0
    %4403 = vmatprep.subr.mxu0 0.0
    %4404 = vmatpush1.xpose.msra.mxu0 0.0
    %4405 = vmatprep.subr.mxu0 0.0
    %4406 = vmatpush1.xpose.msra.mxu0 0.0
    %4407 = vmatprep.subr.mxu0 0.0
    %4408 = vmatpush1.xpose.msra.mxu0 0.0
    %4409 = vmatprep.subr.mxu0 0.0
    %4410 = vmatpush1.xpose.msra.mxu0 0.0
    %4411 = vmatprep.subr.mxu0 0.0
    %4412 = vmatpush1.xpose.msra.mxu0 0.0
    %4413 = vmatprep.subr.mxu0 0.0
    %4414 = vmatpush1.xpose.msra.mxu0 0.0
    %4415 = vmatprep.subr.mxu0 0.0
    %4416 = vmatpush1.xpose.msra.mxu0 0.0
    %4417 = vmatprep.subr.mxu0 0.0
    %4418 = vmatpush1.xpose.msra.mxu0 0.0
    %4419 = vmatprep.subr.mxu0 0.0
    %4420 = vmatpush1.xpose.msra.mxu0 0.0
    %4421 = vmatprep.mubr.f32.mxu0 0.0
    %4422 = vmatmul.mubr.f32.gmra.mrb[0].mxu0 %v4352
    %v4423 = vpop.f32.mrb[0].mxu0
    %v4424 = vadd.f32 %v3892, %v4423
    %v4425 = vpop.f32.mrb[0].mxu0
    %4426 = vdwg.mxu0
    %v4428 = vsel %vm1085, %v3273, 0
    %v4431 = vsel %vm1085, %v3565, 0
    %4433 = vmatprep.subr.mxu0 0.0
    %4434 = vmatpush1.xpose.msra.mxu0 %v4431
    %4435 = vmatprep.subr.mxu0 0.0
    %4436 = vmatpush1.xpose.msra.mxu0 0.0
    %4437 = vmatprep.subr.mxu0 0.0
    %4438 = vmatpush1.xpose.msra.mxu0 0.0
    %4439 = vmatprep.subr.mxu0 0.0
    %4440 = vmatpush1.xpose.msra.mxu0 0.0
    %4441 = vmatprep.subr.mxu0 0.0
    %4442 = vmatpush1.xpose.msra.mxu0 0.0
    %4443 = vmatprep.subr.mxu0 0.0
    %4444 = vmatpush1.xpose.msra.mxu0 0.0
    %4445 = vmatprep.subr.mxu0 0.0
    %4446 = vmatpush1.xpose.msra.mxu0 0.0
    %4447 = vmatprep.subr.mxu0 0.0
    %4448 = vmatpush1.xpose.msra.mxu0 0.0
    %4449 = vmatprep.subr.mxu0 0.0
    %4450 = vmatpush1.xpose.msra.mxu0 0.0
    %4451 = vmatprep.subr.mxu0 0.0
    %4452 = vmatpush1.xpose.msra.mxu0 0.0
    %4453 = vmatprep.subr.mxu0 0.0
    %4454 = vmatpush1.xpose.msra.mxu0 0.0
    %4455 = vmatprep.subr.mxu0 0.0
    %4456 = vmatpush1.xpose.msra.mxu0 0.0
    %4457 = vmatprep.subr.mxu0 0.0
    %4458 = vmatpush1.xpose.msra.mxu0 0.0
    %4459 = vmatprep.subr.mxu0 0.0
    %4460 = vmatpush1.xpose.msra.mxu0 0.0
    %4461 = vmatprep.subr.mxu0 0.0
    %4462 = vmatpush1.xpose.msra.mxu0 0.0
    %4463 = vmatprep.subr.mxu0 0.0
    %4464 = vmatpush1.xpose.msra.mxu0 0.0
    %4465 = vmatprep.subr.mxu0 0.0
    %4466 = vmatpush1.xpose.msra.mxu0 0.0
    %4467 = vmatprep.subr.mxu0 0.0
    %4468 = vmatpush1.xpose.msra.mxu0 0.0
    %4469 = vmatprep.subr.mxu0 0.0
    %4470 = vmatpush1.xpose.msra.mxu0 0.0
    %4471 = vmatprep.subr.mxu0 0.0
    %4472 = vmatpush1.xpose.msra.mxu0 0.0
    %4473 = vmatprep.subr.mxu0 0.0
    %4474 = vmatpush1.xpose.msra.mxu0 0.0
    %4475 = vmatprep.subr.mxu0 0.0
    %4476 = vmatpush1.xpose.msra.mxu0 0.0
    %4477 = vmatprep.subr.mxu0 0.0
    %4478 = vmatpush1.xpose.msra.mxu0 0.0
    %4479 = vmatprep.subr.mxu0 0.0
    %4480 = vmatpush1.xpose.msra.mxu0 0.0
    %4481 = vmatprep.subr.mxu0 0.0
    %4482 = vmatpush1.xpose.msra.mxu0 0.0
    %4483 = vmatprep.subr.mxu0 0.0
    %4484 = vmatpush1.xpose.msra.mxu0 0.0
    %4485 = vmatprep.subr.mxu0 0.0
    %4486 = vmatpush1.xpose.msra.mxu0 0.0
    %4487 = vmatprep.subr.mxu0 0.0
    %4488 = vmatpush1.xpose.msra.mxu0 0.0
    %4489 = vmatprep.subr.mxu0 0.0
    %4490 = vmatpush1.xpose.msra.mxu0 0.0
    %4491 = vmatprep.subr.mxu0 0.0
    %4492 = vmatpush1.xpose.msra.mxu0 0.0
    %4493 = vmatprep.subr.mxu0 0.0
    %4494 = vmatpush1.xpose.msra.mxu0 0.0
    %4495 = vmatprep.subr.mxu0 0.0
    %4496 = vmatpush1.xpose.msra.mxu0 0.0
    %4497 = vmatprep.mubr.f32.mxu0 0.0
    %4498 = vmatmul.mubr.f32.gmra.mrb[0].mxu0 %v4428
    %v4499 = vpop.f32.mrb[0].mxu0
    %v4500 = vadd.f32 %v3892, %v4499
    %v4501 = vpop.f32.mrb[0].mxu0
    %4502 = vdwg.mxu0
    %v4503 = vsel %vm1085, %v3968, -inf
    %4504 = vmax.xlane.f32.xlu0 %v4503
    %v4505 = vpop.xlane.xlu0 %4504
    %v4506 = vsel %vm1085, %v4044, -inf
    %4507 = vmax.xlane.f32.xlu0 %v4506
    %v4508 = vpop.xlane.xlu0 %4507
    %v4509 = vsel %vm1085, %v4120, -inf
    %4510 = vmax.xlane.f32.xlu0 %v4509
    %v4511 = vpop.xlane.xlu0 %4510
    %v4512 = vsel %vm1085, %v4196, -inf
    %4513 = vmax.xlane.f32.xlu0 %v4512
    %v4514 = vpop.xlane.xlu0 %4513
    %v4515 = vsel %vm1085, %v4272, -inf
    %4516 = vmax.xlane.f32.xlu0 %v4515
    %v4517 = vpop.xlane.xlu0 %4516
    %v4518 = vsel %vm1085, %v4348, -inf
    %4519 = vmax.xlane.f32.xlu0 %v4518
    %v4520 = vpop.xlane.xlu0 %4519
    %v4521 = vsel %vm1085, %v4424, -inf
    %4522 = vmax.xlane.f32.xlu0 %v4521
    %v4523 = vpop.xlane.xlu0 %4522
    %v4524 = vsel %vm1085, %v4500, -inf
    %4525 = vmax.xlane.f32.xlu0 %v4524
    %v4526 = vpop.xlane.xlu0 %4525
    %v4527 = vsub.f32 %v3968, %v4505
    %v4528 = vsub.f32 %v4044, %v4508
    %v4529 = vsub.f32 %v4120, %v4511
    %v4530 = vsub.f32 %v4196, %v4514
    %v4531 = vsub.f32 %v4272, %v4517
    %v4532 = vsub.f32 %v4348, %v4520
    %v4533 = vsub.f32 %v4424, %v4523
    %v4534 = vsub.f32 %v4500, %v4526
    %v4535 = vmul.f32 %v4527, 1.442695
    %v4536 = vpow.pop %v4535
    %v4537 = vmul.f32 %v4528, 1.442695
    %v4538 = vpow.pop %v4537
    %v4539 = vmul.f32 %v4529, 1.442695
    %v4540 = vpow.pop %v4539
    %v4541 = vmul.f32 %v4530, 1.442695
    %v4542 = vpow.pop %v4541
    %v4543 = vmul.f32 %v4531, 1.442695
    %v4544 = vpow.pop %v4543
    %v4545 = vmul.f32 %v4532, 1.442695
    %v4546 = vpow.pop %v4545
    %v4547 = vmul.f32 %v4533, 1.442695
    %v4548 = vpow.pop %v4547
    %v4549 = vmul.f32 %v4534, 1.442695
    %v4550 = vpow.pop %v4549
    %v4551 = vsel %vm1085, %v4536, 0.0
    %4552 = vadd.xlane.f32.xlu0 %v4551
    %v4553 = vpop.xlane.xlu0 %4552
    %v4554 = vsel %vm1085, %v4538, 0.0
    %4555 = vadd.xlane.f32.xlu0 %v4554
    %v4556 = vpop.xlane.xlu0 %4555
    %v4557 = vsel %vm1085, %v4540, 0.0
    %4558 = vadd.xlane.f32.xlu0 %v4557
    %v4559 = vpop.xlane.xlu0 %4558
    %v4560 = vsel %vm1085, %v4542, 0.0
    %4561 = vadd.xlane.f32.xlu0 %v4560
    %v4562 = vpop.xlane.xlu0 %4561
    %v4563 = vsel %vm1085, %v4544, 0.0
    %4564 = vadd.xlane.f32.xlu0 %v4563
    %v4565 = vpop.xlane.xlu0 %4564
    %v4566 = vsel %vm1085, %v4546, 0.0
    %4567 = vadd.xlane.f32.xlu0 %v4566
    %v4568 = vpop.xlane.xlu0 %4567
    %v4569 = vsel %vm1085, %v4548, 0.0
    %4570 = vadd.xlane.f32.xlu0 %v4569
    %v4571 = vpop.xlane.xlu0 %4570
    %v4572 = vsel %vm1085, %v4550, 0.0
    %4573 = vadd.xlane.f32.xlu0 %v4572
    %v4574 = vpop.xlane.xlu0 %4573
    %v4575 = vrcp.pop %v4553
    %v4576 = vrcp.pop %v4556
    %v4577 = vrcp.pop %v4559
    %v4578 = vrcp.pop %v4562
    %v4579 = vrcp.pop %v4565
    %v4580 = vrcp.pop %v4568
    %v4581 = vrcp.pop %v4571
    %v4582 = vrcp.pop %v4574
    %v4583 = vmul.f32 %v4536, %v4575
    %v4584 = vmul.f32 %v4538, %v4576
    %v4585 = vmul.f32 %v4540, %v4577
    %v4586 = vmul.f32 %v4542, %v4578
    %v4587 = vmul.f32 %v4544, %v4579
    %v4588 = vmul.f32 %v4546, %v4580
    %v4589 = vmul.f32 %v4548, %v4581
    %v4590 = vmul.f32 %v4550, %v4582
    %v4592 = vsel %vm1085, %v4583, 0
    %4594 = vmatprep.subr.mxu0 0.0
    %4595 = vmatpush1.msra.mxu0 %v3790
    %4596 = vmatprep.subr.mxu0 0.0
    %4597 = vmatpush1.msra.mxu0 0.0
    %4598 = vmatprep.subr.mxu0 0.0
    %4599 = vmatpush1.msra.mxu0 0.0
    %4600 = vmatprep.subr.mxu0 0.0
    %4601 = vmatpush1.msra.mxu0 0.0
    %4602 = vmatprep.subr.mxu0 0.0
    %4603 = vmatpush1.msra.mxu0 0.0
    %4604 = vmatprep.subr.mxu0 0.0
    %4605 = vmatpush1.msra.mxu0 0.0
    %4606 = vmatprep.subr.mxu0 0.0
    %4607 = vmatpush1.msra.mxu0 0.0
    %4608 = vmatprep.subr.mxu0 0.0
    %4609 = vmatpush1.msra.mxu0 0.0
    %4610 = vmatprep.subr.mxu0 0.0
    %4611 = vmatpush1.msra.mxu0 0.0
    %4612 = vmatprep.subr.mxu0 0.0
    %4613 = vmatpush1.msra.mxu0 0.0
    %4614 = vmatprep.subr.mxu0 0.0
    %4615 = vmatpush1.msra.mxu0 0.0
    %4616 = vmatprep.subr.mxu0 0.0
    %4617 = vmatpush1.msra.mxu0 0.0
    %4618 = vmatprep.subr.mxu0 0.0
    %4619 = vmatpush1.msra.mxu0 0.0
    %4620 = vmatprep.subr.mxu0 0.0
    %4621 = vmatpush1.msra.mxu0 0.0
    %4622 = vmatprep.subr.mxu0 0.0
    %4623 = vmatpush1.msra.mxu0 0.0
    %4624 = vmatprep.subr.mxu0 0.0
    %4625 = vmatpush1.msra.mxu0 0.0
    %4626 = vmatprep.subr.mxu0 0.0
    %4627 = vmatpush1.msra.mxu0 0.0
    %4628 = vmatprep.subr.mxu0 0.0
    %4629 = vmatpush1.msra.mxu0 0.0
    %4630 = vmatprep.subr.mxu0 0.0
    %4631 = vmatpush1.msra.mxu0 0.0
    %4632 = vmatprep.subr.mxu0 0.0
    %4633 = vmatpush1.msra.mxu0 0.0
    %4634 = vmatprep.subr.mxu0 0.0
    %4635 = vmatpush1.msra.mxu0 0.0
    %4636 = vmatprep.subr.mxu0 0.0
    %4637 = vmatpush1.msra.mxu0 0.0
    %4638 = vmatprep.subr.mxu0 0.0
    %4639 = vmatpush1.msra.mxu0 0.0
    %4640 = vmatprep.subr.mxu0 0.0
    %4641 = vmatpush1.msra.mxu0 0.0
    %4642 = vmatprep.subr.mxu0 0.0
    %4643 = vmatpush1.msra.mxu0 0.0
    %4644 = vmatprep.subr.mxu0 0.0
    %4645 = vmatpush1.msra.mxu0 0.0
    %4646 = vmatprep.subr.mxu0 0.0
    %4647 = vmatpush1.msra.mxu0 0.0
    %4648 = vmatprep.subr.mxu0 0.0
    %4649 = vmatpush1.msra.mxu0 0.0
    %4650 = vmatprep.subr.mxu0 0.0
    %4651 = vmatpush1.msra.mxu0 0.0
    %4652 = vmatprep.subr.mxu0 0.0
    %4653 = vmatpush1.msra.mxu0 0.0
    %4654 = vmatprep.subr.mxu0 0.0
    %4655 = vmatpush1.msra.mxu0 0.0
    %4656 = vmatprep.subr.mxu0 0.0
    %4657 = vmatpush1.msra.mxu0 0.0
    %4658 = vmatprep.mubr.f32.mxu0 0.0
    %4659 = vmatmul.mubr.f32.gmra.mrb[0].mxu0 %v4592
    %v4660 = vpop.f32.mrb[0].mxu0
    %v4661 = vadd.f32 0.0, %v4660
    %v4662 = vpop.f32.mrb[0].mxu0
    %4663 = vdwg.mxu0
    %v4665 = vsel %vm1085, %v4584, 0
    %4667 = vmatprep.subr.mxu0 0.0
    %4668 = vmatpush1.msra.mxu0 %v3791
    %4669 = vmatprep.subr.mxu0 0.0
    %4670 = vmatpush1.msra.mxu0 0.0
    %4671 = vmatprep.subr.mxu0 0.0
    %4672 = vmatpush1.msra.mxu0 0.0
    %4673 = vmatprep.subr.mxu0 0.0
    %4674 = vmatpush1.msra.mxu0 0.0
    %4675 = vmatprep.subr.mxu0 0.0
    %4676 = vmatpush1.msra.mxu0 0.0
    %4677 = vmatprep.subr.mxu0 0.0
    %4678 = vmatpush1.msra.mxu0 0.0
    %4679 = vmatprep.subr.mxu0 0.0
    %4680 = vmatpush1.msra.mxu0 0.0
    %4681 = vmatprep.subr.mxu0 0.0
    %4682 = vmatpush1.msra.mxu0 0.0
    %4683 = vmatprep.subr.mxu0 0.0
    %4684 = vmatpush1.msra.mxu0 0.0
    %4685 = vmatprep.subr.mxu0 0.0
    %4686 = vmatpush1.msra.mxu0 0.0
    %4687 = vmatprep.subr.mxu0 0.0
    %4688 = vmatpush1.msra.mxu0 0.0
    %4689 = vmatprep.subr.mxu0 0.0
    %4690 = vmatpush1.msra.mxu0 0.0
    %4691 = vmatprep.subr.mxu0 0.0
    %4692 = vmatpush1.msra.mxu0 0.0
    %4693 = vmatprep.subr.mxu0 0.0
    %4694 = vmatpush1.msra.mxu0 0.0
    %4695 = vmatprep.subr.mxu0 0.0
    %4696 = vmatpush1.msra.mxu0 0.0
    %4697 = vmatprep.subr.mxu0 0.0
    %4698 = vmatpush1.msra.mxu0 0.0
    %4699 = vmatprep.subr.mxu0 0.0
    %4700 = vmatpush1.msra.mxu0 0.0
    %4701 = vmatprep.subr.mxu0 0.0
    %4702 = vmatpush1.msra.mxu0 0.0
    %4703 = vmatprep.subr.mxu0 0.0
    %4704 = vmatpush1.msra.mxu0 0.0
    %4705 = vmatprep.subr.mxu0 0.0
    %4706 = vmatpush1.msra.mxu0 0.0
    %4707 = vmatprep.subr.mxu0 0.0
    %4708 = vmatpush1.msra.mxu0 0.0
    %4709 = vmatprep.subr.mxu0 0.0
    %4710 = vmatpush1.msra.mxu0 0.0
    %4711 = vmatprep.subr.mxu0 0.0
    %4712 = vmatpush1.msra.mxu0 0.0
    %4713 = vmatprep.subr.mxu0 0.0
    %4714 = vmatpush1.msra.mxu0 0.0
    %4715 = vmatprep.subr.mxu0 0.0
    %4716 = vmatpush1.msra.mxu0 0.0
    %4717 = vmatprep.subr.mxu0 0.0
    %4718 = vmatpush1.msra.mxu0 0.0
    %4719 = vmatprep.subr.mxu0 0.0
    %4720 = vmatpush1.msra.mxu0 0.0
    %4721 = vmatprep.subr.mxu0 0.0
    %4722 = vmatpush1.msra.mxu0 0.0
    %4723 = vmatprep.subr.mxu0 0.0
    %4724 = vmatpush1.msra.mxu0 0.0
    %4725 = vmatprep.subr.mxu0 0.0
    %4726 = vmatpush1.msra.mxu0 0.0
    %4727 = vmatprep.subr.mxu0 0.0
    %4728 = vmatpush1.msra.mxu0 0.0
    %4729 = vmatprep.subr.mxu0 0.0
    %4730 = vmatpush1.msra.mxu0 0.0
    %4731 = vmatprep.mubr.f32.mxu0 0.0
    %4732 = vmatmul.mubr.f32.gmra.mrb[0].mxu0 %v4665
    %v4733 = vpop.f32.mrb[0].mxu0
    %v4734 = vadd.f32 0.0, %v4733
    %v4735 = vpop.f32.mrb[0].mxu0
    %4736 = vdwg.mxu0
    %v4738 = vsel %vm1085, %v4585, 0
    %4740 = vmatprep.subr.mxu0 0.0
    %4741 = vmatpush1.msra.mxu0 %v3792
    %4742 = vmatprep.subr.mxu0 0.0
    %4743 = vmatpush1.msra.mxu0 0.0
    %4744 = vmatprep.subr.mxu0 0.0
    %4745 = vmatpush1.msra.mxu0 0.0
    %4746 = vmatprep.subr.mxu0 0.0
    %4747 = vmatpush1.msra.mxu0 0.0
    %4748 = vmatprep.subr.mxu0 0.0
    %4749 = vmatpush1.msra.mxu0 0.0
    %4750 = vmatprep.subr.mxu0 0.0
    %4751 = vmatpush1.msra.mxu0 0.0
    %4752 = vmatprep.subr.mxu0 0.0
    %4753 = vmatpush1.msra.mxu0 0.0
    %4754 = vmatprep.subr.mxu0 0.0
    %4755 = vmatpush1.msra.mxu0 0.0
    %4756 = vmatprep.subr.mxu0 0.0
    %4757 = vmatpush1.msra.mxu0 0.0
    %4758 = vmatprep.subr.mxu0 0.0
    %4759 = vmatpush1.msra.mxu0 0.0
    %4760 = vmatprep.subr.mxu0 0.0
    %4761 = vmatpush1.msra.mxu0 0.0
    %4762 = vmatprep.subr.mxu0 0.0
    %4763 = vmatpush1.msra.mxu0 0.0
    %4764 = vmatprep.subr.mxu0 0.0
    %4765 = vmatpush1.msra.mxu0 0.0
    %4766 = vmatprep.subr.mxu0 0.0
    %4767 = vmatpush1.msra.mxu0 0.0
    %4768 = vmatprep.subr.mxu0 0.0
    %4769 = vmatpush1.msra.mxu0 0.0
    %4770 = vmatprep.subr.mxu0 0.0
    %4771 = vmatpush1.msra.mxu0 0.0
    %4772 = vmatprep.subr.mxu0 0.0
    %4773 = vmatpush1.msra.mxu0 0.0
    %4774 = vmatprep.subr.mxu0 0.0
    %4775 = vmatpush1.msra.mxu0 0.0
    %4776 = vmatprep.subr.mxu0 0.0
    %4777 = vmatpush1.msra.mxu0 0.0
    %4778 = vmatprep.subr.mxu0 0.0
    %4779 = vmatpush1.msra.mxu0 0.0
    %4780 = vmatprep.subr.mxu0 0.0
    %4781 = vmatpush1.msra.mxu0 0.0
    %4782 = vmatprep.subr.mxu0 0.0
    %4783 = vmatpush1.msra.mxu0 0.0
    %4784 = vmatprep.subr.mxu0 0.0
    %4785 = vmatpush1.msra.mxu0 0.0
    %4786 = vmatprep.subr.mxu0 0.0
    %4787 = vmatpush1.msra.mxu0 0.0
    %4788 = vmatprep.subr.mxu0 0.0
    %4789 = vmatpush1.msra.mxu0 0.0
    %4790 = vmatprep.subr.mxu0 0.0
    %4791 = vmatpush1.msra.mxu0 0.0
    %4792 = vmatprep.subr.mxu0 0.0
    %4793 = vmatpush1.msra.mxu0 0.0
    %4794 = vmatprep.subr.mxu0 0.0
    %4795 = vmatpush1.msra.mxu0 0.0
    %4796 = vmatprep.subr.mxu0 0.0
    %4797 = vmatpush1.msra.mxu0 0.0
    %4798 = vmatprep.subr.mxu0 0.0
    %4799 = vmatpush1.msra.mxu0 0.0
    %4800 = vmatprep.subr.mxu0 0.0
    %4801 = vmatpush1.msra.mxu0 0.0
    %4802 = vmatprep.subr.mxu0 0.0
    %4803 = vmatpush1.msra.mxu0 0.0
    %4804 = vmatprep.mubr.f32.mxu0 0.0
    %4805 = vmatmul.mubr.f32.gmra.mrb[0].mxu0 %v4738
    %v4806 = vpop.f32.mrb[0].mxu0
    %v4807 = vadd.f32 0.0, %v4806
    %v4808 = vpop.f32.mrb[0].mxu0
    %4809 = vdwg.mxu0
    %v4811 = vsel %vm1085, %v4586, 0
    %4813 = vmatprep.subr.mxu0 0.0
    %4814 = vmatpush1.msra.mxu0 %v3793
    %4815 = vmatprep.subr.mxu0 0.0
    %4816 = vmatpush1.msra.mxu0 0.0
    %4817 = vmatprep.subr.mxu0 0.0
    %4818 = vmatpush1.msra.mxu0 0.0
    %4819 = vmatprep.subr.mxu0 0.0
    %4820 = vmatpush1.msra.mxu0 0.0
    %4821 = vmatprep.subr.mxu0 0.0
    %4822 = vmatpush1.msra.mxu0 0.0
    %4823 = vmatprep.subr.mxu0 0.0
    %4824 = vmatpush1.msra.mxu0 0.0
    %4825 = vmatprep.subr.mxu0 0.0
    %4826 = vmatpush1.msra.mxu0 0.0
    %4827 = vmatprep.subr.mxu0 0.0
    %4828 = vmatpush1.msra.mxu0 0.0
    %4829 = vmatprep.subr.mxu0 0.0
    %4830 = vmatpush1.msra.mxu0 0.0
    %4831 = vmatprep.subr.mxu0 0.0
    %4832 = vmatpush1.msra.mxu0 0.0
    %4833 = vmatprep.subr.mxu0 0.0
    %4834 = vmatpush1.msra.mxu0 0.0
    %4835 = vmatprep.subr.mxu0 0.0
    %4836 = vmatpush1.msra.mxu0 0.0
    %4837 = vmatprep.subr.mxu0 0.0
    %4838 = vmatpush1.msra.mxu0 0.0
    %4839 = vmatprep.subr.mxu0 0.0
    %4840 = vmatpush1.msra.mxu0 0.0
    %4841 = vmatprep.subr.mxu0 0.0
    %4842 = vmatpush1.msra.mxu0 0.0
    %4843 = vmatprep.subr.mxu0 0.0
    %4844 = vmatpush1.msra.mxu0 0.0
    %4845 = vmatprep.subr.mxu0 0.0
    %4846 = vmatpush1.msra.mxu0 0.0
    %4847 = vmatprep.subr.mxu0 0.0
    %4848 = vmatpush1.msra.mxu0 0.0
    %4849 = vmatprep.subr.mxu0 0.0
    %4850 = vmatpush1.msra.mxu0 0.0
    %4851 = vmatprep.subr.mxu0 0.0
    %4852 = vmatpush1.msra.mxu0 0.0
    %4853 = vmatprep.subr.mxu0 0.0
    %4854 = vmatpush1.msra.mxu0 0.0
    %4855 = vmatprep.subr.mxu0 0.0
    %4856 = vmatpush1.msra.mxu0 0.0
    %4857 = vmatprep.subr.mxu0 0.0
    %4858 = vmatpush1.msra.mxu0 0.0
    %4859 = vmatprep.subr.mxu0 0.0
    %4860 = vmatpush1.msra.mxu0 0.0
    %4861 = vmatprep.subr.mxu0 0.0
    %4862 = vmatpush1.msra.mxu0 0.0
    %4863 = vmatprep.subr.mxu0 0.0
    %4864 = vmatpush1.msra.mxu0 0.0
    %4865 = vmatprep.subr.mxu0 0.0
    %4866 = vmatpush1.msra.mxu0 0.0
    %4867 = vmatprep.subr.mxu0 0.0
    %4868 = vmatpush1.msra.mxu0 0.0
    %4869 = vmatprep.subr.mxu0 0.0
    %4870 = vmatpush1.msra.mxu0 0.0
    %4871 = vmatprep.subr.mxu0 0.0
    %4872 = vmatpush1.msra.mxu0 0.0
    %4873 = vmatprep.subr.mxu0 0.0
    %4874 = vmatpush1.msra.mxu0 0.0
    %4875 = vmatprep.subr.mxu0 0.0
    %4876 = vmatpush1.msra.mxu0 0.0
    %4877 = vmatprep.mubr.f32.mxu0 0.0
    %4878 = vmatmul.mubr.f32.gmra.mrb[0].mxu0 %v4811
    %v4879 = vpop.f32.mrb[0].mxu0
    %v4880 = vadd.f32 0.0, %v4879
    %v4881 = vpop.f32.mrb[0].mxu0
    %4882 = vdwg.mxu0
    %v4884 = vsel %vm1085, %v4587, 0
    %4886 = vmatprep.subr.mxu0 0.0
    %4887 = vmatpush1.msra.mxu0 %v3858
    %4888 = vmatprep.subr.mxu0 0.0
    %4889 = vmatpush1.msra.mxu0 0.0
    %4890 = vmatprep.subr.mxu0 0.0
    %4891 = vmatpush1.msra.mxu0 0.0
    %4892 = vmatprep.subr.mxu0 0.0
    %4893 = vmatpush1.msra.mxu0 0.0
    %4894 = vmatprep.subr.mxu0 0.0
    %4895 = vmatpush1.msra.mxu0 0.0
    %4896 = vmatprep.subr.mxu0 0.0
    %4897 = vmatpush1.msra.mxu0 0.0
    %4898 = vmatprep.subr.mxu0 0.0
    %4899 = vmatpush1.msra.mxu0 0.0
    %4900 = vmatprep.subr.mxu0 0.0
    %4901 = vmatpush1.msra.mxu0 0.0
    %4902 = vmatprep.subr.mxu0 0.0
    %4903 = vmatpush1.msra.mxu0 0.0
    %4904 = vmatprep.subr.mxu0 0.0
    %4905 = vmatpush1.msra.mxu0 0.0
    %4906 = vmatprep.subr.mxu0 0.0
    %4907 = vmatpush1.msra.mxu0 0.0
    %4908 = vmatprep.subr.mxu0 0.0
    %4909 = vmatpush1.msra.mxu0 0.0
    %4910 = vmatprep.subr.mxu0 0.0
    %4911 = vmatpush1.msra.mxu0 0.0
    %4912 = vmatprep.subr.mxu0 0.0
    %4913 = vmatpush1.msra.mxu0 0.0
    %4914 = vmatprep.subr.mxu0 0.0
    %4915 = vmatpush1.msra.mxu0 0.0
    %4916 = vmatprep.subr.mxu0 0.0
    %4917 = vmatpush1.msra.mxu0 0.0
    %4918 = vmatprep.subr.mxu0 0.0
    %4919 = vmatpush1.msra.mxu0 0.0
    %4920 = vmatprep.subr.mxu0 0.0
    %4921 = vmatpush1.msra.mxu0 0.0
    %4922 = vmatprep.subr.mxu0 0.0
    %4923 = vmatpush1.msra.mxu0 0.0
    %4924 = vmatprep.subr.mxu0 0.0
    %4925 = vmatpush1.msra.mxu0 0.0
    %4926 = vmatprep.subr.mxu0 0.0
    %4927 = vmatpush1.msra.mxu0 0.0
    %4928 = vmatprep.subr.mxu0 0.0
    %4929 = vmatpush1.msra.mxu0 0.0
    %4930 = vmatprep.subr.mxu0 0.0
    %4931 = vmatpush1.msra.mxu0 0.0
    %4932 = vmatprep.subr.mxu0 0.0
    %4933 = vmatpush1.msra.mxu0 0.0
    %4934 = vmatprep.subr.mxu0 0.0
    %4935 = vmatpush1.msra.mxu0 0.0
    %4936 = vmatprep.subr.mxu0 0.0
    %4937 = vmatpush1.msra.mxu0 0.0
    %4938 = vmatprep.subr.mxu0 0.0
    %4939 = vmatpush1.msra.mxu0 0.0
    %4940 = vmatprep.subr.mxu0 0.0
    %4941 = vmatpush1.msra.mxu0 0.0
    %4942 = vmatprep.subr.mxu0 0.0
    %4943 = vmatpush1.msra.mxu0 0.0
    %4944 = vmatprep.subr.mxu0 0.0
    %4945 = vmatpush1.msra.mxu0 0.0
    %4946 = vmatprep.subr.mxu0 0.0
    %4947 = vmatpush1.msra.mxu0 0.0
    %4948 = vmatprep.subr.mxu0 0.0
    %4949 = vmatpush1.msra.mxu0 0.0
    %4950 = vmatprep.mubr.f32.mxu0 0.0
    %4951 = vmatmul.mubr.f32.gmra.mrb[0].mxu0 %v4884
    %v4952 = vpop.f32.mrb[0].mxu0
    %v4953 = vadd.f32 0.0, %v4952
    %v4954 = vpop.f32.mrb[0].mxu0
    %4955 = vdwg.mxu0
    %v4957 = vsel %vm1085, %v4588, 0
    %4959 = vmatprep.subr.mxu0 0.0
    %4960 = vmatpush1.msra.mxu0 %v3859
    %4961 = vmatprep.subr.mxu0 0.0
    %4962 = vmatpush1.msra.mxu0 0.0
    %4963 = vmatprep.subr.mxu0 0.0
    %4964 = vmatpush1.msra.mxu0 0.0
    %4965 = vmatprep.subr.mxu0 0.0
    %4966 = vmatpush1.msra.mxu0 0.0
    %4967 = vmatprep.subr.mxu0 0.0
    %4968 = vmatpush1.msra.mxu0 0.0
    %4969 = vmatprep.subr.mxu0 0.0
    %4970 = vmatpush1.msra.mxu0 0.0
    %4971 = vmatprep.subr.mxu0 0.0
    %4972 = vmatpush1.msra.mxu0 0.0
    %4973 = vmatprep.subr.mxu0 0.0
    %4974 = vmatpush1.msra.mxu0 0.0
    %4975 = vmatprep.subr.mxu0 0.0
    %4976 = vmatpush1.msra.mxu0 0.0
    %4977 = vmatprep.subr.mxu0 0.0
    %4978 = vmatpush1.msra.mxu0 0.0
    %4979 = vmatprep.subr.mxu0 0.0
    %4980 = vmatpush1.msra.mxu0 0.0
    %4981 = vmatprep.subr.mxu0 0.0
    %4982 = vmatpush1.msra.mxu0 0.0
    %4983 = vmatprep.subr.mxu0 0.0
    %4984 = vmatpush1.msra.mxu0 0.0
    %4985 = vmatprep.subr.mxu0 0.0
    %4986 = vmatpush1.msra.mxu0 0.0
    %4987 = vmatprep.subr.mxu0 0.0
    %4988 = vmatpush1.msra.mxu0 0.0
    %4989 = vmatprep.subr.mxu0 0.0
    %4990 = vmatpush1.msra.mxu0 0.0
    %4991 = vmatprep.subr.mxu0 0.0
    %4992 = vmatpush1.msra.mxu0 0.0
    %4993 = vmatprep.subr.mxu0 0.0
    %4994 = vmatpush1.msra.mxu0 0.0
    %4995 = vmatprep.subr.mxu0 0.0
    %4996 = vmatpush1.msra.mxu0 0.0
    %4997 = vmatprep.subr.mxu0 0.0
    %4998 = vmatpush1.msra.mxu0 0.0
    %4999 = vmatprep.subr.mxu0 0.0
    %5000 = vmatpush1.msra.mxu0 0.0
    %5001 = vmatprep.subr.mxu0 0.0
    %5002 = vmatpush1.msra.mxu0 0.0
    %5003 = vmatprep.subr.mxu0 0.0
    %5004 = vmatpush1.msra.mxu0 0.0
    %5005 = vmatprep.subr.mxu0 0.0
    %5006 = vmatpush1.msra.mxu0 0.0
    %5007 = vmatprep.subr.mxu0 0.0
    %5008 = vmatpush1.msra.mxu0 0.0
    %5009 = vmatprep.subr.mxu0 0.0
    %5010 = vmatpush1.msra.mxu0 0.0
    %5011 = vmatprep.subr.mxu0 0.0
    %5012 = vmatpush1.msra.mxu0 0.0
    %5013 = vmatprep.subr.mxu0 0.0
    %5014 = vmatpush1.msra.mxu0 0.0
    %5015 = vmatprep.subr.mxu0 0.0
    %5016 = vmatpush1.msra.mxu0 0.0
    %5017 = vmatprep.subr.mxu0 0.0
    %5018 = vmatpush1.msra.mxu0 0.0
    %5019 = vmatprep.subr.mxu0 0.0
    %5020 = vmatpush1.msra.mxu0 0.0
    %5021 = vmatprep.subr.mxu0 0.0
    %5022 = vmatpush1.msra.mxu0 0.0
    %5023 = vmatprep.mubr.f32.mxu0 0.0
    %5024 = vmatmul.mubr.f32.gmra.mrb[0].mxu0 %v4957
    %v5025 = vpop.f32.mrb[0].mxu0
    %v5026 = vadd.f32 0.0, %v5025
    %v5027 = vpop.f32.mrb[0].mxu0
    %5028 = vdwg.mxu0
    %v5030 = vsel %vm1085, %v4589, 0
    %5032 = vmatprep.subr.mxu0 0.0
    %5033 = vmatpush1.msra.mxu0 %v3860
    %5034 = vmatprep.subr.mxu0 0.0
    %5035 = vmatpush1.msra.mxu0 0.0
    %5036 = vmatprep.subr.mxu0 0.0
    %5037 = vmatpush1.msra.mxu0 0.0
    %5038 = vmatprep.subr.mxu0 0.0
    %5039 = vmatpush1.msra.mxu0 0.0
    %5040 = vmatprep.subr.mxu0 0.0
    %5041 = vmatpush1.msra.mxu0 0.0
    %5042 = vmatprep.subr.mxu0 0.0
    %5043 = vmatpush1.msra.mxu0 0.0
    %5044 = vmatprep.subr.mxu0 0.0
    %5045 = vmatpush1.msra.mxu0 0.0
    %5046 = vmatprep.subr.mxu0 0.0
    %5047 = vmatpush1.msra.mxu0 0.0
    %5048 = vmatprep.subr.mxu0 0.0
    %5049 = vmatpush1.msra.mxu0 0.0
    %5050 = vmatprep.subr.mxu0 0.0
    %5051 = vmatpush1.msra.mxu0 0.0
    %5052 = vmatprep.subr.mxu0 0.0
    %5053 = vmatpush1.msra.mxu0 0.0
    %5054 = vmatprep.subr.mxu0 0.0
    %5055 = vmatpush1.msra.mxu0 0.0
    %5056 = vmatprep.subr.mxu0 0.0
    %5057 = vmatpush1.msra.mxu0 0.0
    %5058 = vmatprep.subr.mxu0 0.0
    %5059 = vmatpush1.msra.mxu0 0.0
    %5060 = vmatprep.subr.mxu0 0.0
    %5061 = vmatpush1.msra.mxu0 0.0
    %5062 = vmatprep.subr.mxu0 0.0
    %5063 = vmatpush1.msra.mxu0 0.0
    %5064 = vmatprep.subr.mxu0 0.0
    %5065 = vmatpush1.msra.mxu0 0.0
    %5066 = vmatprep.subr.mxu0 0.0
    %5067 = vmatpush1.msra.mxu0 0.0
    %5068 = vmatprep.subr.mxu0 0.0
    %5069 = vmatpush1.msra.mxu0 0.0
    %5070 = vmatprep.subr.mxu0 0.0
    %5071 = vmatpush1.msra.mxu0 0.0
    %5072 = vmatprep.subr.mxu0 0.0
    %5073 = vmatpush1.msra.mxu0 0.0
    %5074 = vmatprep.subr.mxu0 0.0
    %5075 = vmatpush1.msra.mxu0 0.0
    %5076 = vmatprep.subr.mxu0 0.0
    %5077 = vmatpush1.msra.mxu0 0.0
    %5078 = vmatprep.subr.mxu0 0.0
    %5079 = vmatpush1.msra.mxu0 0.0
    %5080 = vmatprep.subr.mxu0 0.0
    %5081 = vmatpush1.msra.mxu0 0.0
    %5082 = vmatprep.subr.mxu0 0.0
    %5083 = vmatpush1.msra.mxu0 0.0
    %5084 = vmatprep.subr.mxu0 0.0
    %5085 = vmatpush1.msra.mxu0 0.0
    %5086 = vmatprep.subr.mxu0 0.0
    %5087 = vmatpush1.msra.mxu0 0.0
    %5088 = vmatprep.subr.mxu0 0.0
    %5089 = vmatpush1.msra.mxu0 0.0
    %5090 = vmatprep.subr.mxu0 0.0
    %5091 = vmatpush1.msra.mxu0 0.0
    %5092 = vmatprep.subr.mxu0 0.0
    %5093 = vmatpush1.msra.mxu0 0.0
    %5094 = vmatprep.subr.mxu0 0.0
    %5095 = vmatpush1.msra.mxu0 0.0
    %5096 = vmatprep.mubr.f32.mxu0 0.0
    %5097 = vmatmul.mubr.f32.gmra.mrb[0].mxu0 %v5030
    %v5098 = vpop.f32.mrb[0].mxu0
    %v5099 = vadd.f32 0.0, %v5098
    %v5100 = vpop.f32.mrb[0].mxu0
    %5101 = vdwg.mxu0
    %v5103 = vsel %vm1085, %v4590, 0
    %5105 = vmatprep.subr.mxu0 0.0
    %5106 = vmatpush1.msra.mxu0 %v3861
    %5107 = vmatprep.subr.mxu0 0.0
    %5108 = vmatpush1.msra.mxu0 0.0
    %5109 = vmatprep.subr.mxu0 0.0
    %5110 = vmatpush1.msra.mxu0 0.0
    %5111 = vmatprep.subr.mxu0 0.0
    %5112 = vmatpush1.msra.mxu0 0.0
    %5113 = vmatprep.subr.mxu0 0.0
    %5114 = vmatpush1.msra.mxu0 0.0
    %5115 = vmatprep.subr.mxu0 0.0
    %5116 = vmatpush1.msra.mxu0 0.0
    %5117 = vmatprep.subr.mxu0 0.0
    %5118 = vmatpush1.msra.mxu0 0.0
    %5119 = vmatprep.subr.mxu0 0.0
    %5120 = vmatpush1.msra.mxu0 0.0
    %5121 = vmatprep.subr.mxu0 0.0
    %5122 = vmatpush1.msra.mxu0 0.0
    %5123 = vmatprep.subr.mxu0 0.0
    %5124 = vmatpush1.msra.mxu0 0.0
    %5125 = vmatprep.subr.mxu0 0.0
    %5126 = vmatpush1.msra.mxu0 0.0
    %5127 = vmatprep.subr.mxu0 0.0
    %5128 = vmatpush1.msra.mxu0 0.0
    %5129 = vmatprep.subr.mxu0 0.0
    %5130 = vmatpush1.msra.mxu0 0.0
    %5131 = vmatprep.subr.mxu0 0.0
    %5132 = vmatpush1.msra.mxu0 0.0
    %5133 = vmatprep.subr.mxu0 0.0
    %5134 = vmatpush1.msra.mxu0 0.0
    %5135 = vmatprep.subr.mxu0 0.0
    %5136 = vmatpush1.msra.mxu0 0.0
    %5137 = vmatprep.subr.mxu0 0.0
    %5138 = vmatpush1.msra.mxu0 0.0
    %5139 = vmatprep.subr.mxu0 0.0
    %5140 = vmatpush1.msra.mxu0 0.0
    %5141 = vmatprep.subr.mxu0 0.0
    %5142 = vmatpush1.msra.mxu0 0.0
    %5143 = vmatprep.subr.mxu0 0.0
    %5144 = vmatpush1.msra.mxu0 0.0
    %5145 = vmatprep.subr.mxu0 0.0
    %5146 = vmatpush1.msra.mxu0 0.0
    %5147 = vmatprep.subr.mxu0 0.0
    %5148 = vmatpush1.msra.mxu0 0.0
    %5149 = vmatprep.subr.mxu0 0.0
    %5150 = vmatpush1.msra.mxu0 0.0
    %5151 = vmatprep.subr.mxu0 0.0
    %5152 = vmatpush1.msra.mxu0 0.0
    %5153 = vmatprep.subr.mxu0 0.0
    %5154 = vmatpush1.msra.mxu0 0.0
    %5155 = vmatprep.subr.mxu0 0.0
    %5156 = vmatpush1.msra.mxu0 0.0
    %5157 = vmatprep.subr.mxu0 0.0
    %5158 = vmatpush1.msra.mxu0 0.0
    %5159 = vmatprep.subr.mxu0 0.0
    %5160 = vmatpush1.msra.mxu0 0.0
    %5161 = vmatprep.subr.mxu0 0.0
    %5162 = vmatpush1.msra.mxu0 0.0
    %5163 = vmatprep.subr.mxu0 0.0
    %5164 = vmatpush1.msra.mxu0 0.0
    %5165 = vmatprep.subr.mxu0 0.0
    %5166 = vmatpush1.msra.mxu0 0.0
    %5167 = vmatprep.subr.mxu0 0.0
    %5168 = vmatpush1.msra.mxu0 0.0
    %5169 = vmatprep.mubr.f32.mxu0 0.0
    %5170 = vmatmul.mubr.f32.gmra.mrb[0].mxu0 %v5103
    %v5171 = vpop.f32.mrb[0].mxu0
    %v5172 = vadd.f32 0.0, %v5171
    %v5173 = vpop.f32.mrb[0].mxu0
    %5174 = vdwg.mxu0
    %v5175 = vcombine.low %v4661, %v4807
    %v5176 = vcombine.high %v4661, %v4807
    %v5178 = vunpack.c.l.s4 1983009808
    %v5179 = vunpack.c.0.s8 %v5178
    %v5180 = vlaneseq
    %v5181 = vshrl.u32 %v5180, 7
    %v5182 = vsub.s32 %v5179, %v5181
    %v5183 = vrot.slane %v5175, %v5182
    %v5185 = vunpack.c.l.s4 1983009808
    %v5186 = vunpack.c.0.s8 %v5185
    %v5187 = vlaneseq
    %v5188 = vshrl.u32 %v5187, 7
    %v5189 = vsub.s32 %v5186, %v5188
    %v5190 = vrot.slane %v5176, %v5189
    %v5191 = vcombine.low %v4734, %v4880
    %v5192 = vcombine.high %v4734, %v4880
    %v5194 = vunpack.c.l.s4 1983009808
    %v5195 = vunpack.c.0.s8 %v5194
    %v5196 = vlaneseq
    %v5197 = vshrl.u32 %v5196, 7
    %v5198 = vsub.s32 %v5195, %v5197
    %v5199 = vrot.slane %v5191, %v5198
    %v5201 = vunpack.c.l.s4 1983009808
    %v5202 = vunpack.c.0.s8 %v5201
    %v5203 = vlaneseq
    %v5204 = vshrl.u32 %v5203, 7
    %v5205 = vsub.s32 %v5202, %v5204
    %v5206 = vrot.slane %v5192, %v5205
    %v5207 = vcombine.low %v5183, %v5199
    %v5208 = vcombine.high %v5183, %v5199
    %v5210 = vunpack.c.l.s4 1934713408
    %v5211 = vunpack.c.0.s8 %v5210
    %v5212 = vlaneseq
    %v5213 = vshrl.u32 %v5212, 7
    %v5214 = vsub.s32 %v5211, %v5213
    %v5215 = vrot.slane %v5207, %v5214
    %v5217 = vunpack.c.l.s4 1934713408
    %v5218 = vunpack.c.0.s8 %v5217
    %v5219 = vlaneseq
    %v5220 = vshrl.u32 %v5219, 7
    %v5221 = vsub.s32 %v5218, %v5220
    %v5222 = vrot.slane %v5208, %v5221
    %v5223 = vcombine.low %v5190, %v5206
    %v5224 = vcombine.high %v5190, %v5206
    %v5226 = vunpack.c.l.s4 1934713408
    %v5227 = vunpack.c.0.s8 %v5226
    %v5228 = vlaneseq
    %v5229 = vshrl.u32 %v5228, 7
    %v5230 = vsub.s32 %v5227, %v5229
    %v5231 = vrot.slane %v5223, %v5230
    %v5233 = vunpack.c.l.s4 1934713408
    %v5234 = vunpack.c.0.s8 %v5233
    %v5235 = vlaneseq
    %v5236 = vshrl.u32 %v5235, 7
    %v5237 = vsub.s32 %v5234, %v5236
    %v5238 = vrot.slane %v5224, %v5237
    %v5239 = vcombine.high %v5215, 0.0
    %v5240 = vcombine.high %v5222, 0.0
    %v5241 = vcombine.high %v5231, 0.0
    %v5242 = vcombine.high %v5238, 0.0
    %v5243 = vcombine.low %v4953, %v5099
    %v5244 = vcombine.high %v4953, %v5099
    %v5246 = vunpack.c.l.s4 1983009808
    %v5247 = vunpack.c.0.s8 %v5246
    %v5248 = vlaneseq
    %v5249 = vshrl.u32 %v5248, 7
    %v5250 = vsub.s32 %v5247, %v5249
    %v5251 = vrot.slane %v5243, %v5250
    %v5253 = vunpack.c.l.s4 1983009808
    %v5254 = vunpack.c.0.s8 %v5253
    %v5255 = vlaneseq
    %v5256 = vshrl.u32 %v5255, 7
    %v5257 = vsub.s32 %v5254, %v5256
    %v5258 = vrot.slane %v5244, %v5257
    %v5259 = vcombine.low %v5026, %v5172
    %v5260 = vcombine.high %v5026, %v5172
    %v5262 = vunpack.c.l.s4 1983009808
    %v5263 = vunpack.c.0.s8 %v5262
    %v5264 = vlaneseq
    %v5265 = vshrl.u32 %v5264, 7
    %v5266 = vsub.s32 %v5263, %v5265
    %v5267 = vrot.slane %v5259, %v5266
    %v5269 = vunpack.c.l.s4 1983009808
    %v5270 = vunpack.c.0.s8 %v5269
    %v5271 = vlaneseq
    %v5272 = vshrl.u32 %v5271, 7
    %v5273 = vsub.s32 %v5270, %v5272
    %v5274 = vrot.slane %v5260, %v5273
    %v5275 = vcombine.low %v5251, %v5267
    %v5276 = vcombine.high %v5251, %v5267
    %v5278 = vunpack.c.l.s4 1934713408
    %v5279 = vunpack.c.0.s8 %v5278
    %v5280 = vlaneseq
    %v5281 = vshrl.u32 %v5280, 7
    %v5282 = vsub.s32 %v5279, %v5281
    %v5283 = vrot.slane %v5275, %v5282
    %v5285 = vunpack.c.l.s4 1934713408
    %v5286 = vunpack.c.0.s8 %v5285
    %v5287 = vlaneseq
    %v5288 = vshrl.u32 %v5287, 7
    %v5289 = vsub.s32 %v5286, %v5288
    %v5290 = vrot.slane %v5276, %v5289
    %v5291 = vcombine.low %v5258, %v5274
    %v5292 = vcombine.high %v5258, %v5274
    %v5294 = vunpack.c.l.s4 1934713408
    %v5295 = vunpack.c.0.s8 %v5294
    %v5296 = vlaneseq
    %v5297 = vshrl.u32 %v5296, 7
    %v5298 = vsub.s32 %v5295, %v5297
    %v5299 = vrot.slane %v5291, %v5298
    %v5301 = vunpack.c.l.s4 1934713408
    %v5302 = vunpack.c.0.s8 %v5301
    %v5303 = vlaneseq
    %v5304 = vshrl.u32 %v5303, 7
    %v5305 = vsub.s32 %v5302, %v5304
    %v5306 = vrot.slane %v5292, %v5305
    %v5307 = vcombine.high %v5283, 0.0
    %v5308 = vcombine.high %v5290, 0.0
    %v5309 = vcombine.high %v5299, 0.0
    %v5310 = vcombine.high %v5306, 0.0
    %v5311 = vcombine.low %v5215, %v5222
    %v5313 = vunpack.c.l.s4 1983009808
    %v5314 = vunpack.c.0.s8 %v5313
    %v5315 = vlaneseq
    %v5316 = vshrl.u32 %v5315, 7
    %v5317 = vsub.s32 %v5314, %v5316
    %v5318 = vrot.slane %v5311, %v5317
    %v5319 = vcombine.low %v5239, %v5240
    %v5321 = vunpack.c.l.s4 1983009808
    %v5322 = vunpack.c.0.s8 %v5321
    %v5323 = vlaneseq
    %v5324 = vshrl.u32 %v5323, 7
    %v5325 = vsub.s32 %v5322, %v5324
    %v5326 = vrot.slane %v5319, %v5325
    %v5327 = vcombine.low %v5231, %v5238
    %v5329 = vunpack.c.l.s4 1983009808
    %v5330 = vunpack.c.0.s8 %v5329
    %v5331 = vlaneseq
    %v5332 = vshrl.u32 %v5331, 7
    %v5333 = vsub.s32 %v5330, %v5332
    %v5334 = vrot.slane %v5327, %v5333
    %v5335 = vcombine.low %v5241, %v5242
    %v5337 = vunpack.c.l.s4 1983009808
    %v5338 = vunpack.c.0.s8 %v5337
    %v5339 = vlaneseq
    %v5340 = vshrl.u32 %v5339, 7
    %v5341 = vsub.s32 %v5338, %v5340
    %v5342 = vrot.slane %v5335, %v5341
    %v5343 = vcombine.low %v5318, %v5326
    %v5344 = vcombine.high %v5318, %v5326
    %v5346 = vunpack.c.l.s4 1934713408
    %v5347 = vunpack.c.0.s8 %v5346
    %v5348 = vlaneseq
    %v5349 = vshrl.u32 %v5348, 7
    %v5350 = vsub.s32 %v5347, %v5349
    %v5351 = vrot.slane %v5343, %v5350
    %v5353 = vunpack.c.l.s4 1934713408
    %v5354 = vunpack.c.0.s8 %v5353
    %v5355 = vlaneseq
    %v5356 = vshrl.u32 %v5355, 7
    %v5357 = vsub.s32 %v5354, %v5356
    %v5358 = vrot.slane %v5344, %v5357
    %v5359 = vcombine.low %v5334, %v5342
    %v5360 = vcombine.high %v5334, %v5342
    %v5362 = vunpack.c.l.s4 1934713408
    %v5363 = vunpack.c.0.s8 %v5362
    %v5364 = vlaneseq
    %v5365 = vshrl.u32 %v5364, 7
    %v5366 = vsub.s32 %v5363, %v5365
    %v5367 = vrot.slane %v5359, %v5366
    %v5369 = vunpack.c.l.s4 1934713408
    %v5370 = vunpack.c.0.s8 %v5369
    %v5371 = vlaneseq
    %v5372 = vshrl.u32 %v5371, 7
    %v5373 = vsub.s32 %v5370, %v5372
    %v5374 = vrot.slane %v5360, %v5373
    %v5375 = vcombine.low %v5351, %v5367
    %v5376 = vcombine.high %v5351, %v5367
    %v5377 = vcombine.low %v5358, %v5374
    %v5378 = vcombine.high %v5358, %v5374
    %v5379 = vcombine.low %v5283, %v5290
    %v5381 = vunpack.c.l.s4 1983009808
    %v5382 = vunpack.c.0.s8 %v5381
    %v5383 = vlaneseq
    %v5384 = vshrl.u32 %v5383, 7
    %v5385 = vsub.s32 %v5382, %v5384
    %v5386 = vrot.slane %v5379, %v5385
    %v5387 = vcombine.low %v5307, %v5308
    %v5389 = vunpack.c.l.s4 1983009808
    %v5390 = vunpack.c.0.s8 %v5389
    %v5391 = vlaneseq
    %v5392 = vshrl.u32 %v5391, 7
    %v5393 = vsub.s32 %v5390, %v5392
    %v5394 = vrot.slane %v5387, %v5393
    %v5395 = vcombine.low %v5299, %v5306
    %v5397 = vunpack.c.l.s4 1983009808
    %v5398 = vunpack.c.0.s8 %v5397
    %v5399 = vlaneseq
    %v5400 = vshrl.u32 %v5399, 7
    %v5401 = vsub.s32 %v5398, %v5400
    %v5402 = vrot.slane %v5395, %v5401
    %v5403 = vcombine.low %v5309, %v5310
    %v5405 = vunpack.c.l.s4 1983009808
    %v5406 = vunpack.c.0.s8 %v5405
    %v5407 = vlaneseq
    %v5408 = vshrl.u32 %v5407, 7
    %v5409 = vsub.s32 %v5406, %v5408
    %v5410 = vrot.slane %v5403, %v5409
    %v5411 = vcombine.low %v5386, %v5394
    %v5412 = vcombine.high %v5386, %v5394
    %v5414 = vunpack.c.l.s4 1934713408
    %v5415 = vunpack.c.0.s8 %v5414
    %v5416 = vlaneseq
    %v5417 = vshrl.u32 %v5416, 7
    %v5418 = vsub.s32 %v5415, %v5417
    %v5419 = vrot.slane %v5411, %v5418
    %v5421 = vunpack.c.l.s4 1934713408
    %v5422 = vunpack.c.0.s8 %v5421
    %v5423 = vlaneseq
    %v5424 = vshrl.u32 %v5423, 7
    %v5425 = vsub.s32 %v5422, %v5424
    %v5426 = vrot.slane %v5412, %v5425
    %v5427 = vcombine.low %v5402, %v5410
    %v5428 = vcombine.high %v5402, %v5410
    %v5430 = vunpack.c.l.s4 1934713408
    %v5431 = vunpack.c.0.s8 %v5430
    %v5432 = vlaneseq
    %v5433 = vshrl.u32 %v5432, 7
    %v5434 = vsub.s32 %v5431, %v5433
    %v5435 = vrot.slane %v5427, %v5434
    %v5437 = vunpack.c.l.s4 1934713408
    %v5438 = vunpack.c.0.s8 %v5437
    %v5439 = vlaneseq
    %v5440 = vshrl.u32 %v5439, 7
    %v5441 = vsub.s32 %v5438, %v5440
    %v5442 = vrot.slane %v5428, %v5441
    %v5443 = vcombine.low %v5419, %v5435
    %v5444 = vcombine.high %v5419, %v5435
    %v5445 = vcombine.low %v5426, %v5442
    %v5446 = vcombine.high %v5426, %v5442
    %5449 = vrot.lane.b32.xlu0 %v5376, 8
    %v5450 = vpop.permute.xlu0 %5449
    %5451 = vrot.lane.b32.xlu0 %v5444, 8
    %v5452 = vpop.permute.xlu0 %5451
    %5457 = vrot.lane.b32.xlu0 %v5377, 16
    %v5458 = vpop.permute.xlu0 %5457
    %5459 = vrot.lane.b32.xlu0 %v5445, 16
    %v5460 = vpop.permute.xlu0 %5459
    %5465 = vrot.lane.b32.xlu0 %v5378, 24
    %v5466 = vpop.permute.xlu0 %5465
    %5467 = vrot.lane.b32.xlu0 %v5446, 24
    %v5468 = vpop.permute.xlu0 %5467
    %v5471 = vsel %vm1085, %v5375, %v5450
    %v5472 = vsel %vm1085, %v5443, %v5452
    %v5473 = vsel %vm2664, %v5471, %v5458
    %v5474 = vsel %vm2664, %v5472, %v5460
    %v5475 = vsel %vm2667, %v5473, %v5466
    %v5476 = vsel %vm2667, %v5474, %v5468
    %5481 = vrot.lane.b32.xlu0 %v69, 96
    %v5482 = vpop.permute.xlu0 %5481
    %5483 = vrot.lane.b32.xlu0 %v70, 96
    %v5484 = vpop.permute.xlu0 %5483
    %5485 = vrot.lane.b32.xlu0 %v71, 96
    %v5486 = vpop.permute.xlu0 %5485
    %5487 = vrot.lane.b32.xlu0 %v72, 96
    %v5488 = vpop.permute.xlu0 %5487
    %5493 = vrot.lane.b32.xlu0 %v2673, 64
    %v5494 = vpop.permute.xlu0 %5493
    %v5497 = vsel %vm86, %v5475, 0
    %v5500 = vsel %vm86, %v5476, 0
    %5502 = vmatprep.subr.mxu0 0.0
    %5503 = vmatpush1.msra.mxu0 %v5482
    %5504 = vmatprep.subr.mxu0 0.0
    %5505 = vmatpush1.msra.mxu0 %v5484
    %5506 = vmatprep.subr.mxu0 0.0
    %5507 = vmatpush1.msra.mxu0 %v5486
    %5508 = vmatprep.subr.mxu0 0.0
    %5509 = vmatpush1.msra.mxu0 %v5488
    %5510 = vmatprep.subr.mxu0 0.0
    %5511 = vmatpush1.msra.mxu0 0.0
    %5512 = vmatprep.subr.mxu0 0.0
    %5513 = vmatpush1.msra.mxu0 0.0
    %5514 = vmatprep.subr.mxu0 0.0
    %5515 = vmatpush1.msra.mxu0 0.0
    %5516 = vmatprep.subr.mxu0 0.0
    %5517 = vmatpush1.msra.mxu0 0.0
    %5518 = vmatprep.subr.mxu0 0.0
    %5519 = vmatpush1.msra.mxu0 0.0
    %5520 = vmatprep.subr.mxu0 0.0
    %5521 = vmatpush1.msra.mxu0 0.0
    %5522 = vmatprep.subr.mxu0 0.0
    %5523 = vmatpush1.msra.mxu0 0.0
    %5524 = vmatprep.subr.mxu0 0.0
    %5525 = vmatpush1.msra.mxu0 0.0
    %5526 = vmatprep.subr.mxu0 0.0
    %5527 = vmatpush1.msra.mxu0 0.0
    %5528 = vmatprep.subr.mxu0 0.0
    %5529 = vmatpush1.msra.mxu0 0.0
    %5530 = vmatprep.subr.mxu0 0.0
    %5531 = vmatpush1.msra.mxu0 0.0
    %5532 = vmatprep.subr.mxu0 0.0
    %5533 = vmatpush1.msra.mxu0 0.0
    %5534 = vmatprep.subr.mxu0 0.0
    %5535 = vmatpush1.msra.mxu0 0.0
    %5536 = vmatprep.subr.mxu0 0.0
    %5537 = vmatpush1.msra.mxu0 0.0
    %5538 = vmatprep.subr.mxu0 0.0
    %5539 = vmatpush1.msra.mxu0 0.0
    %5540 = vmatprep.subr.mxu0 0.0
    %5541 = vmatpush1.msra.mxu0 0.0
    %5542 = vmatprep.subr.mxu0 0.0
    %5543 = vmatpush1.msra.mxu0 0.0
    %5544 = vmatprep.subr.mxu0 0.0
    %5545 = vmatpush1.msra.mxu0 0.0
    %5546 = vmatprep.subr.mxu0 0.0
    %5547 = vmatpush1.msra.mxu0 0.0
    %5548 = vmatprep.subr.mxu0 0.0
    %5549 = vmatpush1.msra.mxu0 0.0
    %5550 = vmatprep.subr.mxu0 0.0
    %5551 = vmatpush1.msra.mxu0 0.0
    %5552 = vmatprep.subr.mxu0 0.0
    %5553 = vmatpush1.msra.mxu0 0.0
    %5554 = vmatprep.subr.mxu0 0.0
    %5555 = vmatpush1.msra.mxu0 0.0
    %5556 = vmatprep.subr.mxu0 0.0
    %5557 = vmatpush1.msra.mxu0 0.0
    %5558 = vmatprep.subr.mxu0 0.0
    %5559 = vmatpush1.msra.mxu0 0.0
    %5560 = vmatprep.subr.mxu0 0.0
    %5561 = vmatpush1.msra.mxu0 0.0
    %5562 = vmatprep.subr.mxu0 0.0
    %5563 = vmatpush1.msra.mxu0 0.0
    %5564 = vmatprep.subr.mxu0 0.0
    %5565 = vmatpush1.msra.mxu0 0.0
    %5566 = vmatprep.mubr.f32.mxu0 0.0
    %5567 = vmatmul.mubr.f32.gmra.mrb[0].mxu0 %v5497
    %v5568 = vpop.f32.mrb[0].mxu0
    %v5569 = vadd.f32 %v5494, %v5568
    %v5570 = vpop.f32.mrb[0].mxu0
    %5571 = vmatprep.mubr.f32.mxu0 0.0
    %5572 = vmatmul.mubr.f32.gmra.mrb[0].mxu0 %v5500
    %v5573 = vpop.f32.mrb[0].mxu0
    %v5574 = vadd.f32 %v5494, %v5573
    %v5575 = vpop.f32.mrb[0].mxu0
    %5576 = vdwg.mxu0
    %v5577 = vadd.f32 %v2794, %v5569
    %v5578 = vadd.f32 %v2795, %v5574
    %v5579 = vsel %vm86, %v5577, 0.0
    %5580 = vadd.xlane.f32.xlu0 %v5579
    %v5581 = vpop.xlane.xlu0 %5580
    %v5582 = vsel %vm86, %v5578, 0.0
    %5583 = vadd.xlane.f32.xlu0 %v5582
    %v5584 = vpop.xlane.xlu0 %5583
    %v5585 = vmul.f32 %v5581, %v2763
    %v5586 = vmul.f32 %v5584, %v2763
    %v5587 = vsub.f32 %v5577, %v5585
    %v5588 = vsub.f32 %v5578, %v5586
    %v5589 = vmul.f32 %v5587, %v5587
    %v5590 = vmul.f32 %v5588, %v5588
    %v5591 = vsel %vm86, %v5589, 0.0
    %5592 = vadd.xlane.f32.xlu0 %v5591
    %v5593 = vpop.xlane.xlu0 %5592
    %v5594 = vsel %vm86, %v5590, 0.0
    %5595 = vadd.xlane.f32.xlu0 %v5594
    %v5596 = vpop.xlane.xlu0 %5595
    %v5597 = vmul.f32 %v5593, %v2763
    %v5598 = vmul.f32 %v5596, %v2763
    %v5599 = vadd.f32 %v5597, 1e-05
    %v5600 = vadd.f32 %v5598, 1e-05
    %v5601 = vrsqrt.pop %v5599
    %v5602 = vrsqrt.pop %v5600
    %v5603 = vmul.f32 %v5587, %v5601
    %v5604 = vmul.f32 %v5588, %v5602
    %5606 = vrot.lane.b32.xlu0 %v2787, 96
    %v5607 = vpop.permute.xlu0 %5606
    %v5609 = vmul.f32 %v5603, %v5607
    %v5610 = vmul.f32 %v5604, %v5607
    %5612 = vrot.lane.b32.xlu0 %v2793, 96
    %v5613 = vpop.permute.xlu0 %5612
    %v5615 = vadd.f32 %v5609, %v5613
    %v5616 = vadd.f32 %v5610, %v5613
    %5621 = vrot.lane.b32.xlu0 %v65, 64
    %v5622 = vpop.permute.xlu0 %5621
    %5623 = vrot.lane.b32.xlu0 %v66, 64
    %v5624 = vpop.permute.xlu0 %5623
    %5625 = vrot.lane.b32.xlu0 %v67, 64
    %v5626 = vpop.permute.xlu0 %5625
    %5627 = vrot.lane.b32.xlu0 %v68, 64
    %v5628 = vpop.permute.xlu0 %5627
    %5634 = vrot.lane.b32.xlu0 %v2900, 64
    %v5635 = vpop.permute.xlu0 %5634
    %v5638 = vsel %vm86, %v5615, 0
    %v5641 = vsel %vm86, %v5616, 0
    %5643 = vmatprep.subr.mxu0 0.0
    %5644 = vmatpush1.msra.mxu0 %v5622
    %5645 = vmatprep.subr.mxu0 0.0
    %5646 = vmatpush1.msra.mxu0 %v5624
    %5647 = vmatprep.subr.mxu0 0.0
    %5648 = vmatpush1.msra.mxu0 %v5626
    %5649 = vmatprep.subr.mxu0 0.0
    %5650 = vmatpush1.msra.mxu0 %v5628
    %5651 = vmatprep.subr.mxu0 0.0
    %5652 = vmatpush1.msra.mxu0 0.0
    %5653 = vmatprep.subr.mxu0 0.0
    %5654 = vmatpush1.msra.mxu0 0.0
    %5655 = vmatprep.subr.mxu0 0.0
    %5656 = vmatpush1.msra.mxu0 0.0
    %5657 = vmatprep.subr.mxu0 0.0
    %5658 = vmatpush1.msra.mxu0 0.0
    %5659 = vmatprep.subr.mxu0 0.0
    %5660 = vmatpush1.msra.mxu0 0.0
    %5661 = vmatprep.subr.mxu0 0.0
    %5662 = vmatpush1.msra.mxu0 0.0
    %5663 = vmatprep.subr.mxu0 0.0
    %5664 = vmatpush1.msra.mxu0 0.0
    %5665 = vmatprep.subr.mxu0 0.0
    %5666 = vmatpush1.msra.mxu0 0.0
    %5667 = vmatprep.subr.mxu0 0.0
    %5668 = vmatpush1.msra.mxu0 0.0
    %5669 = vmatprep.subr.mxu0 0.0
    %5670 = vmatpush1.msra.mxu0 0.0
    %5671 = vmatprep.subr.mxu0 0.0
    %5672 = vmatpush1.msra.mxu0 0.0
    %5673 = vmatprep.subr.mxu0 0.0
    %5674 = vmatpush1.msra.mxu0 0.0
    %5675 = vmatprep.subr.mxu0 0.0
    %5676 = vmatpush1.msra.mxu0 0.0
    %5677 = vmatprep.subr.mxu0 0.0
    %5678 = vmatpush1.msra.mxu0 0.0
    %5679 = vmatprep.subr.mxu0 0.0
    %5680 = vmatpush1.msra.mxu0 0.0
    %5681 = vmatprep.subr.mxu0 0.0
    %5682 = vmatpush1.msra.mxu0 0.0
    %5683 = vmatprep.subr.mxu0 0.0
    %5684 = vmatpush1.msra.mxu0 0.0
    %5685 = vmatprep.subr.mxu0 0.0
    %5686 = vmatpush1.msra.mxu0 0.0
    %5687 = vmatprep.subr.mxu0 0.0
    %5688 = vmatpush1.msra.mxu0 0.0
    %5689 = vmatprep.subr.mxu0 0.0
    %5690 = vmatpush1.msra.mxu0 0.0
    %5691 = vmatprep.subr.mxu0 0.0
    %5692 = vmatpush1.msra.mxu0 0.0
    %5693 = vmatprep.subr.mxu0 0.0
    %5694 = vmatpush1.msra.mxu0 0.0
    %5695 = vmatprep.subr.mxu0 0.0
    %5696 = vmatpush1.msra.mxu0 0.0
    %5697 = vmatprep.subr.mxu0 0.0
    %5698 = vmatpush1.msra.mxu0 0.0
    %5699 = vmatprep.subr.mxu0 0.0
    %5700 = vmatpush1.msra.mxu0 0.0
    %5701 = vmatprep.subr.mxu0 0.0
    %5702 = vmatpush1.msra.mxu0 0.0
    %5703 = vmatprep.subr.mxu0 0.0
    %5704 = vmatpush1.msra.mxu0 0.0
    %5705 = vmatprep.subr.mxu0 0.0
    %5706 = vmatpush1.msra.mxu0 0.0
    %5707 = vmatprep.mubr.f32.mxu0 0.0
    %5708 = vmatmul.mubr.f32.gmra.mrb[0].mxu0 %v5638
    %v5709 = vpop.f32.mrb[0].mxu0
    %v5710 = vadd.f32 %v5635, %v5709
    %v5711 = vpop.f32.mrb[0].mxu0
    %5712 = vmatprep.mubr.f32.mxu0 0.0
    %5713 = vmatmul.mubr.f32.gmra.mrb[0].mxu0 %v5641
    %v5714 = vpop.f32.mrb[0].mxu0
    %v5715 = vadd.f32 %v5635, %v5714
    %v5716 = vpop.f32.mrb[0].mxu0
    %5717 = vdwg.mxu0
    %v5718 = vmax.f32 %v5710, 0.0
    %v5719 = vmax.f32 %v5715, 0.0
    %5720 = vrot.lane.b32.xlu0 %v2673, 32
    %v5721 = vpop.permute.xlu0 %5720
    %vm5723 = vcmask 523264
    %v5725 = vsel %vm5723, %v5718, 0
    %v5728 = vsel %vm5723, %v5719, 0
    %5730 = vmatprep.subr.mxu0 0.0
    %5731 = vmatpush1.msra.mxu0 %v73
    %5732 = vmatprep.subr.mxu0 0.0
    %5733 = vmatpush1.msra.mxu0 %v74
    %5734 = vmatprep.subr.mxu0 0.0
    %5735 = vmatpush1.msra.mxu0 %v75
    %5736 = vmatprep.subr.mxu0 0.0
    %5737 = vmatpush1.msra.mxu0 %v76
    %5738 = vmatprep.subr.mxu0 0.0
    %5739 = vmatpush1.msra.mxu0 %v77
    %5740 = vmatprep.subr.mxu0 0.0
    %5741 = vmatpush1.msra.mxu0 %v78
    %5742 = vmatprep.subr.mxu0 0.0
    %5743 = vmatpush1.msra.mxu0 %v79
    %5744 = vmatprep.subr.mxu0 0.0
    %5745 = vmatpush1.msra.mxu0 %v80
    %5746 = vmatprep.subr.mxu0 0.0
    %5747 = vmatpush1.msra.mxu0 0.0
    %5748 = vmatprep.subr.mxu0 0.0
    %5749 = vmatpush1.msra.mxu0 0.0
    %5750 = vmatprep.subr.mxu0 0.0
    %5751 = vmatpush1.msra.mxu0 0.0
    %5752 = vmatprep.subr.mxu0 0.0
    %5753 = vmatpush1.msra.mxu0 0.0
    %5754 = vmatprep.subr.mxu0 0.0
    %5755 = vmatpush1.msra.mxu0 0.0
    %5756 = vmatprep.subr.mxu0 0.0
    %5757 = vmatpush1.msra.mxu0 0.0
    %5758 = vmatprep.subr.mxu0 0.0
    %5759 = vmatpush1.msra.mxu0 0.0
    %5760 = vmatprep.subr.mxu0 0.0
    %5761 = vmatpush1.msra.mxu0 0.0
    %5762 = vmatprep.subr.mxu0 0.0
    %5763 = vmatpush1.msra.mxu0 0.0
    %5764 = vmatprep.subr.mxu0 0.0
    %5765 = vmatpush1.msra.mxu0 0.0
    %5766 = vmatprep.subr.mxu0 0.0
    %5767 = vmatpush1.msra.mxu0 0.0
    %5768 = vmatprep.subr.mxu0 0.0
    %5769 = vmatpush1.msra.mxu0 0.0
    %5770 = vmatprep.subr.mxu0 0.0
    %5771 = vmatpush1.msra.mxu0 0.0
    %5772 = vmatprep.subr.mxu0 0.0
    %5773 = vmatpush1.msra.mxu0 0.0
    %5774 = vmatprep.subr.mxu0 0.0
    %5775 = vmatpush1.msra.mxu0 0.0
    %5776 = vmatprep.subr.mxu0 0.0
    %5777 = vmatpush1.msra.mxu0 0.0
    %5778 = vmatprep.subr.mxu0 0.0
    %5779 = vmatpush1.msra.mxu0 0.0
    %5780 = vmatprep.subr.mxu0 0.0
    %5781 = vmatpush1.msra.mxu0 0.0
    %5782 = vmatprep.subr.mxu0 0.0
    %5783 = vmatpush1.msra.mxu0 0.0
    %5784 = vmatprep.subr.mxu0 0.0
    %5785 = vmatpush1.msra.mxu0 0.0
    %5786 = vmatprep.subr.mxu0 0.0
    %5787 = vmatpush1.msra.mxu0 0.0
    %5788 = vmatprep.subr.mxu0 0.0
    %5789 = vmatpush1.msra.mxu0 0.0
    %5790 = vmatprep.subr.mxu0 0.0
    %5791 = vmatpush1.msra.mxu0 0.0
    %5792 = vmatprep.subr.mxu0 0.0
    %5793 = vmatpush1.msra.mxu0 0.0
    %5794 = vmatprep.mubr.f32.mxu0 0.0
    %5795 = vmatmul.mubr.f32.gmra.mrb[0].mxu0 %v5725
    %v5796 = vpop.f32.mrb[0].mxu0
    %v5797 = vadd.f32 %v5721, %v5796
    %v5798 = vpop.f32.mrb[0].mxu0
    %5799 = vmatprep.mubr.f32.mxu0 0.0
    %5800 = vmatmul.mubr.f32.gmra.mrb[0].mxu0 %v5728
    %v5801 = vpop.f32.mrb[0].mxu0
    %v5802 = vadd.f32 %v5721, %v5801
    %v5803 = vpop.f32.mrb[0].mxu0
    %5804 = vdwg.mxu0
    %v5805 = vadd.f32 %v5615, %v5797
    %v5806 = vadd.f32 %v5616, %v5802
    %v5807 = vsel %vm86, %v5805, 0.0
    %5808 = vadd.xlane.f32.xlu0 %v5807
    %v5809 = vpop.xlane.xlu0 %5808
    %v5810 = vsel %vm86, %v5806, 0.0
    %5811 = vadd.xlane.f32.xlu0 %v5810
    %v5812 = vpop.xlane.xlu0 %5811
    %v5813 = vmul.f32 %v5809, %v2763
    %v5814 = vmul.f32 %v5812, %v2763
    %v5815 = vsub.f32 %v5805, %v5813
    %v5816 = vsub.f32 %v5806, %v5814
    %v5817 = vmul.f32 %v5815, %v5815
    %v5818 = vmul.f32 %v5816, %v5816
    %v5819 = vsel %vm86, %v5817, 0.0
    %5820 = vadd.xlane.f32.xlu0 %v5819
    %v5821 = vpop.xlane.xlu0 %5820
    %v5822 = vsel %vm86, %v5818, 0.0
    %5823 = vadd.xlane.f32.xlu0 %v5822
    %v5824 = vpop.xlane.xlu0 %5823
    %v5825 = vmul.f32 %v5821, %v2763
    %v5826 = vmul.f32 %v5824, %v2763
    %v5827 = vadd.f32 %v5825, 1e-05
    %v5828 = vadd.f32 %v5826, 1e-05
    %v5829 = vrsqrt.pop %v5827
    %v5830 = vrsqrt.pop %v5828
    %v5831 = vmul.f32 %v5815, %v5829
    %v5832 = vmul.f32 %v5816, %v5830
    %5833 = vrot.lane.b32.xlu0 %v2787, 64
    %v5834 = vpop.permute.xlu0 %5833
    %v5836 = vmul.f32 %v5831, %v5834
    %v5837 = vmul.f32 %v5832, %v5834
    %5838 = vrot.lane.b32.xlu0 %v2793, 64
    %v5839 = vpop.permute.xlu0 %5838
    %v5841 = vadd.f32 %v5836, %v5839
    %v5842 = vadd.f32 %v5837, %v5839
    %5843 = vst.msk [vmem:[#allocation7] sm:$0xff] %vm86, %v5841
    %5844 = vst.msk [vmem:[#allocation7 + $0x8] sm:$0xff] %vm86, %v5842
    // Predicated region
    $region38: #{decoder_layer.1} parent=1 // pred_check
      _
    $region39: #{decoder_layer.1} parent=1 // pred_check_branch
      %5846 = sbr.rel (0) target = $region41
    $region40: #{decoder_layer.1} parent=1 // pred_region
      %s5848 = ssub.s32 256, 256
      %5849 = vsyncadd [#allocation4], %s5848
      %s5850 = sshll.u32 [#allocation7], 4
      %s5851 = int_to_ptr.vmem [resolvable:$true] %s5850
      %5856 = dma.vmem_to_hbm [thread:$0]  %s5851, 256, %s7, [#allocation4], 128, 128, 8
    $region41: #{decoder_layer.1} parent=1 // pred_fallthru
      _
    // Predicated region
    $region42: #{decoder_layer.1} parent=1 // pred_check
      _
    $region43: #{decoder_layer.1} parent=1 // pred_check_branch
      %5858 = sbr.rel (0) target = $region45
    $region44: #{decoder_layer.1} parent=1 // pred_region
      %5859 = dma.done [#allocation4], 256
    $region45: #{decoder_layer.1} parent=1 // pred_fallthru
      _
    %5860 = vsyncpa [#allocation3], 1
    %5861 = vsyncpa [#allocation6], 1
    %5862 = vsyncpa [#allocation4], 1

</llo_original>
